<compile_context>
chip_gen: v5e
topology: v5e:2x2
jax: 0.10.0
libtpu: 0.0.40
codegen_flags: <defaults>
</compile_context>

<pallas_src>
import functools

import jax
import jax.numpy as jnp
from jax.experimental import pallas as pl
from jax.experimental.pallas import tpu as pltpu

HIDDEN = 256


def _g_theta_kernel(x_ref,
                    w1_ref, b1_ref,
                    w2_ref, b2_ref,
                    w3_ref, b3_ref,
                    w4_ref, b4_ref,
                    o_ref):
    """Fused 4-layer MLP (Linear+ReLU x4) on one row-tile of the input.

    Matmul operands use the weights' dtype (bf16 by default), accumulation is
    f32, bias-add + ReLU are f32, activations are re-cast between layers.
    """
    x = x_ref[...].astype(w1_ref.dtype)

    h = jnp.dot(x, w1_ref[...], preferred_element_type=jnp.float32)
    h = jnp.maximum(h + b1_ref[...], 0.0)

    h = jnp.dot(h.astype(w2_ref.dtype), w2_ref[...],
                preferred_element_type=jnp.float32)
    h = jnp.maximum(h + b2_ref[...], 0.0)

    h = jnp.dot(h.astype(w3_ref.dtype), w3_ref[...],
                preferred_element_type=jnp.float32)
    h = jnp.maximum(h + b3_ref[...], 0.0)

    h = jnp.dot(h.astype(w4_ref.dtype), w4_ref[...],
                preferred_element_type=jnp.float32)
    h = jnp.maximum(h + b4_ref[...], 0.0)

    o_ref[...] = h.astype(o_ref.dtype)


def _round_up(x, n):
    return -(-x // n) * n


def _tpu_generation_info():
    """(num_tensorcores, vmem_capacity_bytes) with conservative fallbacks."""
    num_tc = 1
    vmem_cap = 64 << 20  # most conservative physical capacity (v7x per-TC)
    try:
        kind = jax.devices()[0].device_kind.lower()
        if "7" in kind or "v4" in kind:   # v7x / v4: two TCs behind one device
            num_tc = 2
    except Exception:
        pass
    try:
        vmem_cap = int(pltpu.get_tpu_info().vmem_capacity_bytes)
    except Exception:
        pass
    return num_tc, vmem_cap


def _choose_row_tile(m, num_tc, tile_m):
    """Sublane-aligned row tile.

    1-TC chips (v5e/v6e): one big block (full-dim if it fits, else tile_m).
    2-TC chips (v7x): aim for an even block count >= 2 so both TensorCores get
    balanced work under dimension_semantics=("parallel",).
    """
    if m <= 16:
        return m                                   # tiny: single full-dim block
    if num_tc == 1:
        if m <= tile_m:
            return m                               # one full-dim block
        return max(8, (min(tile_m, m) // 8) * 8)   # big, sublane-aligned tile
    # Two TensorCores: even number of blocks, each <= tile_m rows.
    blocks = 2 * (_round_up(m, 2 * tile_m) // (2 * tile_m))
    tm = _round_up(-(-m // blocks), 8)
    for _ in range(4):                             # fix odd counts from round-up
        g = -(-m // tm)
        if g <= 1 or g % 2 == 0:
            break
        tm = _round_up(-(-m // (g + 1)), 8)
    return max(8, tm)


def _vmem_bytes_estimate(tm, in_size, in_itemsize, out_itemsize, w_itemsize):
    """Rough VMEM footprint: double-buffered I/O blocks + weights + live f32."""
    lane = lambda n: _round_up(n, 128)
    x_blk = 2 * tm * lane(in_size) * in_itemsize
    o_blk = 2 * tm * HIDDEN * out_itemsize
    w_bytes = 2 * w_itemsize * (lane(in_size) * HIDDEN + 3 * HIDDEN * HIDDEN)
    b_bytes = 2 * 4 * 4 * HIDDEN
    live = 3 * tm * HIDDEN * 4
    return x_blk + o_blk + w_bytes + b_bytes + live


@functools.partial(
    jax.jit,
    static_argnames=("tile_m", "out_dtype", "compute_dtype",
                     "single_buffer_weights"))
def _forward(inputs, params, *, tile_m, out_dtype, compute_dtype,
             single_buffer_weights):
    in_size = inputs.shape[-1]
    lead_shape = inputs.shape[:-1]
    x2d = inputs.reshape(-1, in_size)
    m = x2d.shape[0]
    out_dt = inputs.dtype if out_dtype is None else out_dtype

    num_tc, vmem_cap = _tpu_generation_info()
    tm = _choose_row_tile(m, num_tc, tile_m)
    grid = (pl.cdiv(m, tm),)

    # Compute-dtype weights for the MXU; biases stay f32 (added to the f32 acc).
    ws = [params[f"w{i}"].astype(compute_dtype) for i in range(1, 5)]
    bs = [params[f"b{i}"].astype(jnp.float32) for i in range(1, 5)]

    # Weights/biases are resident (constant block index every grid step).
    def _const_spec(a):
        if single_buffer_weights:
            return pl.BlockSpec(a.shape, lambda i: (0, 0),
                                pipeline_mode=pl.Buffered(1))
        return pl.BlockSpec(a.shape, lambda i: (0, 0))

    in_itemsize = jnp.dtype(x2d.dtype).itemsize
    out_itemsize = jnp.dtype(out_dt).itemsize
    w_itemsize = jnp.dtype(compute_dtype).itemsize

    est = _vmem_bytes_estimate(tm, in_size, in_itemsize, out_itemsize, w_itemsize)
    # Always set the scoped-VMEM limit explicitly (estimate + margin), staying
    # well under the chip's physical capacity.
    vmem_limit = int(max(est * 3 // 2 + (4 << 20), 24 << 20))
    vmem_limit = int(min(vmem_limit, (vmem_cap * 3) // 4))
    vmem_limit = int(max(vmem_limit, est + (2 << 20)))

    flops = 2 * m * (in_size * HIDDEN + 3 * HIDDEN * HIDDEN) + 4 * m * HIDDEN
    bytes_accessed = (m * in_size * in_itemsize
                      + m * HIDDEN * out_itemsize
                      + w_itemsize * (in_size * HIDDEN + 3 * HIDDEN * HIDDEN)
                      + 4 * 4 * HIDDEN)
    cost = pl.CostEstimate(flops=flops, transcendentals=0,
                           bytes_accessed=bytes_accessed)

    out = pl.pallas_call(
        _g_theta_kernel,
        out_shape=jax.ShapeDtypeStruct((m, HIDDEN), out_dt),
        grid_spec=pltpu.PrefetchScalarGridSpec(
            num_scalar_prefetch=0,
            grid=grid,
            in_specs=[pl.BlockSpec((tm, in_size), lambda i: (i, 0))]
                     + [spec for w, b in zip(ws, bs)
                        for spec in (_const_spec(w), _const_spec(b))],
            out_specs=pl.BlockSpec((tm, HIDDEN), lambda i: (i, 0)),
        ),
        compiler_params=pltpu.CompilerParams(
            dimension_semantics=("parallel",),
            vmem_limit_bytes=vmem_limit),
        cost_estimate=cost,
    )(x2d,
      ws[0], bs[0], ws[1], bs[1], ws[2], bs[2], ws[3], bs[3])

    return out.reshape(*lead_shape, HIDDEN)


_SINGLE_BUFFER_OK = True


def pairwise_relation_network(inputs, params, *, tile_m=1024, out_dtype=None,
                              compute_dtype=jnp.bfloat16):
    """Forward pass of PairwiseRelationNetwork.

    inputs: [batch, *, input_size]  (any number of middle dims)
    params: dict with w1..w4 of shape (in, out) and b1..b4 of shape (1, out)
    returns: [batch, *, 256] in out_dtype (defaults to inputs.dtype)
    """
    global _SINGLE_BUFFER_OK
    if _SINGLE_BUFFER_OK:
        try:
            return _forward(inputs, params, tile_m=tile_m, out_dtype=out_dtype,
                            compute_dtype=compute_dtype,
                            single_buffer_weights=True)
        except Exception:
            # pipeline_mode=pl.Buffered(1) unsupported on this JAX/Mosaic build;
            # fall back to the default double-buffered weight blocks.
            _SINGLE_BUFFER_OK = False
    return _forward(inputs, params, tile_m=tile_m, out_dtype=out_dtype,
                    compute_dtype=compute_dtype, single_buffer_weights=False)


def init_params(key, input_size, dtype=jnp.float32):
    """Deterministic init mirroring nn.Linear default U(-1/sqrt(fan_in), +)."""
    sizes = [(input_size, HIDDEN), (HIDDEN, HIDDEN),
             (HIDDEN, HIDDEN), (HIDDEN, HIDDEN)]
    params = {}
    keys = jax.random.split(key, 2 * len(sizes))
    for idx, (fan_in, fan_out) in enumerate(sizes):
        bound = 1.0 / (fan_in ** 0.5)
        w = jax.random.uniform(keys[2 * idx], (fan_in, fan_out),
                               dtype=dtype, minval=-bound, maxval=bound)
        b = jax.random.uniform(keys[2 * idx + 1], (1, fan_out),
                               dtype=dtype, minval=-bound, maxval=bound)
        params[f"w{idx + 1}"] = w
        params[f"b{idx + 1}"] = b
    return params


def reference_forward_bf16(inputs, params):
    """Plain-JAX reference mirroring the kernel's default mixed precision."""
    x = inputs.astype(jnp.bfloat16)
    h = None
    for i in range(1, 5):
        w = params[f"w{i}"].astype(jnp.bfloat16)
        b = params[f"b{i}"].astype(jnp.float32)
        h = jnp.dot(x, w, preferred_element_type=jnp.float32)
        h = jnp.maximum(h + b[0], 0.0)
        x = h.astype(jnp.bfloat16)
    return h.astype(inputs.dtype)


def reference_forward_f32(inputs, params):
    """Full-f32 reference matching the original PyTorch semantics."""
    x = inputs
    for i in range(1, 5):
        x = jnp.maximum(x @ params[f"w{i}"] + params[f"b{i}"][0], 0.0)
    return x


if __name__ == "__main__":
    key = jax.random.PRNGKey(0)
    k_x, k_p = jax.random.split(key)

    # Small shapes consistent with the module: a batch of region-pair feature
    # vectors, e.g. batch=2, 64 region pairs, input_size = 2*(24+2)+11 = 63.
    batch, n_pairs, input_size = 2, 64, 63
    x = jax.random.normal(k_x, (batch, n_pairs, input_size), dtype=jnp.float32)

    params = init_params(k_p, input_size)

    out = pairwise_relation_network(x, params)
    out = jax.block_until_ready(out)

    assert out.shape == (batch, n_pairs, HIDDEN), out.shape

    # Check against a reference using the same bf16/f32 mixed precision.
    ref = reference_forward_bf16(x, params)
    scale = float(jnp.maximum(jnp.max(jnp.abs(ref)), 1.0))
    err = float(jnp.max(jnp.abs(out - ref))) / scale
    assert err < 2e-2, f"relative error vs bf16 reference: {err}"

    # Loose sanity check against the exact f32 semantics of the PyTorch module.
    ref32 = reference_forward_f32(x, params)
    scale32 = float(jnp.maximum(jnp.max(jnp.abs(ref32)), 1.0))
    err32 = float(jnp.max(jnp.abs(out - ref32))) / scale32
    assert err32 < 5e-2, f"relative error vs f32 reference: {err32}"

    # Exact-precision path (compute_dtype=f32) must match the f32 reference tightly.
    out_f32 = jax.block_until_ready(
        pairwise_relation_network(x, params, compute_dtype=jnp.float32))
    err_exact = float(jnp.max(jnp.abs(out_f32 - ref32))) / scale32
    assert err_exact < 1e-5, f"relative error (f32 compute) vs f32 reference: {err_exact}"

    print("KERNEL_OK")
</pallas_src>

<mosaic_0001>
module attributes {stable_mosaic.version = 11 : i64} {
  func.func @_g_theta_kernel(%arg0: i32, %arg1: memref<128x63xf32, #tpu.memory_space<vmem>>, %arg2: memref<63x256xbf16, #tpu.memory_space<vmem>>, %arg3: memref<1x256xf32, #tpu.memory_space<vmem>>, %arg4: memref<256x256xbf16, #tpu.memory_space<vmem>>, %arg5: memref<1x256xf32, #tpu.memory_space<vmem>>, %arg6: memref<256x256xbf16, #tpu.memory_space<vmem>>, %arg7: memref<1x256xf32, #tpu.memory_space<vmem>>, %arg8: memref<256x256xbf16, #tpu.memory_space<vmem>>, %arg9: memref<1x256xf32, #tpu.memory_space<vmem>>, %arg10: memref<128x256xf32, #tpu.memory_space<vmem>>) attributes {dimension_semantics = [#tpu.dimension_semantics<parallel>], iteration_bounds = array<i64: 1>, scalar_prefetch = 0 : i64, scratch_operands = 0 : i64, tpu.core_type = #tpu.core_type<tc>, window_params = [{transform_indices = @transform_0, window_bounds = array<i64: 128, 63>}, {pipeline_mode = #tpu.pipeline_mode<synchronous>, transform_indices = @transform_1, window_bounds = array<i64: 63, 256>}, {pipeline_mode = #tpu.pipeline_mode<synchronous>, transform_indices = @transform_2, window_bounds = array<i64: 1, 256>}, {pipeline_mode = #tpu.pipeline_mode<synchronous>, transform_indices = @transform_3, window_bounds = array<i64: 256, 256>}, {pipeline_mode = #tpu.pipeline_mode<synchronous>, transform_indices = @transform_4, window_bounds = array<i64: 1, 256>}, {pipeline_mode = #tpu.pipeline_mode<synchronous>, transform_indices = @transform_5, window_bounds = array<i64: 256, 256>}, {pipeline_mode = #tpu.pipeline_mode<synchronous>, transform_indices = @transform_6, window_bounds = array<i64: 1, 256>}, {pipeline_mode = #tpu.pipeline_mode<synchronous>, transform_indices = @transform_7, window_bounds = array<i64: 256, 256>}, {pipeline_mode = #tpu.pipeline_mode<synchronous>, transform_indices = @transform_8, window_bounds = array<i64: 1, 256>}, {transform_indices = @transform_9, window_bounds = array<i64: 128, 256>}]} {
    %c0 = arith.constant 0 : index
    %c0_0 = arith.constant 0 : index
    %0 = vector.load %arg1[%c0, %c0_0] : memref<128x63xf32, #tpu.memory_space<vmem>>, vector<128x63xf32>
    %1 = arith.truncf %0 : vector<128x63xf32> to vector<128x63xbf16>
    %c0_1 = arith.constant 0 : index
    %c0_2 = arith.constant 0 : index
    %2 = vector.load %arg2[%c0_1, %c0_2] : memref<63x256xbf16, #tpu.memory_space<vmem>>, vector<63x256xbf16>
    %cst = arith.constant dense<0.000000e+00> : vector<128x256xf32>
    %3 = tpu.matmul %1, %2, %cst {dimension_numbers = #tpu.dot_dimension_numbers<[1], [0], [0], [1], [0, 0, 1, 1], [], []>} : vector<128x63xbf16>, vector<63x256xbf16>, vector<128x256xf32> -> vector<128x256xf32>
    %c0_3 = arith.constant 0 : index
    %c0_4 = arith.constant 0 : index
    %4 = vector.load %arg3[%c0_3, %c0_4] : memref<1x256xf32, #tpu.memory_space<vmem>>, vector<1x256xf32>
    %5 = vector.broadcast %4 : vector<1x256xf32> to vector<128x256xf32>
    %6 = arith.addf %3, %5 : vector<128x256xf32>
    %cst_5 = arith.constant 0.000000e+00 : f32
    %7 = vector.broadcast %cst_5 : f32 to vector<128x256xf32>
    %8 = arith.maximumf %6, %7 : vector<128x256xf32>
    %9 = arith.truncf %8 : vector<128x256xf32> to vector<128x256xbf16>
    %c0_6 = arith.constant 0 : index
    %c0_7 = arith.constant 0 : index
    %10 = vector.load %arg4[%c0_6, %c0_7] : memref<256x256xbf16, #tpu.memory_space<vmem>>, vector<256x256xbf16>
    %cst_8 = arith.constant dense<0.000000e+00> : vector<128x256xf32>
    %11 = tpu.matmul %9, %10, %cst_8 {dimension_numbers = #tpu.dot_dimension_numbers<[1], [0], [0], [1], [0, 0, 1, 1], [], []>} : vector<128x256xbf16>, vector<256x256xbf16>, vector<128x256xf32> -> vector<128x256xf32>
    %c0_9 = arith.constant 0 : index
    %c0_10 = arith.constant 0 : index
    %12 = vector.load %arg5[%c0_9, %c0_10] : memref<1x256xf32, #tpu.memory_space<vmem>>, vector<1x256xf32>
    %13 = vector.broadcast %12 : vector<1x256xf32> to vector<128x256xf32>
    %14 = arith.addf %11, %13 : vector<128x256xf32>
    %cst_11 = arith.constant 0.000000e+00 : f32
    %15 = vector.broadcast %cst_11 : f32 to vector<128x256xf32>
    %16 = arith.maximumf %14, %15 : vector<128x256xf32>
    %17 = arith.truncf %16 : vector<128x256xf32> to vector<128x256xbf16>
    %c0_12 = arith.constant 0 : index
    %c0_13 = arith.constant 0 : index
    %18 = vector.load %arg6[%c0_12, %c0_13] : memref<256x256xbf16, #tpu.memory_space<vmem>>, vector<256x256xbf16>
    %cst_14 = arith.constant dense<0.000000e+00> : vector<128x256xf32>
    %19 = tpu.matmul %17, %18, %cst_14 {dimension_numbers = #tpu.dot_dimension_numbers<[1], [0], [0], [1], [0, 0, 1, 1], [], []>} : vector<128x256xbf16>, vector<256x256xbf16>, vector<128x256xf32> -> vector<128x256xf32>
    %c0_15 = arith.constant 0 : index
    %c0_16 = arith.constant 0 : index
    %20 = vector.load %arg7[%c0_15, %c0_16] : memref<1x256xf32, #tpu.memory_space<vmem>>, vector<1x256xf32>
    %21 = vector.broadcast %20 : vector<1x256xf32> to vector<128x256xf32>
    %22 = arith.addf %19, %21 : vector<128x256xf32>
    %cst_17 = arith.constant 0.000000e+00 : f32
    %23 = vector.broadcast %cst_17 : f32 to vector<128x256xf32>
    %24 = arith.maximumf %22, %23 : vector<128x256xf32>
    %25 = arith.truncf %24 : vector<128x256xf32> to vector<128x256xbf16>
    %c0_18 = arith.constant 0 : index
    %c0_19 = arith.constant 0 : index
    %26 = vector.load %arg8[%c0_18, %c0_19] : memref<256x256xbf16, #tpu.memory_space<vmem>>, vector<256x256xbf16>
    %cst_20 = arith.constant dense<0.000000e+00> : vector<128x256xf32>
    %27 = tpu.matmul %25, %26, %cst_20 {dimension_numbers = #tpu.dot_dimension_numbers<[1], [0], [0], [1], [0, 0, 1, 1], [], []>} : vector<128x256xbf16>, vector<256x256xbf16>, vector<128x256xf32> -> vector<128x256xf32>
    %c0_21 = arith.constant 0 : index
    %c0_22 = arith.constant 0 : index
    %28 = vector.load %arg9[%c0_21, %c0_22] : memref<1x256xf32, #tpu.memory_space<vmem>>, vector<1x256xf32>
    %29 = vector.broadcast %28 : vector<1x256xf32> to vector<128x256xf32>
    %30 = arith.addf %27, %29 : vector<128x256xf32>
    %cst_23 = arith.constant 0.000000e+00 : f32
    %31 = vector.broadcast %cst_23 : f32 to vector<128x256xf32>
    %32 = arith.maximumf %30, %31 : vector<128x256xf32>
    %c0_24 = arith.constant 0 : index
    %c0_25 = arith.constant 0 : index
    %33 = vector.load %arg10[%c0_24, %c0_25] : memref<128x256xf32, #tpu.memory_space<vmem>>, vector<128x256xf32>
    tpu.vector_store %arg10[%c0_24, %c0_25], %32 {strides = array<i32>} : memref<128x256xf32, #tpu.memory_space<vmem>>, vector<128x256xf32>,
    return
  }
  func.func @transform_0(%arg0: i32) -> (i32, i32) {
    %c0_i32 = arith.constant 0 : i32
    %c0_i32_0 = arith.constant 0 : i32
    return %arg0, %c0_i32 : i32, i32
  }
  func.func @transform_1(%arg0: i32) -> (i32, i32) {
    %c0_i32 = arith.constant 0 : i32
    %c0_i32_0 = arith.constant 0 : i32
    %c0_i32_1 = arith.constant 0 : i32
    return %c0_i32, %c0_i32_0 : i32, i32
  }
  func.func @transform_2(%arg0: i32) -> (i32, i32) {
    %c0_i32 = arith.constant 0 : i32
    %c0_i32_0 = arith.constant 0 : i32
    %c0_i32_1 = arith.constant 0 : i32
    return %c0_i32, %c0_i32_0 : i32, i32
  }
  func.func @transform_3(%arg0: i32) -> (i32, i32) {
    %c0_i32 = arith.constant 0 : i32
    %c0_i32_0 = arith.constant 0 : i32
    %c0_i32_1 = arith.constant 0 : i32
    return %c0_i32, %c0_i32_0 : i32, i32
  }
  func.func @transform_4(%arg0: i32) -> (i32, i32) {
    %c0_i32 = arith.constant 0 : i32
    %c0_i32_0 = arith.constant 0 : i32
    %c0_i32_1 = arith.constant 0 : i32
    return %c0_i32, %c0_i32_0 : i32, i32
  }
  func.func @transform_5(%arg0: i32) -> (i32, i32) {
    %c0_i32 = arith.constant 0 : i32
    %c0_i32_0 = arith.constant 0 : i32
    %c0_i32_1 = arith.constant 0 : i32
    return %c0_i32, %c0_i32_0 : i32, i32
  }
  func.func @transform_6(%arg0: i32) -> (i32, i32) {
    %c0_i32 = arith.constant 0 : i32
    %c0_i32_0 = arith.constant 0 : i32
    %c0_i32_1 = arith.constant 0 : i32
    return %c0_i32, %c0_i32_0 : i32, i32
  }
  func.func @transform_7(%arg0: i32) -> (i32, i32) {
    %c0_i32 = arith.constant 0 : i32
    %c0_i32_0 = arith.constant 0 : i32
    %c0_i32_1 = arith.constant 0 : i32
    return %c0_i32, %c0_i32_0 : i32, i32
  }
  func.func @transform_8(%arg0: i32) -> (i32, i32) {
    %c0_i32 = arith.constant 0 : i32
    %c0_i32_0 = arith.constant 0 : i32
    %c0_i32_1 = arith.constant 0 : i32
    return %c0_i32, %c0_i32_0 : i32, i32
  }
  func.func @transform_9(%arg0: i32) -> (i32, i32) {
    %c0_i32 = arith.constant 0 : i32
    %c0_i32_0 = arith.constant 0 : i32
    return %arg0, %c0_i32 : i32, i32
  }
}

module attributes {stable_mosaic.version = 11 : i64} {
  func.func @_g_theta_kernel(%arg0: i32, %arg1: memref<128x63xf32, #tpu.memory_space<vmem>>, %arg2: memref<63x256xbf16, #tpu.memory_space<vmem>>, %arg3: memref<1x256xf32, #tpu.memory_space<vmem>>, %arg4: memref<256x256xbf16, #tpu.memory_space<vmem>>, %arg5: memref<1x256xf32, #tpu.memory_space<vmem>>, %arg6: memref<256x256xbf16, #tpu.memory_space<vmem>>, %arg7: memref<1x256xf32, #tpu.memory_space<vmem>>, %arg8: memref<256x256xbf16, #tpu.memory_space<vmem>>, %arg9: memref<1x256xf32, #tpu.memory_space<vmem>>, %arg10: memref<128x256xf32, #tpu.memory_space<vmem>>) attributes {dimension_semantics = [#tpu.dimension_semantics<parallel>], iteration_bounds = array<i64: 1>, scalar_prefetch = 0 : i64, scratch_operands = 0 : i64, tpu.core_type = #tpu.core_type<tc>, window_params = [{transform_indices = @transform_0, window_bounds = array<i64: 128, 63>}, {pipeline_mode = #tpu.pipeline_mode<synchronous>, transform_indices = @transform_1, window_bounds = array<i64: 63, 256>}, {pipeline_mode = #tpu.pipeline_mode<synchronous>, transform_indices = @transform_2, window_bounds = array<i64: 1, 256>}, {pipeline_mode = #tpu.pipeline_mode<synchronous>, transform_indices = @transform_3, window_bounds = array<i64: 256, 256>}, {pipeline_mode = #tpu.pipeline_mode<synchronous>, transform_indices = @transform_4, window_bounds = array<i64: 1, 256>}, {pipeline_mode = #tpu.pipeline_mode<synchronous>, transform_indices = @transform_5, window_bounds = array<i64: 256, 256>}, {pipeline_mode = #tpu.pipeline_mode<synchronous>, transform_indices = @transform_6, window_bounds = array<i64: 1, 256>}, {pipeline_mode = #tpu.pipeline_mode<synchronous>, transform_indices = @transform_7, window_bounds = array<i64: 256, 256>}, {pipeline_mode = #tpu.pipeline_mode<synchronous>, transform_indices = @transform_8, window_bounds = array<i64: 1, 256>}, {transform_indices = @transform_9, window_bounds = array<i64: 128, 256>}]} {
    %c0 = arith.constant 0 : index
    %c0_0 = arith.constant 0 : index
    %0 = vector.load %arg1[%c0, %c0_0] : memref<128x63xf32, #tpu.memory_space<vmem>>, vector<128x63xf32>
    %1 = arith.truncf %0 : vector<128x63xf32> to vector<128x63xbf16>
    %c0_1 = arith.constant 0 : index
    %c0_2 = arith.constant 0 : index
    %2 = vector.load %arg2[%c0_1, %c0_2] : memref<63x256xbf16, #tpu.memory_space<vmem>>, vector<63x256xbf16>
    %cst = arith.constant dense<0.000000e+00> : vector<128x256xf32>
    %3 = tpu.matmul %1, %2, %cst {dimension_numbers = #tpu.dot_dimension_numbers<[1], [0], [0], [1], [0, 0, 1, 1], [], []>} : vector<128x63xbf16>, vector<63x256xbf16>, vector<128x256xf32> -> vector<128x256xf32>
    %c0_3 = arith.constant 0 : index
    %c0_4 = arith.constant 0 : index
    %4 = vector.load %arg3[%c0_3, %c0_4] : memref<1x256xf32, #tpu.memory_space<vmem>>, vector<1x256xf32>
    %5 = vector.broadcast %4 : vector<1x256xf32> to vector<128x256xf32>
    %6 = arith.addf %3, %5 : vector<128x256xf32>
    %cst_5 = arith.constant 0.000000e+00 : f32
    %7 = vector.broadcast %cst_5 : f32 to vector<128x256xf32>
    %8 = arith.maximumf %6, %7 : vector<128x256xf32>
    %9 = arith.truncf %8 : vector<128x256xf32> to vector<128x256xbf16>
    %c0_6 = arith.constant 0 : index
    %c0_7 = arith.constant 0 : index
    %10 = vector.load %arg4[%c0_6, %c0_7] : memref<256x256xbf16, #tpu.memory_space<vmem>>, vector<256x256xbf16>
    %cst_8 = arith.constant dense<0.000000e+00> : vector<128x256xf32>
    %11 = tpu.matmul %9, %10, %cst_8 {dimension_numbers = #tpu.dot_dimension_numbers<[1], [0], [0], [1], [0, 0, 1, 1], [], []>} : vector<128x256xbf16>, vector<256x256xbf16>, vector<128x256xf32> -> vector<128x256xf32>
    %c0_9 = arith.constant 0 : index
    %c0_10 = arith.constant 0 : index
    %12 = vector.load %arg5[%c0_9, %c0_10] : memref<1x256xf32, #tpu.memory_space<vmem>>, vector<1x256xf32>
    %13 = vector.broadcast %12 : vector<1x256xf32> to vector<128x256xf32>
    %14 = arith.addf %11, %13 : vector<128x256xf32>
    %cst_11 = arith.constant 0.000000e+00 : f32
    %15 = vector.broadcast %cst_11 : f32 to vector<128x256xf32>
    %16 = arith.maximumf %14, %15 : vector<128x256xf32>
    %17 = arith.truncf %16 : vector<128x256xf32> to vector<128x256xbf16>
    %c0_12 = arith.constant 0 : index
    %c0_13 = arith.constant 0 : index
    %18 = vector.load %arg6[%c0_12, %c0_13] : memref<256x256xbf16, #tpu.memory_space<vmem>>, vector<256x256xbf16>
    %cst_14 = arith.constant dense<0.000000e+00> : vector<128x256xf32>
    %19 = tpu.matmul %17, %18, %cst_14 {dimension_numbers = #tpu.dot_dimension_numbers<[1], [0], [0], [1], [0, 0, 1, 1], [], []>} : vector<128x256xbf16>, vector<256x256xbf16>, vector<128x256xf32> -> vector<128x256xf32>
    %c0_15 = arith.constant 0 : index
    %c0_16 = arith.constant 0 : index
    %20 = vector.load %arg7[%c0_15, %c0_16] : memref<1x256xf32, #tpu.memory_space<vmem>>, vector<1x256xf32>
    %21 = vector.broadcast %20 : vector<1x256xf32> to vector<128x256xf32>
    %22 = arith.addf %19, %21 : vector<128x256xf32>
    %cst_17 = arith.constant 0.000000e+00 : f32
    %23 = vector.broadcast %cst_17 : f32 to vector<128x256xf32>
    %24 = arith.maximumf %22, %23 : vector<128x256xf32>
    %25 = arith.truncf %24 : vector<128x256xf32> to vector<128x256xbf16>
    %c0_18 = arith.constant 0 : index
    %c0_19 = arith.constant 0 : index
    %26 = vector.load %arg8[%c0_18, %c0_19] : memref<256x256xbf16, #tpu.memory_space<vmem>>, vector<256x256xbf16>
    %cst_20 = arith.constant dense<0.000000e+00> : vector<128x256xf32>
    %27 = tpu.matmul %25, %26, %cst_20 {dimension_numbers = #tpu.dot_dimension_numbers<[1], [0], [0], [1], [0, 0, 1, 1], [], []>} : vector<128x256xbf16>, vector<256x256xbf16>, vector<128x256xf32> -> vector<128x256xf32>
    %c0_21 = arith.constant 0 : index
    %c0_22 = arith.constant 0 : index
    %28 = vector.load %arg9[%c0_21, %c0_22] : memref<1x256xf32, #tpu.memory_space<vmem>>, vector<1x256xf32>
    %29 = vector.broadcast %28 : vector<1x256xf32> to vector<128x256xf32>
    %30 = arith.addf %27, %29 : vector<128x256xf32>
    %cst_23 = arith.constant 0.000000e+00 : f32
    %31 = vector.broadcast %cst_23 : f32 to vector<128x256xf32>
    %32 = arith.maximumf %30, %31 : vector<128x256xf32>
    %c0_24 = arith.constant 0 : index
    %c0_25 = arith.constant 0 : index
    %33 = vector.load %arg10[%c0_24, %c0_25] : memref<128x256xf32, #tpu.memory_space<vmem>>, vector<128x256xf32>
    tpu.vector_store %arg10[%c0_24, %c0_25], %32 {strides = array<i32>} : memref<128x256xf32, #tpu.memory_space<vmem>>, vector<128x256xf32>,
    return
  }
  func.func @transform_0(%arg0: i32) -> (i32, i32) {
    %c0_i32 = arith.constant 0 : i32
    %c0_i32_0 = arith.constant 0 : i32
    return %arg0, %c0_i32 : i32, i32
  }
  func.func @transform_1(%arg0: i32) -> (i32, i32) {
    %c0_i32 = arith.constant 0 : i32
    %c0_i32_0 = arith.constant 0 : i32
    %c0_i32_1 = arith.constant 0 : i32
    return %c0_i32, %c0_i32_0 : i32, i32
  }
  func.func @transform_2(%arg0: i32) -> (i32, i32) {
    %c0_i32 = arith.constant 0 : i32
    %c0_i32_0 = arith.constant 0 : i32
    %c0_i32_1 = arith.constant 0 : i32
    return %c0_i32, %c0_i32_0 : i32, i32
  }
  func.func @transform_3(%arg0: i32) -> (i32, i32) {
    %c0_i32 = arith.constant 0 : i32
    %c0_i32_0 = arith.constant 0 : i32
    %c0_i32_1 = arith.constant 0 : i32
    return %c0_i32, %c0_i32_0 : i32, i32
  }
  func.func @transform_4(%arg0: i32) -> (i32, i32) {
    %c0_i32 = arith.constant 0 : i32
    %c0_i32_0 = arith.constant 0 : i32
    %c0_i32_1 = arith.constant 0 : i32
    return %c0_i32, %c0_i32_0 : i32, i32
  }
  func.func @transform_5(%arg0: i32) -> (i32, i32) {
    %c0_i32 = arith.constant 0 : i32
    %c0_i32_0 = arith.constant 0 : i32
    %c0_i32_1 = arith.constant 0 : i32
    return %c0_i32, %c0_i32_0 : i32, i32
  }
  func.func @transform_6(%arg0: i32) -> (i32, i32) {
    %c0_i32 = arith.constant 0 : i32
    %c0_i32_0 = arith.constant 0 : i32
    %c0_i32_1 = arith.constant 0 : i32
    return %c0_i32, %c0_i32_0 : i32, i32
  }
  func.func @transform_7(%arg0: i32) -> (i32, i32) {
    %c0_i32 = arith.constant 0 : i32
    %c0_i32_0 = arith.constant 0 : i32
    %c0_i32_1 = arith.constant 0 : i32
    return %c0_i32, %c0_i32_0 : i32, i32
  }
  func.func @transform_8(%arg0: i32) -> (i32, i32) {
    %c0_i32 = arith.constant 0 : i32
    %c0_i32_0 = arith.constant 0 : i32
    %c0_i32_1 = arith.constant 0 : i32
    return %c0_i32, %c0_i32_0 : i32, i32
  }
  func.func @transform_9(%arg0: i32) -> (i32, i32) {
    %c0_i32 = arith.constant 0 : i32
    %c0_i32_0 = arith.constant 0 : i32
    return %arg0, %c0_i32 : i32, i32
  }
}

</mosaic_0001>

<llo_original>
// kernel: _forward.1
$region0: #{_forward.1}
  #allocation0 [shape = 'u32[]', space=smem, size = 0x4, offset = 0x4, fixed_abs, tag = 'smem constant byte address 0x4 - core index']
  #allocation1 [shape = 'u32[72,128]{1,0:T(1,128)}', space=vmem, size = 0x9000, scoped, tag = 'internal scratch']
  %s0 = inlined_call_operand.vmem [shape: f32[128,63], index: 0, kind: input, shape index: {}]
  %s1 = inlined_call_operand.vmem [shape: bf16[63,256], index: 1, kind: input, shape index: {}]
  %s2 = inlined_call_operand.vmem [shape: f32[1,256], index: 2, kind: input, shape index: {}]
  %s3 = inlined_call_operand.vmem [shape: bf16[256,256], index: 3, kind: input, shape index: {}]
  %s4 = inlined_call_operand.vmem [shape: f32[1,256], index: 4, kind: input, shape index: {}]
  %s5 = inlined_call_operand.vmem [shape: bf16[256,256], index: 5, kind: input, shape index: {}]
  %s6 = inlined_call_operand.vmem [shape: f32[1,256], index: 6, kind: input, shape index: {}]
  %s7 = inlined_call_operand.vmem [shape: bf16[256,256], index: 7, kind: input, shape index: {}]
  %s8 = inlined_call_operand.vmem [shape: f32[1,256], index: 8, kind: input, shape index: {}]
  %s9 = inlined_call_operand.hbm [shape: f32[128,256], index: 9, kind: output, shape index: {}]
  %s10 = sld [smem:[#allocation0]]
  $region46: #{_forward.1} parent=0
    _
  %s12 = ssub.s32 1, %s10
  %s13 = scalar_select 0, %s12, %s10
  $region1: #{_forward.1} parent=0
    #allocation2 [shape = 'u8[131072]{0}', space=vmem, size = 0x20000, scoped, tag = 'output window, operand 0, single buffered']
    #allocation3 [shape = 's32[1]{0}', space=sflag, size = 0x4, scoped, tag = 'scoped memory for _forward.1']
    %14 = vsyncpa [#allocation3], 0
    // Predicated region
    $region2: #{_forward.1} parent=1 // pred_check
      _
    $region3: #{_forward.1} parent=1 // pred_check_branch
      %16 = sbr.rel (0) target = $region5
    $region4: #{_forward.1} parent=1 // pred_region
      _
    $region5: #{_forward.1} parent=1 // pred_fallthru
      _
    // Predicated region
    $region6: #{_forward.1} parent=1 // pred_check
      _
    $region7: #{_forward.1} parent=1 // pred_check_branch
      %18 = sbr.rel (0) target = $region9
    $region8: #{_forward.1} parent=1 // pred_region
      _
    $region9: #{_forward.1} parent=1 // pred_fallthru
      _
    // Predicated region
    $region10: #{_forward.1} parent=1 // pred_check
      _
    $region11: #{_forward.1} parent=1 // pred_check_branch
      %20 = sbr.rel (0) target = $region13
    $region12: #{_forward.1} parent=1 // pred_region
      _
    $region13: #{_forward.1} parent=1 // pred_fallthru
      _
    // Predicated region
    $region14: #{_forward.1} parent=1 // pred_check
      _
    $region15: #{_forward.1} parent=1 // pred_check_branch
      %22 = sbr.rel (0) target = $region17
    $region16: #{_forward.1} parent=1 // pred_region
      _
    $region17: #{_forward.1} parent=1 // pred_fallthru
      _
    // Predicated region
    $region18: #{_forward.1} parent=1 // pred_check
      _
    $region19: #{_forward.1} parent=1 // pred_check_branch
      %24 = sbr.rel (0) target = $region21
    $region20: #{_forward.1} parent=1 // pred_region
      _
    $region21: #{_forward.1} parent=1 // pred_fallthru
      _
    // Predicated region
    $region22: #{_forward.1} parent=1 // pred_check
      _
    $region23: #{_forward.1} parent=1 // pred_check_branch
      %26 = sbr.rel (0) target = $region25
    $region24: #{_forward.1} parent=1 // pred_region
      _
    $region25: #{_forward.1} parent=1 // pred_fallthru
      _
    // Predicated region
    $region26: #{_forward.1} parent=1 // pred_check
      _
    $region27: #{_forward.1} parent=1 // pred_check_branch
      %28 = sbr.rel (0) target = $region29
    $region28: #{_forward.1} parent=1 // pred_region
      _
    $region29: #{_forward.1} parent=1 // pred_fallthru
      _
    // Predicated region
    $region30: #{_forward.1} parent=1 // pred_check
      _
    $region31: #{_forward.1} parent=1 // pred_check_branch
      %30 = sbr.rel (0) target = $region33
    $region32: #{_forward.1} parent=1 // pred_region
      _
    $region33: #{_forward.1} parent=1 // pred_fallthru
      _
    // Predicated region
    $region34: #{_forward.1} parent=1 // pred_check
      _
    $region35: #{_forward.1} parent=1 // pred_check_branch
      %32 = sbr.rel (0) target = $region37
    $region36: #{_forward.1} parent=1 // pred_region
      _
    $region37: #{_forward.1} parent=1 // pred_fallthru
      _
    %v34 = vld [vmem:[%s0] sm:$0xff]
    %v35 = vld [vmem:[%s0 + $0x8] sm:$0xff]
    %v36 = vld [vmem:[%s0 + $0x10] sm:$0xff]
    %v37 = vld [vmem:[%s0 + $0x18] sm:$0xff]
    %v38 = vld [vmem:[%s0 + $0x20] sm:$0xff]
    %v39 = vld [vmem:[%s0 + $0x28] sm:$0xff]
    %v40 = vld [vmem:[%s0 + $0x30] sm:$0xff]
    %v41 = vld [vmem:[%s0 + $0x38] sm:$0xff]
    %v42 = vld [vmem:[%s0 + $0x40] sm:$0xff]
    %v43 = vld [vmem:[%s0 + $0x48] sm:$0xff]
    %v44 = vld [vmem:[%s0 + $0x50] sm:$0xff]
    %v45 = vld [vmem:[%s0 + $0x58] sm:$0xff]
    %v46 = vld [vmem:[%s0 + $0x60] sm:$0xff]
    %v47 = vld [vmem:[%s0 + $0x68] sm:$0xff]
    %v48 = vld [vmem:[%s0 + $0x70] sm:$0xff]
    %v49 = vld [vmem:[%s0 + $0x78] sm:$0xff]
    %v50 = vpack.c.bf16 %v35, %v34
    %v51 = vpack.c.bf16 %v37, %v36
    %v52 = vpack.c.bf16 %v39, %v38
    %v53 = vpack.c.bf16 %v41, %v40
    %v54 = vpack.c.bf16 %v43, %v42
    %v55 = vpack.c.bf16 %v45, %v44
    %v56 = vpack.c.bf16 %v47, %v46
    %v57 = vpack.c.bf16 %v49, %v48
    %v58 = vld [vmem:[%s1] sm:$0xff]
    %v59 = vld [vmem:[%s1 + $0x8] sm:$0xff]
    %v60 = vld [vmem:[%s1 + $0x10] sm:$0xff]
    %v61 = vld [vmem:[%s1 + $0x18] sm:$0xff]
    %v62 = vld [vmem:[%s1 + $0x20] sm:$0xff]
    %v63 = vld [vmem:[%s1 + $0x28] sm:$0xff]
    %v64 = vld [vmem:[%s1 + $0x30] sm:$0xff]
    %v65 = vld [vmem:[%s1 + $0x38] sm:$0xff]
    %v66 = vld [vmem:[%s2] sm:$0x3]
    %v68 = vperm.slane %v66, 0
    %v69 = vperm.slane %v66, 1
    %v80 = vunpack.c.l.b16 %v58
    %v81 = vunpack.c.h.b16 %v58
    %v82 = vunpack.c.l.b16 %v59
    %v83 = vunpack.c.h.b16 %v59
    %v84 = vunpack.c.l.b16 %v60
    %v85 = vunpack.c.h.b16 %v60
    %v86 = vunpack.c.l.b16 %v61
    %v87 = vunpack.c.h.b16 %v61
    %v88 = vunpack.c.l.b16 %v62
    %v89 = vunpack.c.h.b16 %v62
    %v90 = vunpack.c.l.b16 %v63
    %v91 = vunpack.c.h.b16 %v63
    %v92 = vunpack.c.l.b16 %v64
    %v93 = vunpack.c.h.b16 %v64
    %v94 = vunpack.c.l.b16 %v65
    %v95 = vunpack.c.h.b16 %v65
    %v96 = vpack.c.b16 %v82, %v80
    %v97 = vpack.c.b16 %v83, %v81
    %v98 = vpack.c.b16 %v86, %v84
    %v99 = vpack.c.b16 %v87, %v85
    %v100 = vpack.c.b16 %v90, %v88
    %v101 = vpack.c.b16 %v91, %v89
    %v102 = vpack.c.b16 %v94, %v92
    %v103 = vpack.c.b16 %v95, %v93
    %vm110 = vcmask 515072
    %v112 = vsel %vm110, %v50, 0
    %v115 = vsel %vm110, %v51, 0
    %v118 = vsel %vm110, %v52, 0
    %v121 = vsel %vm110, %v53, 0
    %v124 = vsel %vm110, %v54, 0
    %v127 = vsel %vm110, %v55, 0
    %v130 = vsel %vm110, %v56, 0
    %v133 = vsel %vm110, %v57, 0
    %vm135 = vcmask 1046528
    %vm136 = vcmask 1047552
    %v137 = vsel %vm135, 4294967295, 65535
    %v138 = vsel %vm136, %v137, 0
    %v140 = vand.u32 %v102, %v138
    %v143 = vand.u32 %v103, %v138
    %145 = vmatpush.bf16.msra.mxu0 0
    %146 = vmatpush.bf16.msra.mxu0 0
    %147 = vmatpush.bf16.msra.mxu0 0
    %148 = vmatpush.bf16.msra.mxu0 0
    %149 = vmatpush.bf16.msra.mxu0 %v140
    %150 = vmatpush.bf16.msra.mxu0 %v100
    %151 = vmatpush.bf16.msra.mxu0 %v98
    %152 = vmatpush.bf16.msra.mxu0 %v96
    %153 = vmatmul.bf16.gmra.mxu0 %v112
    %v154 = vpop.f32.mrf.mxu0
    %v155 = vadd.f32 %v68, %v154
    %v156 = vpop.f32.mrf.mxu0
    %v157 = vadd.f32 %v68, %v156
    %158 = vmatmul.bf16.gmra.mxu0 %v115
    %v159 = vpop.f32.mrf.mxu0
    %v160 = vadd.f32 %v68, %v159
    %v161 = vpop.f32.mrf.mxu0
    %v162 = vadd.f32 %v68, %v161
    %163 = vmatmul.bf16.gmra.mxu0 %v118
    %v164 = vpop.f32.mrf.mxu0
    %v165 = vadd.f32 %v68, %v164
    %v166 = vpop.f32.mrf.mxu0
    %v167 = vadd.f32 %v68, %v166
    %168 = vmatmul.bf16.gmra.mxu0 %v121
    %v169 = vpop.f32.mrf.mxu0
    %v170 = vadd.f32 %v68, %v169
    %v171 = vpop.f32.mrf.mxu0
    %v172 = vadd.f32 %v68, %v171
    %173 = vmatmul.bf16.gmra.mxu0 %v124
    %v174 = vpop.f32.mrf.mxu0
    %v175 = vadd.f32 %v68, %v174
    %v176 = vpop.f32.mrf.mxu0
    %v177 = vadd.f32 %v68, %v176
    %178 = vmatmul.bf16.gmra.mxu0 %v127
    %v179 = vpop.f32.mrf.mxu0
    %v180 = vadd.f32 %v68, %v179
    %v181 = vpop.f32.mrf.mxu0
    %v182 = vadd.f32 %v68, %v181
    %183 = vmatmul.bf16.gmra.mxu0 %v130
    %v184 = vpop.f32.mrf.mxu0
    %v185 = vadd.f32 %v68, %v184
    %v186 = vpop.f32.mrf.mxu0
    %v187 = vadd.f32 %v68, %v186
    %188 = vmatmul.bf16.gmra.mxu0 %v133
    %v189 = vpop.f32.mrf.mxu0
    %v190 = vadd.f32 %v68, %v189
    %v191 = vpop.f32.mrf.mxu0
    %v192 = vadd.f32 %v68, %v191
    %193 = vdwg.mxu0
    %194 = vmatpush.bf16.msra.mxu0 0
    %195 = vmatpush.bf16.msra.mxu0 0
    %196 = vmatpush.bf16.msra.mxu0 0
    %197 = vmatpush.bf16.msra.mxu0 0
    %198 = vmatpush.bf16.msra.mxu0 %v143
    %199 = vmatpush.bf16.msra.mxu0 %v101
    %200 = vmatpush.bf16.msra.mxu0 %v99
    %201 = vmatpush.bf16.msra.mxu0 %v97
    %202 = vmatmul.bf16.gmra.mxu0 %v112
    %v203 = vpop.f32.mrf.mxu0
    %v204 = vadd.f32 %v69, %v203
    %v205 = vpop.f32.mrf.mxu0
    %v206 = vadd.f32 %v69, %v205
    %207 = vmatmul.bf16.gmra.mxu0 %v115
    %v208 = vpop.f32.mrf.mxu0
    %v209 = vadd.f32 %v69, %v208
    %v210 = vpop.f32.mrf.mxu0
    %v211 = vadd.f32 %v69, %v210
    %212 = vmatmul.bf16.gmra.mxu0 %v118
    %v213 = vpop.f32.mrf.mxu0
    %v214 = vadd.f32 %v69, %v213
    %v215 = vpop.f32.mrf.mxu0
    %v216 = vadd.f32 %v69, %v215
    %217 = vmatmul.bf16.gmra.mxu0 %v121
    %v218 = vpop.f32.mrf.mxu0
    %v219 = vadd.f32 %v69, %v218
    %v220 = vpop.f32.mrf.mxu0
    %v221 = vadd.f32 %v69, %v220
    %222 = vmatmul.bf16.gmra.mxu0 %v124
    %v223 = vpop.f32.mrf.mxu0
    %v224 = vadd.f32 %v69, %v223
    %v225 = vpop.f32.mrf.mxu0
    %v226 = vadd.f32 %v69, %v225
    %227 = vmatmul.bf16.gmra.mxu0 %v127
    %v228 = vpop.f32.mrf.mxu0
    %v229 = vadd.f32 %v69, %v228
    %v230 = vpop.f32.mrf.mxu0
    %v231 = vadd.f32 %v69, %v230
    %232 = vmatmul.bf16.gmra.mxu0 %v130
    %v233 = vpop.f32.mrf.mxu0
    %v234 = vadd.f32 %v69, %v233
    %v235 = vpop.f32.mrf.mxu0
    %v236 = vadd.f32 %v69, %v235
    %237 = vmatmul.bf16.gmra.mxu0 %v133
    %v238 = vpop.f32.mrf.mxu0
    %v239 = vadd.f32 %v69, %v238
    %v240 = vpop.f32.mrf.mxu0
    %v241 = vadd.f32 %v69, %v240
    %242 = vdwg.mxu0
    %v243 = vmax.f32 %v155, 0.0
    %v244 = vmax.f32 %v204, 0.0
    %v245 = vmax.f32 %v157, 0.0
    %v246 = vmax.f32 %v206, 0.0
    %v247 = vmax.f32 %v160, 0.0
    %v248 = vmax.f32 %v209, 0.0
    %v249 = vmax.f32 %v162, 0.0
    %v250 = vmax.f32 %v211, 0.0
    %v251 = vmax.f32 %v165, 0.0
    %v252 = vmax.f32 %v214, 0.0
    %v253 = vmax.f32 %v167, 0.0
    %v254 = vmax.f32 %v216, 0.0
    %v255 = vmax.f32 %v170, 0.0
    %v256 = vmax.f32 %v219, 0.0
    %v257 = vmax.f32 %v172, 0.0
    %v258 = vmax.f32 %v221, 0.0
    %v259 = vmax.f32 %v175, 0.0
    %v260 = vmax.f32 %v224, 0.0
    %v261 = vmax.f32 %v177, 0.0
    %v262 = vmax.f32 %v226, 0.0
    %v263 = vmax.f32 %v180, 0.0
    %v264 = vmax.f32 %v229, 0.0
    %v265 = vmax.f32 %v182, 0.0
    %v266 = vmax.f32 %v231, 0.0
    %v267 = vmax.f32 %v185, 0.0
    %v268 = vmax.f32 %v234, 0.0
    %v269 = vmax.f32 %v187, 0.0
    %v270 = vmax.f32 %v236, 0.0
    %v271 = vmax.f32 %v190, 0.0
    %v272 = vmax.f32 %v239, 0.0
    %v273 = vmax.f32 %v192, 0.0
    %v274 = vmax.f32 %v241, 0.0
    %v275 = vpack.c.bf16 %v245, %v243
    %v276 = vpack.c.bf16 %v246, %v244
    %v277 = vpack.c.bf16 %v249, %v247
    %v278 = vpack.c.bf16 %v250, %v248
    %v279 = vpack.c.bf16 %v253, %v251
    %v280 = vpack.c.bf16 %v254, %v252
    %v281 = vpack.c.bf16 %v257, %v255
    %v282 = vpack.c.bf16 %v258, %v256
    %v283 = vpack.c.bf16 %v261, %v259
    %v284 = vpack.c.bf16 %v262, %v260
    %v285 = vpack.c.bf16 %v265, %v263
    %v286 = vpack.c.bf16 %v266, %v264
    %v287 = vpack.c.bf16 %v269, %v267
    %v288 = vpack.c.bf16 %v270, %v268
    %v289 = vpack.c.bf16 %v273, %v271
    %v290 = vpack.c.bf16 %v274, %v272
    %v291 = vld [vmem:[%s3] sm:$0xff]
    %v292 = vld [vmem:[%s3 + $0x8] sm:$0xff]
    %v293 = vld [vmem:[%s3 + $0x10] sm:$0xff]
    %v294 = vld [vmem:[%s3 + $0x18] sm:$0xff]
    %v295 = vld [vmem:[%s3 + $0x20] sm:$0xff]
    %v296 = vld [vmem:[%s3 + $0x28] sm:$0xff]
    %v297 = vld [vmem:[%s3 + $0x30] sm:$0xff]
    %v298 = vld [vmem:[%s3 + $0x38] sm:$0xff]
    %v299 = vld [vmem:[%s3 + $0x40] sm:$0xff]
    %v300 = vld [vmem:[%s3 + $0x48] sm:$0xff]
    %v301 = vld [vmem:[%s3 + $0x50] sm:$0xff]
    %v302 = vld [vmem:[%s3 + $0x58] sm:$0xff]
    %v303 = vld [vmem:[%s3 + $0x60] sm:$0xff]
    %v304 = vld [vmem:[%s3 + $0x68] sm:$0xff]
    %v305 = vld [vmem:[%s3 + $0x70] sm:$0xff]
    %v306 = vld [vmem:[%s3 + $0x78] sm:$0xff]
    %v307 = vld [vmem:[%s3 + $0x80] sm:$0xff]
    %v308 = vld [vmem:[%s3 + $0x88] sm:$0xff]
    %v309 = vld [vmem:[%s3 + $0x90] sm:$0xff]
    %v310 = vld [vmem:[%s3 + $0x98] sm:$0xff]
    %v311 = vld [vmem:[%s3 + $0xa0] sm:$0xff]
    %v312 = vld [vmem:[%s3 + $0xa8] sm:$0xff]
    %v313 = vld [vmem:[%s3 + $0xb0] sm:$0xff]
    %v314 = vld [vmem:[%s3 + $0xb8] sm:$0xff]
    %v315 = vld [vmem:[%s3 + $0xc0] sm:$0xff]
    %v316 = vld [vmem:[%s3 + $0xc8] sm:$0xff]
    %v317 = vld [vmem:[%s3 + $0xd0] sm:$0xff]
    %v318 = vld [vmem:[%s3 + $0xd8] sm:$0xff]
    %v319 = vld [vmem:[%s3 + $0xe0] sm:$0xff]
    %v320 = vld [vmem:[%s3 + $0xe8] sm:$0xff]
    %v321 = vld [vmem:[%s3 + $0xf0] sm:$0xff]
    %v322 = vld [vmem:[%s3 + $0xf8] sm:$0xff]
    %v323 = vld [vmem:[%s4] sm:$0x3]
    %v325 = vperm.slane %v323, 0
    %v326 = vperm.slane %v323, 1
    %v361 = vunpack.c.l.b16 %v291
    %v362 = vunpack.c.h.b16 %v291
    %v363 = vunpack.c.l.b16 %v292
    %v364 = vunpack.c.h.b16 %v292
    %v365 = vunpack.c.l.b16 %v293
    %v366 = vunpack.c.h.b16 %v293
    %v367 = vunpack.c.l.b16 %v294
    %v368 = vunpack.c.h.b16 %v294
    %v369 = vunpack.c.l.b16 %v295
    %v370 = vunpack.c.h.b16 %v295
    %v371 = vunpack.c.l.b16 %v296
    %v372 = vunpack.c.h.b16 %v296
    %v373 = vunpack.c.l.b16 %v297
    %v374 = vunpack.c.h.b16 %v297
    %v375 = vunpack.c.l.b16 %v298
    %v376 = vunpack.c.h.b16 %v298
    %v377 = vunpack.c.l.b16 %v299
    %v378 = vunpack.c.h.b16 %v299
    %v379 = vunpack.c.l.b16 %v300
    %v380 = vunpack.c.h.b16 %v300
    %v381 = vunpack.c.l.b16 %v301
    %v382 = vunpack.c.h.b16 %v301
    %v383 = vunpack.c.l.b16 %v302
    %v384 = vunpack.c.h.b16 %v302
    %v385 = vunpack.c.l.b16 %v303
    %v386 = vunpack.c.h.b16 %v303
    %v387 = vunpack.c.l.b16 %v304
    %v388 = vunpack.c.h.b16 %v304
    %v389 = vunpack.c.l.b16 %v305
    %v390 = vunpack.c.h.b16 %v305
    %v391 = vunpack.c.l.b16 %v306
    %v392 = vunpack.c.h.b16 %v306
    %v393 = vunpack.c.l.b16 %v307
    %v394 = vunpack.c.h.b16 %v307
    %v395 = vunpack.c.l.b16 %v308
    %v396 = vunpack.c.h.b16 %v308
    %v397 = vunpack.c.l.b16 %v309
    %v398 = vunpack.c.h.b16 %v309
    %v399 = vunpack.c.l.b16 %v310
    %v400 = vunpack.c.h.b16 %v310
    %v401 = vunpack.c.l.b16 %v311
    %v402 = vunpack.c.h.b16 %v311
    %v403 = vunpack.c.l.b16 %v312
    %v404 = vunpack.c.h.b16 %v312
    %v405 = vunpack.c.l.b16 %v313
    %v406 = vunpack.c.h.b16 %v313
    %v407 = vunpack.c.l.b16 %v314
    %v408 = vunpack.c.h.b16 %v314
    %v409 = vunpack.c.l.b16 %v315
    %v410 = vunpack.c.h.b16 %v315
    %v411 = vunpack.c.l.b16 %v316
    %v412 = vunpack.c.h.b16 %v316
    %v413 = vunpack.c.l.b16 %v317
    %v414 = vunpack.c.h.b16 %v317
    %v415 = vunpack.c.l.b16 %v318
    %v416 = vunpack.c.h.b16 %v318
    %v417 = vunpack.c.l.b16 %v319
    %v418 = vunpack.c.h.b16 %v319
    %v419 = vunpack.c.l.b16 %v320
    %v420 = vunpack.c.h.b16 %v320
    %v421 = vunpack.c.l.b16 %v321
    %v422 = vunpack.c.h.b16 %v321
    %v423 = vunpack.c.l.b16 %v322
    %v424 = vunpack.c.h.b16 %v322
    %v425 = vpack.c.b16 %v363, %v361
    %v426 = vpack.c.b16 %v364, %v362
    %v427 = vpack.c.b16 %v367, %v365
    %v428 = vpack.c.b16 %v368, %v366
    %v429 = vpack.c.b16 %v371, %v369
    %v430 = vpack.c.b16 %v372, %v370
    %v431 = vpack.c.b16 %v375, %v373
    %v432 = vpack.c.b16 %v376, %v374
    %v433 = vpack.c.b16 %v379, %v377
    %v434 = vpack.c.b16 %v380, %v378
    %v435 = vpack.c.b16 %v383, %v381
    %v436 = vpack.c.b16 %v384, %v382
    %v437 = vpack.c.b16 %v387, %v385
    %v438 = vpack.c.b16 %v388, %v386
    %v439 = vpack.c.b16 %v391, %v389
    %v440 = vpack.c.b16 %v392, %v390
    %v441 = vpack.c.b16 %v395, %v393
    %v442 = vpack.c.b16 %v396, %v394
    %v443 = vpack.c.b16 %v399, %v397
    %v444 = vpack.c.b16 %v400, %v398
    %v445 = vpack.c.b16 %v403, %v401
    %v446 = vpack.c.b16 %v404, %v402
    %v447 = vpack.c.b16 %v407, %v405
    %v448 = vpack.c.b16 %v408, %v406
    %v449 = vpack.c.b16 %v411, %v409
    %v450 = vpack.c.b16 %v412, %v410
    %v451 = vpack.c.b16 %v415, %v413
    %v452 = vpack.c.b16 %v416, %v414
    %v453 = vpack.c.b16 %v419, %v417
    %v454 = vpack.c.b16 %v420, %v418
    %v455 = vpack.c.b16 %v423, %v421
    %v456 = vpack.c.b16 %v424, %v422
    %489 = vmatpush.bf16.msra.mxu0 %v439
    %490 = vmatpush.bf16.msra.mxu0 %v437
    %491 = vmatpush.bf16.msra.mxu0 %v435
    %492 = vmatpush.bf16.msra.mxu0 %v433
    %493 = vmatpush.bf16.msra.mxu0 %v431
    %494 = vmatpush.bf16.msra.mxu0 %v429
    %495 = vmatpush.bf16.msra.mxu0 %v427
    %496 = vmatpush.bf16.msra.mxu0 %v425
    %497 = vmatmul.bf16.gmra.mxu0 %v275
    %v498 = vpop.f32.mrf.mxu0
    %v499 = vadd.f32 %v325, %v498
    %v500 = vpop.f32.mrf.mxu0
    %v501 = vadd.f32 %v325, %v500
    %502 = vmatmul.bf16.gmra.mxu0 %v277
    %v503 = vpop.f32.mrf.mxu0
    %v504 = vadd.f32 %v325, %v503
    %v505 = vpop.f32.mrf.mxu0
    %v506 = vadd.f32 %v325, %v505
    %507 = vmatmul.bf16.gmra.mxu0 %v279
    %v508 = vpop.f32.mrf.mxu0
    %v509 = vadd.f32 %v325, %v508
    %v510 = vpop.f32.mrf.mxu0
    %v511 = vadd.f32 %v325, %v510
    %512 = vmatmul.bf16.gmra.mxu0 %v281
    %v513 = vpop.f32.mrf.mxu0
    %v514 = vadd.f32 %v325, %v513
    %v515 = vpop.f32.mrf.mxu0
    %v516 = vadd.f32 %v325, %v515
    %517 = vmatmul.bf16.gmra.mxu0 %v283
    %v518 = vpop.f32.mrf.mxu0
    %v519 = vadd.f32 %v325, %v518
    %v520 = vpop.f32.mrf.mxu0
    %v521 = vadd.f32 %v325, %v520
    %522 = vmatmul.bf16.gmra.mxu0 %v285
    %v523 = vpop.f32.mrf.mxu0
    %v524 = vadd.f32 %v325, %v523
    %v525 = vpop.f32.mrf.mxu0
    %v526 = vadd.f32 %v325, %v525
    %527 = vmatmul.bf16.gmra.mxu0 %v287
    %v528 = vpop.f32.mrf.mxu0
    %v529 = vadd.f32 %v325, %v528
    %v530 = vpop.f32.mrf.mxu0
    %v531 = vadd.f32 %v325, %v530
    %532 = vmatmul.bf16.gmra.mxu0 %v289
    %v533 = vpop.f32.mrf.mxu0
    %v534 = vadd.f32 %v325, %v533
    %v535 = vpop.f32.mrf.mxu0
    %v536 = vadd.f32 %v325, %v535
    %537 = vdwg.mxu0
    %538 = vmatpush.bf16.msra.mxu0 %v455
    %539 = vmatpush.bf16.msra.mxu0 %v453
    %540 = vmatpush.bf16.msra.mxu0 %v451
    %541 = vmatpush.bf16.msra.mxu0 %v449
    %542 = vmatpush.bf16.msra.mxu0 %v447
    %543 = vmatpush.bf16.msra.mxu0 %v445
    %544 = vmatpush.bf16.msra.mxu0 %v443
    %545 = vmatpush.bf16.msra.mxu0 %v441
    %546 = vmatmul.bf16.gmra.mxu0 %v276
    %v547 = vpop.f32.mrf.mxu0
    %v548 = vadd.f32 %v499, %v547
    %v549 = vpop.f32.mrf.mxu0
    %v550 = vadd.f32 %v501, %v549
    %551 = vmatmul.bf16.gmra.mxu0 %v278
    %v552 = vpop.f32.mrf.mxu0
    %v553 = vadd.f32 %v504, %v552
    %v554 = vpop.f32.mrf.mxu0
    %v555 = vadd.f32 %v506, %v554
    %556 = vmatmul.bf16.gmra.mxu0 %v280
    %v557 = vpop.f32.mrf.mxu0
    %v558 = vadd.f32 %v509, %v557
    %v559 = vpop.f32.mrf.mxu0
    %v560 = vadd.f32 %v511, %v559
    %561 = vmatmul.bf16.gmra.mxu0 %v282
    %v562 = vpop.f32.mrf.mxu0
    %v563 = vadd.f32 %v514, %v562
    %v564 = vpop.f32.mrf.mxu0
    %v565 = vadd.f32 %v516, %v564
    %566 = vmatmul.bf16.gmra.mxu0 %v284
    %v567 = vpop.f32.mrf.mxu0
    %v568 = vadd.f32 %v519, %v567
    %v569 = vpop.f32.mrf.mxu0
    %v570 = vadd.f32 %v521, %v569
    %571 = vmatmul.bf16.gmra.mxu0 %v286
    %v572 = vpop.f32.mrf.mxu0
    %v573 = vadd.f32 %v524, %v572
    %v574 = vpop.f32.mrf.mxu0
    %v575 = vadd.f32 %v526, %v574
    %576 = vmatmul.bf16.gmra.mxu0 %v288
    %v577 = vpop.f32.mrf.mxu0
    %v578 = vadd.f32 %v529, %v577
    %v579 = vpop.f32.mrf.mxu0
    %v580 = vadd.f32 %v531, %v579
    %581 = vmatmul.bf16.gmra.mxu0 %v290
    %v582 = vpop.f32.mrf.mxu0
    %v583 = vadd.f32 %v534, %v582
    %v584 = vpop.f32.mrf.mxu0
    %v585 = vadd.f32 %v536, %v584
    %586 = vdwg.mxu0
    %587 = vmatpush.bf16.msra.mxu0 %v440
    %588 = vmatpush.bf16.msra.mxu0 %v438
    %589 = vmatpush.bf16.msra.mxu0 %v436
    %590 = vmatpush.bf16.msra.mxu0 %v434
    %591 = vmatpush.bf16.msra.mxu0 %v432
    %592 = vmatpush.bf16.msra.mxu0 %v430
    %593 = vmatpush.bf16.msra.mxu0 %v428
    %594 = vmatpush.bf16.msra.mxu0 %v426
    %595 = vmatmul.bf16.gmra.mxu0 %v275
    %v596 = vpop.f32.mrf.mxu0
    %v597 = vadd.f32 %v326, %v596
    %v598 = vpop.f32.mrf.mxu0
    %v599 = vadd.f32 %v326, %v598
    %600 = vmatmul.bf16.gmra.mxu0 %v277
    %v601 = vpop.f32.mrf.mxu0
    %v602 = vadd.f32 %v326, %v601
    %v603 = vpop.f32.mrf.mxu0
    %v604 = vadd.f32 %v326, %v603
    %605 = vmatmul.bf16.gmra.mxu0 %v279
    %v606 = vpop.f32.mrf.mxu0
    %v607 = vadd.f32 %v326, %v606
    %v608 = vpop.f32.mrf.mxu0
    %v609 = vadd.f32 %v326, %v608
    %610 = vmatmul.bf16.gmra.mxu0 %v281
    %v611 = vpop.f32.mrf.mxu0
    %v612 = vadd.f32 %v326, %v611
    %v613 = vpop.f32.mrf.mxu0
    %v614 = vadd.f32 %v326, %v613
    %615 = vmatmul.bf16.gmra.mxu0 %v283
    %v616 = vpop.f32.mrf.mxu0
    %v617 = vadd.f32 %v326, %v616
    %v618 = vpop.f32.mrf.mxu0
    %v619 = vadd.f32 %v326, %v618
    %620 = vmatmul.bf16.gmra.mxu0 %v285
    %v621 = vpop.f32.mrf.mxu0
    %v622 = vadd.f32 %v326, %v621
    %v623 = vpop.f32.mrf.mxu0
    %v624 = vadd.f32 %v326, %v623
    %625 = vmatmul.bf16.gmra.mxu0 %v287
    %v626 = vpop.f32.mrf.mxu0
    %v627 = vadd.f32 %v326, %v626
    %v628 = vpop.f32.mrf.mxu0
    %v629 = vadd.f32 %v326, %v628
    %630 = vmatmul.bf16.gmra.mxu0 %v289
    %v631 = vpop.f32.mrf.mxu0
    %v632 = vadd.f32 %v326, %v631
    %v633 = vpop.f32.mrf.mxu0
    %v634 = vadd.f32 %v326, %v633
    %635 = vdwg.mxu0
    %636 = vmatpush.bf16.msra.mxu0 %v456
    %637 = vmatpush.bf16.msra.mxu0 %v454
    %638 = vmatpush.bf16.msra.mxu0 %v452
    %639 = vmatpush.bf16.msra.mxu0 %v450
    %640 = vmatpush.bf16.msra.mxu0 %v448
    %641 = vmatpush.bf16.msra.mxu0 %v446
    %642 = vmatpush.bf16.msra.mxu0 %v444
    %643 = vmatpush.bf16.msra.mxu0 %v442
    %644 = vmatmul.bf16.gmra.mxu0 %v276
    %v645 = vpop.f32.mrf.mxu0
    %v646 = vadd.f32 %v597, %v645
    %v647 = vpop.f32.mrf.mxu0
    %v648 = vadd.f32 %v599, %v647
    %649 = vmatmul.bf16.gmra.mxu0 %v278
    %v650 = vpop.f32.mrf.mxu0
    %v651 = vadd.f32 %v602, %v650
    %v652 = vpop.f32.mrf.mxu0
    %v653 = vadd.f32 %v604, %v652
    %654 = vmatmul.bf16.gmra.mxu0 %v280
    %v655 = vpop.f32.mrf.mxu0
    %v656 = vadd.f32 %v607, %v655
    %v657 = vpop.f32.mrf.mxu0
    %v658 = vadd.f32 %v609, %v657
    %659 = vmatmul.bf16.gmra.mxu0 %v282
    %v660 = vpop.f32.mrf.mxu0
    %v661 = vadd.f32 %v612, %v660
    %v662 = vpop.f32.mrf.mxu0
    %v663 = vadd.f32 %v614, %v662
    %664 = vmatmul.bf16.gmra.mxu0 %v284
    %v665 = vpop.f32.mrf.mxu0
    %v666 = vadd.f32 %v617, %v665
    %v667 = vpop.f32.mrf.mxu0
    %v668 = vadd.f32 %v619, %v667
    %669 = vmatmul.bf16.gmra.mxu0 %v286
    %v670 = vpop.f32.mrf.mxu0
    %v671 = vadd.f32 %v622, %v670
    %v672 = vpop.f32.mrf.mxu0
    %v673 = vadd.f32 %v624, %v672
    %674 = vmatmul.bf16.gmra.mxu0 %v288
    %v675 = vpop.f32.mrf.mxu0
    %v676 = vadd.f32 %v627, %v675
    %v677 = vpop.f32.mrf.mxu0
    %v678 = vadd.f32 %v629, %v677
    %679 = vmatmul.bf16.gmra.mxu0 %v290
    %v680 = vpop.f32.mrf.mxu0
    %v681 = vadd.f32 %v632, %v680
    %v682 = vpop.f32.mrf.mxu0
    %v683 = vadd.f32 %v634, %v682
    %684 = vdwg.mxu0
    %v685 = vmax.f32 %v548, 0.0
    %v686 = vmax.f32 %v646, 0.0
    %v687 = vmax.f32 %v550, 0.0
    %v688 = vmax.f32 %v648, 0.0
    %v689 = vmax.f32 %v553, 0.0
    %v690 = vmax.f32 %v651, 0.0
    %v691 = vmax.f32 %v555, 0.0
    %v692 = vmax.f32 %v653, 0.0
    %v693 = vmax.f32 %v558, 0.0
    %v694 = vmax.f32 %v656, 0.0
    %v695 = vmax.f32 %v560, 0.0
    %v696 = vmax.f32 %v658, 0.0
    %v697 = vmax.f32 %v563, 0.0
    %v698 = vmax.f32 %v661, 0.0
    %v699 = vmax.f32 %v565, 0.0
    %v700 = vmax.f32 %v663, 0.0
    %v701 = vmax.f32 %v568, 0.0
    %v702 = vmax.f32 %v666, 0.0
    %v703 = vmax.f32 %v570, 0.0
    %v704 = vmax.f32 %v668, 0.0
    %v705 = vmax.f32 %v573, 0.0
    %v706 = vmax.f32 %v671, 0.0
    %v707 = vmax.f32 %v575, 0.0
    %v708 = vmax.f32 %v673, 0.0
    %v709 = vmax.f32 %v578, 0.0
    %v710 = vmax.f32 %v676, 0.0
    %v711 = vmax.f32 %v580, 0.0
    %v712 = vmax.f32 %v678, 0.0
    %v713 = vmax.f32 %v583, 0.0
    %v714 = vmax.f32 %v681, 0.0
    %v715 = vmax.f32 %v585, 0.0
    %v716 = vmax.f32 %v683, 0.0
    %v717 = vpack.c.bf16 %v687, %v685
    %v718 = vpack.c.bf16 %v688, %v686
    %v719 = vpack.c.bf16 %v691, %v689
    %v720 = vpack.c.bf16 %v692, %v690
    %v721 = vpack.c.bf16 %v695, %v693
    %v722 = vpack.c.bf16 %v696, %v694
    %v723 = vpack.c.bf16 %v699, %v697
    %v724 = vpack.c.bf16 %v700, %v698
    %v725 = vpack.c.bf16 %v703, %v701
    %v726 = vpack.c.bf16 %v704, %v702
    %v727 = vpack.c.bf16 %v707, %v705
    %v728 = vpack.c.bf16 %v708, %v706
    %v729 = vpack.c.bf16 %v711, %v709
    %v730 = vpack.c.bf16 %v712, %v710
    %v731 = vpack.c.bf16 %v715, %v713
    %v732 = vpack.c.bf16 %v716, %v714
    %v733 = vld [vmem:[%s5] sm:$0xff]
    %v734 = vld [vmem:[%s5 + $0x8] sm:$0xff]
    %v735 = vld [vmem:[%s5 + $0x10] sm:$0xff]
    %v736 = vld [vmem:[%s5 + $0x18] sm:$0xff]
    %v737 = vld [vmem:[%s5 + $0x20] sm:$0xff]
    %v738 = vld [vmem:[%s5 + $0x28] sm:$0xff]
    %v739 = vld [vmem:[%s5 + $0x30] sm:$0xff]
    %v740 = vld [vmem:[%s5 + $0x38] sm:$0xff]
    %v741 = vld [vmem:[%s5 + $0x40] sm:$0xff]
    %v742 = vld [vmem:[%s5 + $0x48] sm:$0xff]
    %v743 = vld [vmem:[%s5 + $0x50] sm:$0xff]
    %v744 = vld [vmem:[%s5 + $0x58] sm:$0xff]
    %v745 = vld [vmem:[%s5 + $0x60] sm:$0xff]
    %v746 = vld [vmem:[%s5 + $0x68] sm:$0xff]
    %v747 = vld [vmem:[%s5 + $0x70] sm:$0xff]
    %v748 = vld [vmem:[%s5 + $0x78] sm:$0xff]
    %v749 = vld [vmem:[%s5 + $0x80] sm:$0xff]
    %v750 = vld [vmem:[%s5 + $0x88] sm:$0xff]
    %v751 = vld [vmem:[%s5 + $0x90] sm:$0xff]
    %v752 = vld [vmem:[%s5 + $0x98] sm:$0xff]
    %v753 = vld [vmem:[%s5 + $0xa0] sm:$0xff]
    %v754 = vld [vmem:[%s5 + $0xa8] sm:$0xff]
    %v755 = vld [vmem:[%s5 + $0xb0] sm:$0xff]
    %v756 = vld [vmem:[%s5 + $0xb8] sm:$0xff]
    %v757 = vld [vmem:[%s5 + $0xc0] sm:$0xff]
    %v758 = vld [vmem:[%s5 + $0xc8] sm:$0xff]
    %v759 = vld [vmem:[%s5 + $0xd0] sm:$0xff]
    %v760 = vld [vmem:[%s5 + $0xd8] sm:$0xff]
    %v761 = vld [vmem:[%s5 + $0xe0] sm:$0xff]
    %v762 = vld [vmem:[%s5 + $0xe8] sm:$0xff]
    %v763 = vld [vmem:[%s5 + $0xf0] sm:$0xff]
    %v764 = vld [vmem:[%s5 + $0xf8] sm:$0xff]
    %v765 = vld [vmem:[%s6] sm:$0x3]
    %v767 = vperm.slane %v765, 0
    %v768 = vperm.slane %v765, 1
    %v803 = vunpack.c.l.b16 %v733
    %v804 = vunpack.c.h.b16 %v733
    %v805 = vunpack.c.l.b16 %v734
    %v806 = vunpack.c.h.b16 %v734
    %v807 = vunpack.c.l.b16 %v735
    %v808 = vunpack.c.h.b16 %v735
    %v809 = vunpack.c.l.b16 %v736
    %v810 = vunpack.c.h.b16 %v736
    %v811 = vunpack.c.l.b16 %v737
    %v812 = vunpack.c.h.b16 %v737
    %v813 = vunpack.c.l.b16 %v738
    %v814 = vunpack.c.h.b16 %v738
    %v815 = vunpack.c.l.b16 %v739
    %v816 = vunpack.c.h.b16 %v739
    %v817 = vunpack.c.l.b16 %v740
    %v818 = vunpack.c.h.b16 %v740
    %v819 = vunpack.c.l.b16 %v741
    %v820 = vunpack.c.h.b16 %v741
    %v821 = vunpack.c.l.b16 %v742
    %v822 = vunpack.c.h.b16 %v742
    %v823 = vunpack.c.l.b16 %v743
    %v824 = vunpack.c.h.b16 %v743
    %v825 = vunpack.c.l.b16 %v744
    %v826 = vunpack.c.h.b16 %v744
    %v827 = vunpack.c.l.b16 %v745
    %v828 = vunpack.c.h.b16 %v745
    %v829 = vunpack.c.l.b16 %v746
    %v830 = vunpack.c.h.b16 %v746
    %v831 = vunpack.c.l.b16 %v747
    %v832 = vunpack.c.h.b16 %v747
    %v833 = vunpack.c.l.b16 %v748
    %v834 = vunpack.c.h.b16 %v748
    %v835 = vunpack.c.l.b16 %v749
    %v836 = vunpack.c.h.b16 %v749
    %v837 = vunpack.c.l.b16 %v750
    %v838 = vunpack.c.h.b16 %v750
    %v839 = vunpack.c.l.b16 %v751
    %v840 = vunpack.c.h.b16 %v751
    %v841 = vunpack.c.l.b16 %v752
    %v842 = vunpack.c.h.b16 %v752
    %v843 = vunpack.c.l.b16 %v753
    %v844 = vunpack.c.h.b16 %v753
    %v845 = vunpack.c.l.b16 %v754
    %v846 = vunpack.c.h.b16 %v754
    %v847 = vunpack.c.l.b16 %v755
    %v848 = vunpack.c.h.b16 %v755
    %v849 = vunpack.c.l.b16 %v756
    %v850 = vunpack.c.h.b16 %v756
    %v851 = vunpack.c.l.b16 %v757
    %v852 = vunpack.c.h.b16 %v757
    %v853 = vunpack.c.l.b16 %v758
    %v854 = vunpack.c.h.b16 %v758
    %v855 = vunpack.c.l.b16 %v759
    %v856 = vunpack.c.h.b16 %v759
    %v857 = vunpack.c.l.b16 %v760
    %v858 = vunpack.c.h.b16 %v760
    %v859 = vunpack.c.l.b16 %v761
    %v860 = vunpack.c.h.b16 %v761
    %v861 = vunpack.c.l.b16 %v762
    %v862 = vunpack.c.h.b16 %v762
    %v863 = vunpack.c.l.b16 %v763
    %v864 = vunpack.c.h.b16 %v763
    %v865 = vunpack.c.l.b16 %v764
    %v866 = vunpack.c.h.b16 %v764
    %v867 = vpack.c.b16 %v805, %v803
    %v868 = vpack.c.b16 %v806, %v804
    %v869 = vpack.c.b16 %v809, %v807
    %v870 = vpack.c.b16 %v810, %v808
    %v871 = vpack.c.b16 %v813, %v811
    %v872 = vpack.c.b16 %v814, %v812
    %v873 = vpack.c.b16 %v817, %v815
    %v874 = vpack.c.b16 %v818, %v816
    %v875 = vpack.c.b16 %v821, %v819
    %v876 = vpack.c.b16 %v822, %v820
    %v877 = vpack.c.b16 %v825, %v823
    %v878 = vpack.c.b16 %v826, %v824
    %v879 = vpack.c.b16 %v829, %v827
    %v880 = vpack.c.b16 %v830, %v828
    %v881 = vpack.c.b16 %v833, %v831
    %v882 = vpack.c.b16 %v834, %v832
    %v883 = vpack.c.b16 %v837, %v835
    %v884 = vpack.c.b16 %v838, %v836
    %v885 = vpack.c.b16 %v841, %v839
    %v886 = vpack.c.b16 %v842, %v840
    %v887 = vpack.c.b16 %v845, %v843
    %v888 = vpack.c.b16 %v846, %v844
    %v889 = vpack.c.b16 %v849, %v847
    %v890 = vpack.c.b16 %v850, %v848
    %v891 = vpack.c.b16 %v853, %v851
    %v892 = vpack.c.b16 %v854, %v852
    %v893 = vpack.c.b16 %v857, %v855
    %v894 = vpack.c.b16 %v858, %v856
    %v895 = vpack.c.b16 %v861, %v859
    %v896 = vpack.c.b16 %v862, %v860
    %v897 = vpack.c.b16 %v865, %v863
    %v898 = vpack.c.b16 %v866, %v864
    %931 = vmatpush.bf16.msra.mxu0 %v881
    %932 = vmatpush.bf16.msra.mxu0 %v879
    %933 = vmatpush.bf16.msra.mxu0 %v877
    %934 = vmatpush.bf16.msra.mxu0 %v875
    %935 = vmatpush.bf16.msra.mxu0 %v873
    %936 = vmatpush.bf16.msra.mxu0 %v871
    %937 = vmatpush.bf16.msra.mxu0 %v869
    %938 = vmatpush.bf16.msra.mxu0 %v867
    %939 = vmatmul.bf16.gmra.mxu0 %v717
    %v940 = vpop.f32.mrf.mxu0
    %v941 = vadd.f32 %v767, %v940
    %v942 = vpop.f32.mrf.mxu0
    %v943 = vadd.f32 %v767, %v942
    %944 = vmatmul.bf16.gmra.mxu0 %v719
    %v945 = vpop.f32.mrf.mxu0
    %v946 = vadd.f32 %v767, %v945
    %v947 = vpop.f32.mrf.mxu0
    %v948 = vadd.f32 %v767, %v947
    %949 = vmatmul.bf16.gmra.mxu0 %v721
    %v950 = vpop.f32.mrf.mxu0
    %v951 = vadd.f32 %v767, %v950
    %v952 = vpop.f32.mrf.mxu0
    %v953 = vadd.f32 %v767, %v952
    %954 = vmatmul.bf16.gmra.mxu0 %v723
    %v955 = vpop.f32.mrf.mxu0
    %v956 = vadd.f32 %v767, %v955
    %v957 = vpop.f32.mrf.mxu0
    %v958 = vadd.f32 %v767, %v957
    %959 = vmatmul.bf16.gmra.mxu0 %v725
    %v960 = vpop.f32.mrf.mxu0
    %v961 = vadd.f32 %v767, %v960
    %v962 = vpop.f32.mrf.mxu0
    %v963 = vadd.f32 %v767, %v962
    %964 = vmatmul.bf16.gmra.mxu0 %v727
    %v965 = vpop.f32.mrf.mxu0
    %v966 = vadd.f32 %v767, %v965
    %v967 = vpop.f32.mrf.mxu0
    %v968 = vadd.f32 %v767, %v967
    %969 = vmatmul.bf16.gmra.mxu0 %v729
    %v970 = vpop.f32.mrf.mxu0
    %v971 = vadd.f32 %v767, %v970
    %v972 = vpop.f32.mrf.mxu0
    %v973 = vadd.f32 %v767, %v972
    %974 = vmatmul.bf16.gmra.mxu0 %v731
    %v975 = vpop.f32.mrf.mxu0
    %v976 = vadd.f32 %v767, %v975
    %v977 = vpop.f32.mrf.mxu0
    %v978 = vadd.f32 %v767, %v977
    %979 = vdwg.mxu0
    %980 = vmatpush.bf16.msra.mxu0 %v897
    %981 = vmatpush.bf16.msra.mxu0 %v895
    %982 = vmatpush.bf16.msra.mxu0 %v893
    %983 = vmatpush.bf16.msra.mxu0 %v891
    %984 = vmatpush.bf16.msra.mxu0 %v889
    %985 = vmatpush.bf16.msra.mxu0 %v887
    %986 = vmatpush.bf16.msra.mxu0 %v885
    %987 = vmatpush.bf16.msra.mxu0 %v883
    %988 = vmatmul.bf16.gmra.mxu0 %v718
    %v989 = vpop.f32.mrf.mxu0
    %v990 = vadd.f32 %v941, %v989
    %v991 = vpop.f32.mrf.mxu0
    %v992 = vadd.f32 %v943, %v991
    %993 = vmatmul.bf16.gmra.mxu0 %v720
    %v994 = vpop.f32.mrf.mxu0
    %v995 = vadd.f32 %v946, %v994
    %v996 = vpop.f32.mrf.mxu0
    %v997 = vadd.f32 %v948, %v996
    %998 = vmatmul.bf16.gmra.mxu0 %v722
    %v999 = vpop.f32.mrf.mxu0
    %v1000 = vadd.f32 %v951, %v999
    %v1001 = vpop.f32.mrf.mxu0
    %v1002 = vadd.f32 %v953, %v1001
    %1003 = vmatmul.bf16.gmra.mxu0 %v724
    %v1004 = vpop.f32.mrf.mxu0
    %v1005 = vadd.f32 %v956, %v1004
    %v1006 = vpop.f32.mrf.mxu0
    %v1007 = vadd.f32 %v958, %v1006
    %1008 = vmatmul.bf16.gmra.mxu0 %v726
    %v1009 = vpop.f32.mrf.mxu0
    %v1010 = vadd.f32 %v961, %v1009
    %v1011 = vpop.f32.mrf.mxu0
    %v1012 = vadd.f32 %v963, %v1011
    %1013 = vmatmul.bf16.gmra.mxu0 %v728
    %v1014 = vpop.f32.mrf.mxu0
    %v1015 = vadd.f32 %v966, %v1014
    %v1016 = vpop.f32.mrf.mxu0
    %v1017 = vadd.f32 %v968, %v1016
    %1018 = vmatmul.bf16.gmra.mxu0 %v730
    %v1019 = vpop.f32.mrf.mxu0
    %v1020 = vadd.f32 %v971, %v1019
    %v1021 = vpop.f32.mrf.mxu0
    %v1022 = vadd.f32 %v973, %v1021
    %1023 = vmatmul.bf16.gmra.mxu0 %v732
    %v1024 = vpop.f32.mrf.mxu0
    %v1025 = vadd.f32 %v976, %v1024
    %v1026 = vpop.f32.mrf.mxu0
    %v1027 = vadd.f32 %v978, %v1026
    %1028 = vdwg.mxu0
    %1029 = vmatpush.bf16.msra.mxu0 %v882
    %1030 = vmatpush.bf16.msra.mxu0 %v880
    %1031 = vmatpush.bf16.msra.mxu0 %v878
    %1032 = vmatpush.bf16.msra.mxu0 %v876
    %1033 = vmatpush.bf16.msra.mxu0 %v874
    %1034 = vmatpush.bf16.msra.mxu0 %v872
    %1035 = vmatpush.bf16.msra.mxu0 %v870
    %1036 = vmatpush.bf16.msra.mxu0 %v868
    %1037 = vmatmul.bf16.gmra.mxu0 %v717
    %v1038 = vpop.f32.mrf.mxu0
    %v1039 = vadd.f32 %v768, %v1038
    %v1040 = vpop.f32.mrf.mxu0
    %v1041 = vadd.f32 %v768, %v1040
    %1042 = vmatmul.bf16.gmra.mxu0 %v719
    %v1043 = vpop.f32.mrf.mxu0
    %v1044 = vadd.f32 %v768, %v1043
    %v1045 = vpop.f32.mrf.mxu0
    %v1046 = vadd.f32 %v768, %v1045
    %1047 = vmatmul.bf16.gmra.mxu0 %v721
    %v1048 = vpop.f32.mrf.mxu0
    %v1049 = vadd.f32 %v768, %v1048
    %v1050 = vpop.f32.mrf.mxu0
    %v1051 = vadd.f32 %v768, %v1050
    %1052 = vmatmul.bf16.gmra.mxu0 %v723
    %v1053 = vpop.f32.mrf.mxu0
    %v1054 = vadd.f32 %v768, %v1053
    %v1055 = vpop.f32.mrf.mxu0
    %v1056 = vadd.f32 %v768, %v1055
    %1057 = vmatmul.bf16.gmra.mxu0 %v725
    %v1058 = vpop.f32.mrf.mxu0
    %v1059 = vadd.f32 %v768, %v1058
    %v1060 = vpop.f32.mrf.mxu0
    %v1061 = vadd.f32 %v768, %v1060
    %1062 = vmatmul.bf16.gmra.mxu0 %v727
    %v1063 = vpop.f32.mrf.mxu0
    %v1064 = vadd.f32 %v768, %v1063
    %v1065 = vpop.f32.mrf.mxu0
    %v1066 = vadd.f32 %v768, %v1065
    %1067 = vmatmul.bf16.gmra.mxu0 %v729
    %v1068 = vpop.f32.mrf.mxu0
    %v1069 = vadd.f32 %v768, %v1068
    %v1070 = vpop.f32.mrf.mxu0
    %v1071 = vadd.f32 %v768, %v1070
    %1072 = vmatmul.bf16.gmra.mxu0 %v731
    %v1073 = vpop.f32.mrf.mxu0
    %v1074 = vadd.f32 %v768, %v1073
    %v1075 = vpop.f32.mrf.mxu0
    %v1076 = vadd.f32 %v768, %v1075
    %1077 = vdwg.mxu0
    %1078 = vmatpush.bf16.msra.mxu0 %v898
    %1079 = vmatpush.bf16.msra.mxu0 %v896
    %1080 = vmatpush.bf16.msra.mxu0 %v894
    %1081 = vmatpush.bf16.msra.mxu0 %v892
    %1082 = vmatpush.bf16.msra.mxu0 %v890
    %1083 = vmatpush.bf16.msra.mxu0 %v888
    %1084 = vmatpush.bf16.msra.mxu0 %v886
    %1085 = vmatpush.bf16.msra.mxu0 %v884
    %1086 = vmatmul.bf16.gmra.mxu0 %v718
    %v1087 = vpop.f32.mrf.mxu0
    %v1088 = vadd.f32 %v1039, %v1087
    %v1089 = vpop.f32.mrf.mxu0
    %v1090 = vadd.f32 %v1041, %v1089
    %1091 = vmatmul.bf16.gmra.mxu0 %v720
    %v1092 = vpop.f32.mrf.mxu0
    %v1093 = vadd.f32 %v1044, %v1092
    %v1094 = vpop.f32.mrf.mxu0
    %v1095 = vadd.f32 %v1046, %v1094
    %1096 = vmatmul.bf16.gmra.mxu0 %v722
    %v1097 = vpop.f32.mrf.mxu0
    %v1098 = vadd.f32 %v1049, %v1097
    %v1099 = vpop.f32.mrf.mxu0
    %v1100 = vadd.f32 %v1051, %v1099
    %1101 = vmatmul.bf16.gmra.mxu0 %v724
    %v1102 = vpop.f32.mrf.mxu0
    %v1103 = vadd.f32 %v1054, %v1102
    %v1104 = vpop.f32.mrf.mxu0
    %v1105 = vadd.f32 %v1056, %v1104
    %1106 = vmatmul.bf16.gmra.mxu0 %v726
    %v1107 = vpop.f32.mrf.mxu0
    %v1108 = vadd.f32 %v1059, %v1107
    %v1109 = vpop.f32.mrf.mxu0
    %v1110 = vadd.f32 %v1061, %v1109
    %1111 = vmatmul.bf16.gmra.mxu0 %v728
    %v1112 = vpop.f32.mrf.mxu0
    %v1113 = vadd.f32 %v1064, %v1112
    %v1114 = vpop.f32.mrf.mxu0
    %v1115 = vadd.f32 %v1066, %v1114
    %1116 = vmatmul.bf16.gmra.mxu0 %v730
    %v1117 = vpop.f32.mrf.mxu0
    %v1118 = vadd.f32 %v1069, %v1117
    %v1119 = vpop.f32.mrf.mxu0
    %v1120 = vadd.f32 %v1071, %v1119
    %1121 = vmatmul.bf16.gmra.mxu0 %v732
    %v1122 = vpop.f32.mrf.mxu0
    %v1123 = vadd.f32 %v1074, %v1122
    %v1124 = vpop.f32.mrf.mxu0
    %v1125 = vadd.f32 %v1076, %v1124
    %1126 = vdwg.mxu0
    %v1127 = vmax.f32 %v990, 0.0
    %v1128 = vmax.f32 %v1088, 0.0
    %v1129 = vmax.f32 %v992, 0.0
    %v1130 = vmax.f32 %v1090, 0.0
    %v1131 = vmax.f32 %v995, 0.0
    %v1132 = vmax.f32 %v1093, 0.0
    %v1133 = vmax.f32 %v997, 0.0
    %v1134 = vmax.f32 %v1095, 0.0
    %v1135 = vmax.f32 %v1000, 0.0
    %v1136 = vmax.f32 %v1098, 0.0
    %v1137 = vmax.f32 %v1002, 0.0
    %v1138 = vmax.f32 %v1100, 0.0
    %v1139 = vmax.f32 %v1005, 0.0
    %v1140 = vmax.f32 %v1103, 0.0
    %v1141 = vmax.f32 %v1007, 0.0
    %v1142 = vmax.f32 %v1105, 0.0
    %v1143 = vmax.f32 %v1010, 0.0
    %v1144 = vmax.f32 %v1108, 0.0
    %v1145 = vmax.f32 %v1012, 0.0
    %v1146 = vmax.f32 %v1110, 0.0
    %v1147 = vmax.f32 %v1015, 0.0
    %v1148 = vmax.f32 %v1113, 0.0
    %v1149 = vmax.f32 %v1017, 0.0
    %v1150 = vmax.f32 %v1115, 0.0
    %v1151 = vmax.f32 %v1020, 0.0
    %v1152 = vmax.f32 %v1118, 0.0
    %v1153 = vmax.f32 %v1022, 0.0
    %v1154 = vmax.f32 %v1120, 0.0
    %v1155 = vmax.f32 %v1025, 0.0
    %v1156 = vmax.f32 %v1123, 0.0
    %v1157 = vmax.f32 %v1027, 0.0
    %v1158 = vmax.f32 %v1125, 0.0
    %v1159 = vpack.c.bf16 %v1129, %v1127
    %v1160 = vpack.c.bf16 %v1130, %v1128
    %v1161 = vpack.c.bf16 %v1133, %v1131
    %v1162 = vpack.c.bf16 %v1134, %v1132
    %v1163 = vpack.c.bf16 %v1137, %v1135
    %v1164 = vpack.c.bf16 %v1138, %v1136
    %v1165 = vpack.c.bf16 %v1141, %v1139
    %v1166 = vpack.c.bf16 %v1142, %v1140
    %v1167 = vpack.c.bf16 %v1145, %v1143
    %v1168 = vpack.c.bf16 %v1146, %v1144
    %v1169 = vpack.c.bf16 %v1149, %v1147
    %v1170 = vpack.c.bf16 %v1150, %v1148
    %v1171 = vpack.c.bf16 %v1153, %v1151
    %v1172 = vpack.c.bf16 %v1154, %v1152
    %v1173 = vpack.c.bf16 %v1157, %v1155
    %v1174 = vpack.c.bf16 %v1158, %v1156
    %v1175 = vld [vmem:[%s7] sm:$0xff]
    %v1176 = vld [vmem:[%s7 + $0x8] sm:$0xff]
    %v1177 = vld [vmem:[%s7 + $0x10] sm:$0xff]
    %v1178 = vld [vmem:[%s7 + $0x18] sm:$0xff]
    %v1179 = vld [vmem:[%s7 + $0x20] sm:$0xff]
    %v1180 = vld [vmem:[%s7 + $0x28] sm:$0xff]
    %v1181 = vld [vmem:[%s7 + $0x30] sm:$0xff]
    %v1182 = vld [vmem:[%s7 + $0x38] sm:$0xff]
    %v1183 = vld [vmem:[%s7 + $0x40] sm:$0xff]
    %v1184 = vld [vmem:[%s7 + $0x48] sm:$0xff]
    %v1185 = vld [vmem:[%s7 + $0x50] sm:$0xff]
    %v1186 = vld [vmem:[%s7 + $0x58] sm:$0xff]
    %v1187 = vld [vmem:[%s7 + $0x60] sm:$0xff]
    %v1188 = vld [vmem:[%s7 + $0x68] sm:$0xff]
    %v1189 = vld [vmem:[%s7 + $0x70] sm:$0xff]
    %v1190 = vld [vmem:[%s7 + $0x78] sm:$0xff]
    %v1191 = vld [vmem:[%s7 + $0x80] sm:$0xff]
    %v1192 = vld [vmem:[%s7 + $0x88] sm:$0xff]
    %v1193 = vld [vmem:[%s7 + $0x90] sm:$0xff]
    %v1194 = vld [vmem:[%s7 + $0x98] sm:$0xff]
    %v1195 = vld [vmem:[%s7 + $0xa0] sm:$0xff]
    %v1196 = vld [vmem:[%s7 + $0xa8] sm:$0xff]
    %v1197 = vld [vmem:[%s7 + $0xb0] sm:$0xff]
    %v1198 = vld [vmem:[%s7 + $0xb8] sm:$0xff]
    %v1199 = vld [vmem:[%s7 + $0xc0] sm:$0xff]
    %v1200 = vld [vmem:[%s7 + $0xc8] sm:$0xff]
    %v1201 = vld [vmem:[%s7 + $0xd0] sm:$0xff]
    %v1202 = vld [vmem:[%s7 + $0xd8] sm:$0xff]
    %v1203 = vld [vmem:[%s7 + $0xe0] sm:$0xff]
    %v1204 = vld [vmem:[%s7 + $0xe8] sm:$0xff]
    %v1205 = vld [vmem:[%s7 + $0xf0] sm:$0xff]
    %v1206 = vld [vmem:[%s7 + $0xf8] sm:$0xff]
    %v1207 = vld [vmem:[%s8] sm:$0x3]
    %v1209 = vperm.slane %v1207, 0
    %v1210 = vperm.slane %v1207, 1
    %v1245 = vunpack.c.l.b16 %v1175
    %v1246 = vunpack.c.h.b16 %v1175
    %v1247 = vunpack.c.l.b16 %v1176
    %v1248 = vunpack.c.h.b16 %v1176
    %v1249 = vunpack.c.l.b16 %v1177
    %v1250 = vunpack.c.h.b16 %v1177
    %v1251 = vunpack.c.l.b16 %v1178
    %v1252 = vunpack.c.h.b16 %v1178
    %v1253 = vunpack.c.l.b16 %v1179
    %v1254 = vunpack.c.h.b16 %v1179
    %v1255 = vunpack.c.l.b16 %v1180
    %v1256 = vunpack.c.h.b16 %v1180
    %v1257 = vunpack.c.l.b16 %v1181
    %v1258 = vunpack.c.h.b16 %v1181
    %v1259 = vunpack.c.l.b16 %v1182
    %v1260 = vunpack.c.h.b16 %v1182
    %v1261 = vunpack.c.l.b16 %v1183
    %v1262 = vunpack.c.h.b16 %v1183
    %v1263 = vunpack.c.l.b16 %v1184
    %v1264 = vunpack.c.h.b16 %v1184
    %v1265 = vunpack.c.l.b16 %v1185
    %v1266 = vunpack.c.h.b16 %v1185
    %v1267 = vunpack.c.l.b16 %v1186
    %v1268 = vunpack.c.h.b16 %v1186
    %v1269 = vunpack.c.l.b16 %v1187
    %v1270 = vunpack.c.h.b16 %v1187
    %v1271 = vunpack.c.l.b16 %v1188
    %v1272 = vunpack.c.h.b16 %v1188
    %v1273 = vunpack.c.l.b16 %v1189
    %v1274 = vunpack.c.h.b16 %v1189
    %v1275 = vunpack.c.l.b16 %v1190
    %v1276 = vunpack.c.h.b16 %v1190
    %v1277 = vunpack.c.l.b16 %v1191
    %v1278 = vunpack.c.h.b16 %v1191
    %v1279 = vunpack.c.l.b16 %v1192
    %v1280 = vunpack.c.h.b16 %v1192
    %v1281 = vunpack.c.l.b16 %v1193
    %v1282 = vunpack.c.h.b16 %v1193
    %v1283 = vunpack.c.l.b16 %v1194
    %v1284 = vunpack.c.h.b16 %v1194
    %v1285 = vunpack.c.l.b16 %v1195
    %v1286 = vunpack.c.h.b16 %v1195
    %v1287 = vunpack.c.l.b16 %v1196
    %v1288 = vunpack.c.h.b16 %v1196
    %v1289 = vunpack.c.l.b16 %v1197
    %v1290 = vunpack.c.h.b16 %v1197
    %v1291 = vunpack.c.l.b16 %v1198
    %v1292 = vunpack.c.h.b16 %v1198
    %v1293 = vunpack.c.l.b16 %v1199
    %v1294 = vunpack.c.h.b16 %v1199
    %v1295 = vunpack.c.l.b16 %v1200
    %v1296 = vunpack.c.h.b16 %v1200
    %v1297 = vunpack.c.l.b16 %v1201
    %v1298 = vunpack.c.h.b16 %v1201
    %v1299 = vunpack.c.l.b16 %v1202
    %v1300 = vunpack.c.h.b16 %v1202
    %v1301 = vunpack.c.l.b16 %v1203
    %v1302 = vunpack.c.h.b16 %v1203
    %v1303 = vunpack.c.l.b16 %v1204
    %v1304 = vunpack.c.h.b16 %v1204
    %v1305 = vunpack.c.l.b16 %v1205
    %v1306 = vunpack.c.h.b16 %v1205
    %v1307 = vunpack.c.l.b16 %v1206
    %v1308 = vunpack.c.h.b16 %v1206
    %v1309 = vpack.c.b16 %v1247, %v1245
    %v1310 = vpack.c.b16 %v1248, %v1246
    %v1311 = vpack.c.b16 %v1251, %v1249
    %v1312 = vpack.c.b16 %v1252, %v1250
    %v1313 = vpack.c.b16 %v1255, %v1253
    %v1314 = vpack.c.b16 %v1256, %v1254
    %v1315 = vpack.c.b16 %v1259, %v1257
    %v1316 = vpack.c.b16 %v1260, %v1258
    %v1317 = vpack.c.b16 %v1263, %v1261
    %v1318 = vpack.c.b16 %v1264, %v1262
    %v1319 = vpack.c.b16 %v1267, %v1265
    %v1320 = vpack.c.b16 %v1268, %v1266
    %v1321 = vpack.c.b16 %v1271, %v1269
    %v1322 = vpack.c.b16 %v1272, %v1270
    %v1323 = vpack.c.b16 %v1275, %v1273
    %v1324 = vpack.c.b16 %v1276, %v1274
    %v1325 = vpack.c.b16 %v1279, %v1277
    %v1326 = vpack.c.b16 %v1280, %v1278
    %v1327 = vpack.c.b16 %v1283, %v1281
    %v1328 = vpack.c.b16 %v1284, %v1282
    %v1329 = vpack.c.b16 %v1287, %v1285
    %v1330 = vpack.c.b16 %v1288, %v1286
    %v1331 = vpack.c.b16 %v1291, %v1289
    %v1332 = vpack.c.b16 %v1292, %v1290
    %v1333 = vpack.c.b16 %v1295, %v1293
    %v1334 = vpack.c.b16 %v1296, %v1294
    %v1335 = vpack.c.b16 %v1299, %v1297
    %v1336 = vpack.c.b16 %v1300, %v1298
    %v1337 = vpack.c.b16 %v1303, %v1301
    %v1338 = vpack.c.b16 %v1304, %v1302
    %v1339 = vpack.c.b16 %v1307, %v1305
    %v1340 = vpack.c.b16 %v1308, %v1306
    %1373 = vmatpush.bf16.msra.mxu0 %v1323
    %1374 = vmatpush.bf16.msra.mxu0 %v1321
    %1375 = vmatpush.bf16.msra.mxu0 %v1319
    %1376 = vmatpush.bf16.msra.mxu0 %v1317
    %1377 = vmatpush.bf16.msra.mxu0 %v1315
    %1378 = vmatpush.bf16.msra.mxu0 %v1313
    %1379 = vmatpush.bf16.msra.mxu0 %v1311
    %1380 = vmatpush.bf16.msra.mxu0 %v1309
    %1381 = vmatmul.bf16.gmra.mxu0 %v1159
    %v1382 = vpop.f32.mrf.mxu0
    %v1383 = vadd.f32 %v1209, %v1382
    %v1384 = vpop.f32.mrf.mxu0
    %v1385 = vadd.f32 %v1209, %v1384
    %1386 = vmatmul.bf16.gmra.mxu0 %v1161
    %v1387 = vpop.f32.mrf.mxu0
    %v1388 = vadd.f32 %v1209, %v1387
    %v1389 = vpop.f32.mrf.mxu0
    %v1390 = vadd.f32 %v1209, %v1389
    %1391 = vmatmul.bf16.gmra.mxu0 %v1163
    %v1392 = vpop.f32.mrf.mxu0
    %v1393 = vadd.f32 %v1209, %v1392
    %v1394 = vpop.f32.mrf.mxu0
    %v1395 = vadd.f32 %v1209, %v1394
    %1396 = vmatmul.bf16.gmra.mxu0 %v1165
    %v1397 = vpop.f32.mrf.mxu0
    %v1398 = vadd.f32 %v1209, %v1397
    %v1399 = vpop.f32.mrf.mxu0
    %v1400 = vadd.f32 %v1209, %v1399
    %1401 = vmatmul.bf16.gmra.mxu0 %v1167
    %v1402 = vpop.f32.mrf.mxu0
    %v1403 = vadd.f32 %v1209, %v1402
    %v1404 = vpop.f32.mrf.mxu0
    %v1405 = vadd.f32 %v1209, %v1404
    %1406 = vmatmul.bf16.gmra.mxu0 %v1169
    %v1407 = vpop.f32.mrf.mxu0
    %v1408 = vadd.f32 %v1209, %v1407
    %v1409 = vpop.f32.mrf.mxu0
    %v1410 = vadd.f32 %v1209, %v1409
    %1411 = vmatmul.bf16.gmra.mxu0 %v1171
    %v1412 = vpop.f32.mrf.mxu0
    %v1413 = vadd.f32 %v1209, %v1412
    %v1414 = vpop.f32.mrf.mxu0
    %v1415 = vadd.f32 %v1209, %v1414
    %1416 = vmatmul.bf16.gmra.mxu0 %v1173
    %v1417 = vpop.f32.mrf.mxu0
    %v1418 = vadd.f32 %v1209, %v1417
    %v1419 = vpop.f32.mrf.mxu0
    %v1420 = vadd.f32 %v1209, %v1419
    %1421 = vdwg.mxu0
    %1422 = vmatpush.bf16.msra.mxu0 %v1339
    %1423 = vmatpush.bf16.msra.mxu0 %v1337
    %1424 = vmatpush.bf16.msra.mxu0 %v1335
    %1425 = vmatpush.bf16.msra.mxu0 %v1333
    %1426 = vmatpush.bf16.msra.mxu0 %v1331
    %1427 = vmatpush.bf16.msra.mxu0 %v1329
    %1428 = vmatpush.bf16.msra.mxu0 %v1327
    %1429 = vmatpush.bf16.msra.mxu0 %v1325
    %1430 = vmatmul.bf16.gmra.mxu0 %v1160
    %v1431 = vpop.f32.mrf.mxu0
    %v1432 = vadd.f32 %v1383, %v1431
    %v1433 = vpop.f32.mrf.mxu0
    %v1434 = vadd.f32 %v1385, %v1433
    %1435 = vmatmul.bf16.gmra.mxu0 %v1162
    %v1436 = vpop.f32.mrf.mxu0
    %v1437 = vadd.f32 %v1388, %v1436
    %v1438 = vpop.f32.mrf.mxu0
    %v1439 = vadd.f32 %v1390, %v1438
    %1440 = vmatmul.bf16.gmra.mxu0 %v1164
    %v1441 = vpop.f32.mrf.mxu0
    %v1442 = vadd.f32 %v1393, %v1441
    %v1443 = vpop.f32.mrf.mxu0
    %v1444 = vadd.f32 %v1395, %v1443
    %1445 = vmatmul.bf16.gmra.mxu0 %v1166
    %v1446 = vpop.f32.mrf.mxu0
    %v1447 = vadd.f32 %v1398, %v1446
    %v1448 = vpop.f32.mrf.mxu0
    %v1449 = vadd.f32 %v1400, %v1448
    %1450 = vmatmul.bf16.gmra.mxu0 %v1168
    %v1451 = vpop.f32.mrf.mxu0
    %v1452 = vadd.f32 %v1403, %v1451
    %v1453 = vpop.f32.mrf.mxu0
    %v1454 = vadd.f32 %v1405, %v1453
    %1455 = vmatmul.bf16.gmra.mxu0 %v1170
    %v1456 = vpop.f32.mrf.mxu0
    %v1457 = vadd.f32 %v1408, %v1456
    %v1458 = vpop.f32.mrf.mxu0
    %v1459 = vadd.f32 %v1410, %v1458
    %1460 = vmatmul.bf16.gmra.mxu0 %v1172
    %v1461 = vpop.f32.mrf.mxu0
    %v1462 = vadd.f32 %v1413, %v1461
    %v1463 = vpop.f32.mrf.mxu0
    %v1464 = vadd.f32 %v1415, %v1463
    %1465 = vmatmul.bf16.gmra.mxu0 %v1174
    %v1466 = vpop.f32.mrf.mxu0
    %v1467 = vadd.f32 %v1418, %v1466
    %v1468 = vpop.f32.mrf.mxu0
    %v1469 = vadd.f32 %v1420, %v1468
    %1470 = vdwg.mxu0
    %1471 = vmatpush.bf16.msra.mxu0 %v1324
    %1472 = vmatpush.bf16.msra.mxu0 %v1322
    %1473 = vmatpush.bf16.msra.mxu0 %v1320
    %1474 = vmatpush.bf16.msra.mxu0 %v1318
    %1475 = vmatpush.bf16.msra.mxu0 %v1316
    %1476 = vmatpush.bf16.msra.mxu0 %v1314
    %1477 = vmatpush.bf16.msra.mxu0 %v1312
    %1478 = vmatpush.bf16.msra.mxu0 %v1310
    %1479 = vmatmul.bf16.gmra.mxu0 %v1159
    %v1480 = vpop.f32.mrf.mxu0
    %v1481 = vadd.f32 %v1210, %v1480
    %v1482 = vpop.f32.mrf.mxu0
    %v1483 = vadd.f32 %v1210, %v1482
    %1484 = vmatmul.bf16.gmra.mxu0 %v1161
    %v1485 = vpop.f32.mrf.mxu0
    %v1486 = vadd.f32 %v1210, %v1485
    %v1487 = vpop.f32.mrf.mxu0
    %v1488 = vadd.f32 %v1210, %v1487
    %1489 = vmatmul.bf16.gmra.mxu0 %v1163
    %v1490 = vpop.f32.mrf.mxu0
    %v1491 = vadd.f32 %v1210, %v1490
    %v1492 = vpop.f32.mrf.mxu0
    %v1493 = vadd.f32 %v1210, %v1492
    %1494 = vmatmul.bf16.gmra.mxu0 %v1165
    %v1495 = vpop.f32.mrf.mxu0
    %v1496 = vadd.f32 %v1210, %v1495
    %v1497 = vpop.f32.mrf.mxu0
    %v1498 = vadd.f32 %v1210, %v1497
    %1499 = vmatmul.bf16.gmra.mxu0 %v1167
    %v1500 = vpop.f32.mrf.mxu0
    %v1501 = vadd.f32 %v1210, %v1500
    %v1502 = vpop.f32.mrf.mxu0
    %v1503 = vadd.f32 %v1210, %v1502
    %1504 = vmatmul.bf16.gmra.mxu0 %v1169
    %v1505 = vpop.f32.mrf.mxu0
    %v1506 = vadd.f32 %v1210, %v1505
    %v1507 = vpop.f32.mrf.mxu0
    %v1508 = vadd.f32 %v1210, %v1507
    %1509 = vmatmul.bf16.gmra.mxu0 %v1171
    %v1510 = vpop.f32.mrf.mxu0
    %v1511 = vadd.f32 %v1210, %v1510
    %v1512 = vpop.f32.mrf.mxu0
    %v1513 = vadd.f32 %v1210, %v1512
    %1514 = vmatmul.bf16.gmra.mxu0 %v1173
    %v1515 = vpop.f32.mrf.mxu0
    %v1516 = vadd.f32 %v1210, %v1515
    %v1517 = vpop.f32.mrf.mxu0
    %v1518 = vadd.f32 %v1210, %v1517
    %1519 = vdwg.mxu0
    %1520 = vmatpush.bf16.msra.mxu0 %v1340
    %1521 = vmatpush.bf16.msra.mxu0 %v1338
    %1522 = vmatpush.bf16.msra.mxu0 %v1336
    %1523 = vmatpush.bf16.msra.mxu0 %v1334
    %1524 = vmatpush.bf16.msra.mxu0 %v1332
    %1525 = vmatpush.bf16.msra.mxu0 %v1330
    %1526 = vmatpush.bf16.msra.mxu0 %v1328
    %1527 = vmatpush.bf16.msra.mxu0 %v1326
    %1528 = vmatmul.bf16.gmra.mxu0 %v1160
    %v1529 = vpop.f32.mrf.mxu0
    %v1530 = vadd.f32 %v1481, %v1529
    %v1531 = vpop.f32.mrf.mxu0
    %v1532 = vadd.f32 %v1483, %v1531
    %1533 = vmatmul.bf16.gmra.mxu0 %v1162
    %v1534 = vpop.f32.mrf.mxu0
    %v1535 = vadd.f32 %v1486, %v1534
    %v1536 = vpop.f32.mrf.mxu0
    %v1537 = vadd.f32 %v1488, %v1536
    %1538 = vmatmul.bf16.gmra.mxu0 %v1164
    %v1539 = vpop.f32.mrf.mxu0
    %v1540 = vadd.f32 %v1491, %v1539
    %v1541 = vpop.f32.mrf.mxu0
    %v1542 = vadd.f32 %v1493, %v1541
    %1543 = vmatmul.bf16.gmra.mxu0 %v1166
    %v1544 = vpop.f32.mrf.mxu0
    %v1545 = vadd.f32 %v1496, %v1544
    %v1546 = vpop.f32.mrf.mxu0
    %v1547 = vadd.f32 %v1498, %v1546
    %1548 = vmatmul.bf16.gmra.mxu0 %v1168
    %v1549 = vpop.f32.mrf.mxu0
    %v1550 = vadd.f32 %v1501, %v1549
    %v1551 = vpop.f32.mrf.mxu0
    %v1552 = vadd.f32 %v1503, %v1551
    %1553 = vmatmul.bf16.gmra.mxu0 %v1170
    %v1554 = vpop.f32.mrf.mxu0
    %v1555 = vadd.f32 %v1506, %v1554
    %v1556 = vpop.f32.mrf.mxu0
    %v1557 = vadd.f32 %v1508, %v1556
    %1558 = vmatmul.bf16.gmra.mxu0 %v1172
    %v1559 = vpop.f32.mrf.mxu0
    %v1560 = vadd.f32 %v1511, %v1559
    %v1561 = vpop.f32.mrf.mxu0
    %v1562 = vadd.f32 %v1513, %v1561
    %1563 = vmatmul.bf16.gmra.mxu0 %v1174
    %v1564 = vpop.f32.mrf.mxu0
    %v1565 = vadd.f32 %v1516, %v1564
    %v1566 = vpop.f32.mrf.mxu0
    %v1567 = vadd.f32 %v1518, %v1566
    %1568 = vdwg.mxu0
    %v1569 = vmax.f32 %v1432, 0.0
    %v1570 = vmax.f32 %v1530, 0.0
    %v1571 = vmax.f32 %v1434, 0.0
    %v1572 = vmax.f32 %v1532, 0.0
    %v1573 = vmax.f32 %v1437, 0.0
    %v1574 = vmax.f32 %v1535, 0.0
    %v1575 = vmax.f32 %v1439, 0.0
    %v1576 = vmax.f32 %v1537, 0.0
    %v1577 = vmax.f32 %v1442, 0.0
    %v1578 = vmax.f32 %v1540, 0.0
    %v1579 = vmax.f32 %v1444, 0.0
    %v1580 = vmax.f32 %v1542, 0.0
    %v1581 = vmax.f32 %v1447, 0.0
    %v1582 = vmax.f32 %v1545, 0.0
    %v1583 = vmax.f32 %v1449, 0.0
    %v1584 = vmax.f32 %v1547, 0.0
    %v1585 = vmax.f32 %v1452, 0.0
    %v1586 = vmax.f32 %v1550, 0.0
    %v1587 = vmax.f32 %v1454, 0.0
    %v1588 = vmax.f32 %v1552, 0.0
    %v1589 = vmax.f32 %v1457, 0.0
    %v1590 = vmax.f32 %v1555, 0.0
    %v1591 = vmax.f32 %v1459, 0.0
    %v1592 = vmax.f32 %v1557, 0.0
    %v1593 = vmax.f32 %v1462, 0.0
    %v1594 = vmax.f32 %v1560, 0.0
    %v1595 = vmax.f32 %v1464, 0.0
    %v1596 = vmax.f32 %v1562, 0.0
    %v1597 = vmax.f32 %v1467, 0.0
    %v1598 = vmax.f32 %v1565, 0.0
    %v1599 = vmax.f32 %v1469, 0.0
    %v1600 = vmax.f32 %v1567, 0.0
    %1601 = vst [vmem:[#allocation2] sm:$0xff] %v1569
    %1602 = vst [vmem:[#allocation2 + $0x8] sm:$0xff] %v1570
    %1603 = vst [vmem:[#allocation2 + $0x10] sm:$0xff] %v1571
    %1604 = vst [vmem:[#allocation2 + $0x18] sm:$0xff] %v1572
    %1605 = vst [vmem:[#allocation2 + $0x20] sm:$0xff] %v1573
    %1606 = vst [vmem:[#allocation2 + $0x28] sm:$0xff] %v1574
    %1607 = vst [vmem:[#allocation2 + $0x30] sm:$0xff] %v1575
    %1608 = vst [vmem:[#allocation2 + $0x38] sm:$0xff] %v1576
    %1609 = vst [vmem:[#allocation2 + $0x40] sm:$0xff] %v1577
    %1610 = vst [vmem:[#allocation2 + $0x48] sm:$0xff] %v1578
    %1611 = vst [vmem:[#allocation2 + $0x50] sm:$0xff] %v1579
    %1612 = vst [vmem:[#allocation2 + $0x58] sm:$0xff] %v1580
    %1613 = vst [vmem:[#allocation2 + $0x60] sm:$0xff] %v1581
    %1614 = vst [vmem:[#allocation2 + $0x68] sm:$0xff] %v1582
    %1615 = vst [vmem:[#allocation2 + $0x70] sm:$0xff] %v1583
    %1616 = vst [vmem:[#allocation2 + $0x78] sm:$0xff] %v1584
    %1617 = vst [vmem:[#allocation2 + $0x80] sm:$0xff] %v1585
    %1618 = vst [vmem:[#allocation2 + $0x88] sm:$0xff] %v1586
    %1619 = vst [vmem:[#allocation2 + $0x90] sm:$0xff] %v1587
    %1620 = vst [vmem:[#allocation2 + $0x98] sm:$0xff] %v1588
    %1621 = vst [vmem:[#allocation2 + $0xa0] sm:$0xff] %v1589
    %1622 = vst [vmem:[#allocation2 + $0xa8] sm:$0xff] %v1590
    %1623 = vst [vmem:[#allocation2 + $0xb0] sm:$0xff] %v1591
    %1624 = vst [vmem:[#allocation2 + $0xb8] sm:$0xff] %v1592
    %1625 = vst [vmem:[#allocation2 + $0xc0] sm:$0xff] %v1593
    %1626 = vst [vmem:[#allocation2 + $0xc8] sm:$0xff] %v1594
    %1627 = vst [vmem:[#allocation2 + $0xd0] sm:$0xff] %v1595
    %1628 = vst [vmem:[#allocation2 + $0xd8] sm:$0xff] %v1596
    %1629 = vst [vmem:[#allocation2 + $0xe0] sm:$0xff] %v1597
    %1630 = vst [vmem:[#allocation2 + $0xe8] sm:$0xff] %v1598
    %1631 = vst [vmem:[#allocation2 + $0xf0] sm:$0xff] %v1599
    %1632 = vst [vmem:[#allocation2 + $0xf8] sm:$0xff] %v1600
    // Predicated region
    $region38: #{_forward.1} parent=1 // pred_check
      _
    $region39: #{_forward.1} parent=1 // pred_check_branch
      %1634 = sbr.rel (0) target = $region41
    $region40: #{_forward.1} parent=1 // pred_region
      %1636 = vsyncadd [#allocation3], 0
      %s1637 = sshll.u32 [#allocation2], 4
      %s1638 = int_to_ptr.vmem [resolvable:$true] %s1637
      %s1639 = sshll.u32 %s9, 4
      %s1640 = int_to_ptr.hbm [resolvable:$true] %s1639
      %1645 = dma.vmem_to_hbm [thread:$0]  %s1638, 4096, %s1640, [#allocation3], 256, 256, 16
    $region41: #{_forward.1} parent=1 // pred_fallthru
      _
    // Predicated region
    $region42: #{_forward.1} parent=1 // pred_check
      _
    $region43: #{_forward.1} parent=1 // pred_check_branch
      %1647 = sbr.rel (0) target = $region45
    $region44: #{_forward.1} parent=1 // pred_region
      %1649 = dma.done [#allocation3], 4096
    $region45: #{_forward.1} parent=1 // pred_fallthru
      _
    %1650 = vsyncpa [#allocation3], 1

// kernel: _forward.1
$region0: #{_forward.1}
  #allocation0 [shape = 'u32[]', space=smem, size = 0x4, offset = 0x4, fixed_abs, tag = 'smem constant byte address 0x4 - core index']
  #allocation1 [shape = 'u32[72,128]{1,0:T(1,128)}', space=vmem, size = 0x9000, scoped, tag = 'internal scratch']
  %s0 = inlined_call_operand.vmem [shape: f32[128,63], index: 0, kind: input, shape index: {}]
  %s1 = inlined_call_operand.vmem [shape: bf16[63,256], index: 1, kind: input, shape index: {}]
  %s2 = inlined_call_operand.vmem [shape: f32[1,256], index: 2, kind: input, shape index: {}]
  %s3 = inlined_call_operand.vmem [shape: bf16[256,256], index: 3, kind: input, shape index: {}]
  %s4 = inlined_call_operand.vmem [shape: f32[1,256], index: 4, kind: input, shape index: {}]
  %s5 = inlined_call_operand.vmem [shape: bf16[256,256], index: 5, kind: input, shape index: {}]
  %s6 = inlined_call_operand.vmem [shape: f32[1,256], index: 6, kind: input, shape index: {}]
  %s7 = inlined_call_operand.vmem [shape: bf16[256,256], index: 7, kind: input, shape index: {}]
  %s8 = inlined_call_operand.vmem [shape: f32[1,256], index: 8, kind: input, shape index: {}]
  %s9 = inlined_call_operand.hbm [shape: f32[128,256], index: 9, kind: output, shape index: {}]
  %s10 = sld [smem:[#allocation0]]
  $region46: #{_forward.1} parent=0
    _
  %s12 = ssub.s32 1, %s10
  %s13 = scalar_select 0, %s12, %s10
  $region1: #{_forward.1} parent=0
    #allocation2 [shape = 'u8[131072]{0}', space=vmem, size = 0x20000, scoped, tag = 'output window, operand 0, single buffered']
    #allocation3 [shape = 's32[1]{0}', space=sflag, size = 0x4, scoped, tag = 'scoped memory for _forward.1']
    %14 = vsyncpa [#allocation3], 0
    // Predicated region
    $region2: #{_forward.1} parent=1 // pred_check
      _
    $region3: #{_forward.1} parent=1 // pred_check_branch
      %16 = sbr.rel (0) target = $region5
    $region4: #{_forward.1} parent=1 // pred_region
      _
    $region5: #{_forward.1} parent=1 // pred_fallthru
      _
    // Predicated region
    $region6: #{_forward.1} parent=1 // pred_check
      _
    $region7: #{_forward.1} parent=1 // pred_check_branch
      %18 = sbr.rel (0) target = $region9
    $region8: #{_forward.1} parent=1 // pred_region
      _
    $region9: #{_forward.1} parent=1 // pred_fallthru
      _
    // Predicated region
    $region10: #{_forward.1} parent=1 // pred_check
      _
    $region11: #{_forward.1} parent=1 // pred_check_branch
      %20 = sbr.rel (0) target = $region13
    $region12: #{_forward.1} parent=1 // pred_region
      _
    $region13: #{_forward.1} parent=1 // pred_fallthru
      _
    // Predicated region
    $region14: #{_forward.1} parent=1 // pred_check
      _
    $region15: #{_forward.1} parent=1 // pred_check_branch
      %22 = sbr.rel (0) target = $region17
    $region16: #{_forward.1} parent=1 // pred_region
      _
    $region17: #{_forward.1} parent=1 // pred_fallthru
      _
    // Predicated region
    $region18: #{_forward.1} parent=1 // pred_check
      _
    $region19: #{_forward.1} parent=1 // pred_check_branch
      %24 = sbr.rel (0) target = $region21
    $region20: #{_forward.1} parent=1 // pred_region
      _
    $region21: #{_forward.1} parent=1 // pred_fallthru
      _
    // Predicated region
    $region22: #{_forward.1} parent=1 // pred_check
      _
    $region23: #{_forward.1} parent=1 // pred_check_branch
      %26 = sbr.rel (0) target = $region25
    $region24: #{_forward.1} parent=1 // pred_region
      _
    $region25: #{_forward.1} parent=1 // pred_fallthru
      _
    // Predicated region
    $region26: #{_forward.1} parent=1 // pred_check
      _
    $region27: #{_forward.1} parent=1 // pred_check_branch
      %28 = sbr.rel (0) target = $region29
    $region28: #{_forward.1} parent=1 // pred_region
      _
    $region29: #{_forward.1} parent=1 // pred_fallthru
      _
    // Predicated region
    $region30: #{_forward.1} parent=1 // pred_check
      _
    $region31: #{_forward.1} parent=1 // pred_check_branch
      %30 = sbr.rel (0) target = $region33
    $region32: #{_forward.1} parent=1 // pred_region
      _
    $region33: #{_forward.1} parent=1 // pred_fallthru
      _
    // Predicated region
    $region34: #{_forward.1} parent=1 // pred_check
      _
    $region35: #{_forward.1} parent=1 // pred_check_branch
      %32 = sbr.rel (0) target = $region37
    $region36: #{_forward.1} parent=1 // pred_region
      _
    $region37: #{_forward.1} parent=1 // pred_fallthru
      _
    %v34 = vld [vmem:[%s0] sm:$0xff]
    %v35 = vld [vmem:[%s0 + $0x8] sm:$0xff]
    %v36 = vld [vmem:[%s0 + $0x10] sm:$0xff]
    %v37 = vld [vmem:[%s0 + $0x18] sm:$0xff]
    %v38 = vld [vmem:[%s0 + $0x20] sm:$0xff]
    %v39 = vld [vmem:[%s0 + $0x28] sm:$0xff]
    %v40 = vld [vmem:[%s0 + $0x30] sm:$0xff]
    %v41 = vld [vmem:[%s0 + $0x38] sm:$0xff]
    %v42 = vld [vmem:[%s0 + $0x40] sm:$0xff]
    %v43 = vld [vmem:[%s0 + $0x48] sm:$0xff]
    %v44 = vld [vmem:[%s0 + $0x50] sm:$0xff]
    %v45 = vld [vmem:[%s0 + $0x58] sm:$0xff]
    %v46 = vld [vmem:[%s0 + $0x60] sm:$0xff]
    %v47 = vld [vmem:[%s0 + $0x68] sm:$0xff]
    %v48 = vld [vmem:[%s0 + $0x70] sm:$0xff]
    %v49 = vld [vmem:[%s0 + $0x78] sm:$0xff]
    %v50 = vpack.c.bf16 %v35, %v34
    %v51 = vpack.c.bf16 %v37, %v36
    %v52 = vpack.c.bf16 %v39, %v38
    %v53 = vpack.c.bf16 %v41, %v40
    %v54 = vpack.c.bf16 %v43, %v42
    %v55 = vpack.c.bf16 %v45, %v44
    %v56 = vpack.c.bf16 %v47, %v46
    %v57 = vpack.c.bf16 %v49, %v48
    %v58 = vld [vmem:[%s1] sm:$0xff]
    %v59 = vld [vmem:[%s1 + $0x8] sm:$0xff]
    %v60 = vld [vmem:[%s1 + $0x10] sm:$0xff]
    %v61 = vld [vmem:[%s1 + $0x18] sm:$0xff]
    %v62 = vld [vmem:[%s1 + $0x20] sm:$0xff]
    %v63 = vld [vmem:[%s1 + $0x28] sm:$0xff]
    %v64 = vld [vmem:[%s1 + $0x30] sm:$0xff]
    %v65 = vld [vmem:[%s1 + $0x38] sm:$0xff]
    %v66 = vld [vmem:[%s2] sm:$0x3]
    %v68 = vperm.slane %v66, 0
    %v69 = vperm.slane %v66, 1
    %v80 = vunpack.c.l.b16 %v58
    %v81 = vunpack.c.h.b16 %v58
    %v82 = vunpack.c.l.b16 %v59
    %v83 = vunpack.c.h.b16 %v59
    %v84 = vunpack.c.l.b16 %v60
    %v85 = vunpack.c.h.b16 %v60
    %v86 = vunpack.c.l.b16 %v61
    %v87 = vunpack.c.h.b16 %v61
    %v88 = vunpack.c.l.b16 %v62
    %v89 = vunpack.c.h.b16 %v62
    %v90 = vunpack.c.l.b16 %v63
    %v91 = vunpack.c.h.b16 %v63
    %v92 = vunpack.c.l.b16 %v64
    %v93 = vunpack.c.h.b16 %v64
    %v94 = vunpack.c.l.b16 %v65
    %v95 = vunpack.c.h.b16 %v65
    %v96 = vpack.c.b16 %v82, %v80
    %v97 = vpack.c.b16 %v83, %v81
    %v98 = vpack.c.b16 %v86, %v84
    %v99 = vpack.c.b16 %v87, %v85
    %v100 = vpack.c.b16 %v90, %v88
    %v101 = vpack.c.b16 %v91, %v89
    %v102 = vpack.c.b16 %v94, %v92
    %v103 = vpack.c.b16 %v95, %v93
    %vm110 = vcmask 515072
    %v112 = vsel %vm110, %v50, 0
    %v115 = vsel %vm110, %v51, 0
    %v118 = vsel %vm110, %v52, 0
    %v121 = vsel %vm110, %v53, 0
    %v124 = vsel %vm110, %v54, 0
    %v127 = vsel %vm110, %v55, 0
    %v130 = vsel %vm110, %v56, 0
    %v133 = vsel %vm110, %v57, 0
    %vm135 = vcmask 1046528
    %vm136 = vcmask 1047552
    %v137 = vsel %vm135, 4294967295, 65535
    %v138 = vsel %vm136, %v137, 0
    %v140 = vand.u32 %v102, %v138
    %v143 = vand.u32 %v103, %v138
    %145 = vmatpush.bf16.msra.mxu0 0
    %146 = vmatpush.bf16.msra.mxu0 0
    %147 = vmatpush.bf16.msra.mxu0 0
    %148 = vmatpush.bf16.msra.mxu0 0
    %149 = vmatpush.bf16.msra.mxu0 %v140
    %150 = vmatpush.bf16.msra.mxu0 %v100
    %151 = vmatpush.bf16.msra.mxu0 %v98
    %152 = vmatpush.bf16.msra.mxu0 %v96
    %153 = vmatmul.bf16.gmra.mxu0 %v112
    %v154 = vpop.f32.mrf.mxu0
    %v155 = vadd.f32 %v68, %v154
    %v156 = vpop.f32.mrf.mxu0
    %v157 = vadd.f32 %v68, %v156
    %158 = vmatmul.bf16.gmra.mxu0 %v115
    %v159 = vpop.f32.mrf.mxu0
    %v160 = vadd.f32 %v68, %v159
    %v161 = vpop.f32.mrf.mxu0
    %v162 = vadd.f32 %v68, %v161
    %163 = vmatmul.bf16.gmra.mxu0 %v118
    %v164 = vpop.f32.mrf.mxu0
    %v165 = vadd.f32 %v68, %v164
    %v166 = vpop.f32.mrf.mxu0
    %v167 = vadd.f32 %v68, %v166
    %168 = vmatmul.bf16.gmra.mxu0 %v121
    %v169 = vpop.f32.mrf.mxu0
    %v170 = vadd.f32 %v68, %v169
    %v171 = vpop.f32.mrf.mxu0
    %v172 = vadd.f32 %v68, %v171
    %173 = vmatmul.bf16.gmra.mxu0 %v124
    %v174 = vpop.f32.mrf.mxu0
    %v175 = vadd.f32 %v68, %v174
    %v176 = vpop.f32.mrf.mxu0
    %v177 = vadd.f32 %v68, %v176
    %178 = vmatmul.bf16.gmra.mxu0 %v127
    %v179 = vpop.f32.mrf.mxu0
    %v180 = vadd.f32 %v68, %v179
    %v181 = vpop.f32.mrf.mxu0
    %v182 = vadd.f32 %v68, %v181
    %183 = vmatmul.bf16.gmra.mxu0 %v130
    %v184 = vpop.f32.mrf.mxu0
    %v185 = vadd.f32 %v68, %v184
    %v186 = vpop.f32.mrf.mxu0
    %v187 = vadd.f32 %v68, %v186
    %188 = vmatmul.bf16.gmra.mxu0 %v133
    %v189 = vpop.f32.mrf.mxu0
    %v190 = vadd.f32 %v68, %v189
    %v191 = vpop.f32.mrf.mxu0
    %v192 = vadd.f32 %v68, %v191
    %193 = vdwg.mxu0
    %194 = vmatpush.bf16.msra.mxu0 0
    %195 = vmatpush.bf16.msra.mxu0 0
    %196 = vmatpush.bf16.msra.mxu0 0
    %197 = vmatpush.bf16.msra.mxu0 0
    %198 = vmatpush.bf16.msra.mxu0 %v143
    %199 = vmatpush.bf16.msra.mxu0 %v101
    %200 = vmatpush.bf16.msra.mxu0 %v99
    %201 = vmatpush.bf16.msra.mxu0 %v97
    %202 = vmatmul.bf16.gmra.mxu0 %v112
    %v203 = vpop.f32.mrf.mxu0
    %v204 = vadd.f32 %v69, %v203
    %v205 = vpop.f32.mrf.mxu0
    %v206 = vadd.f32 %v69, %v205
    %207 = vmatmul.bf16.gmra.mxu0 %v115
    %v208 = vpop.f32.mrf.mxu0
    %v209 = vadd.f32 %v69, %v208
    %v210 = vpop.f32.mrf.mxu0
    %v211 = vadd.f32 %v69, %v210
    %212 = vmatmul.bf16.gmra.mxu0 %v118
    %v213 = vpop.f32.mrf.mxu0
    %v214 = vadd.f32 %v69, %v213
    %v215 = vpop.f32.mrf.mxu0
    %v216 = vadd.f32 %v69, %v215
    %217 = vmatmul.bf16.gmra.mxu0 %v121
    %v218 = vpop.f32.mrf.mxu0
    %v219 = vadd.f32 %v69, %v218
    %v220 = vpop.f32.mrf.mxu0
    %v221 = vadd.f32 %v69, %v220
    %222 = vmatmul.bf16.gmra.mxu0 %v124
    %v223 = vpop.f32.mrf.mxu0
    %v224 = vadd.f32 %v69, %v223
    %v225 = vpop.f32.mrf.mxu0
    %v226 = vadd.f32 %v69, %v225
    %227 = vmatmul.bf16.gmra.mxu0 %v127
    %v228 = vpop.f32.mrf.mxu0
    %v229 = vadd.f32 %v69, %v228
    %v230 = vpop.f32.mrf.mxu0
    %v231 = vadd.f32 %v69, %v230
    %232 = vmatmul.bf16.gmra.mxu0 %v130
    %v233 = vpop.f32.mrf.mxu0
    %v234 = vadd.f32 %v69, %v233
    %v235 = vpop.f32.mrf.mxu0
    %v236 = vadd.f32 %v69, %v235
    %237 = vmatmul.bf16.gmra.mxu0 %v133
    %v238 = vpop.f32.mrf.mxu0
    %v239 = vadd.f32 %v69, %v238
    %v240 = vpop.f32.mrf.mxu0
    %v241 = vadd.f32 %v69, %v240
    %242 = vdwg.mxu0
    %v243 = vmax.f32 %v155, 0.0
    %v244 = vmax.f32 %v204, 0.0
    %v245 = vmax.f32 %v157, 0.0
    %v246 = vmax.f32 %v206, 0.0
    %v247 = vmax.f32 %v160, 0.0
    %v248 = vmax.f32 %v209, 0.0
    %v249 = vmax.f32 %v162, 0.0
    %v250 = vmax.f32 %v211, 0.0
    %v251 = vmax.f32 %v165, 0.0
    %v252 = vmax.f32 %v214, 0.0
    %v253 = vmax.f32 %v167, 0.0
    %v254 = vmax.f32 %v216, 0.0
    %v255 = vmax.f32 %v170, 0.0
    %v256 = vmax.f32 %v219, 0.0
    %v257 = vmax.f32 %v172, 0.0
    %v258 = vmax.f32 %v221, 0.0
    %v259 = vmax.f32 %v175, 0.0
    %v260 = vmax.f32 %v224, 0.0
    %v261 = vmax.f32 %v177, 0.0
    %v262 = vmax.f32 %v226, 0.0
    %v263 = vmax.f32 %v180, 0.0
    %v264 = vmax.f32 %v229, 0.0
    %v265 = vmax.f32 %v182, 0.0
    %v266 = vmax.f32 %v231, 0.0
    %v267 = vmax.f32 %v185, 0.0
    %v268 = vmax.f32 %v234, 0.0
    %v269 = vmax.f32 %v187, 0.0
    %v270 = vmax.f32 %v236, 0.0
    %v271 = vmax.f32 %v190, 0.0
    %v272 = vmax.f32 %v239, 0.0
    %v273 = vmax.f32 %v192, 0.0
    %v274 = vmax.f32 %v241, 0.0
    %v275 = vpack.c.bf16 %v245, %v243
    %v276 = vpack.c.bf16 %v246, %v244
    %v277 = vpack.c.bf16 %v249, %v247
    %v278 = vpack.c.bf16 %v250, %v248
    %v279 = vpack.c.bf16 %v253, %v251
    %v280 = vpack.c.bf16 %v254, %v252
    %v281 = vpack.c.bf16 %v257, %v255
    %v282 = vpack.c.bf16 %v258, %v256
    %v283 = vpack.c.bf16 %v261, %v259
    %v284 = vpack.c.bf16 %v262, %v260
    %v285 = vpack.c.bf16 %v265, %v263
    %v286 = vpack.c.bf16 %v266, %v264
    %v287 = vpack.c.bf16 %v269, %v267
    %v288 = vpack.c.bf16 %v270, %v268
    %v289 = vpack.c.bf16 %v273, %v271
    %v290 = vpack.c.bf16 %v274, %v272
    %v291 = vld [vmem:[%s3] sm:$0xff]
    %v292 = vld [vmem:[%s3 + $0x8] sm:$0xff]
    %v293 = vld [vmem:[%s3 + $0x10] sm:$0xff]
    %v294 = vld [vmem:[%s3 + $0x18] sm:$0xff]
    %v295 = vld [vmem:[%s3 + $0x20] sm:$0xff]
    %v296 = vld [vmem:[%s3 + $0x28] sm:$0xff]
    %v297 = vld [vmem:[%s3 + $0x30] sm:$0xff]
    %v298 = vld [vmem:[%s3 + $0x38] sm:$0xff]
    %v299 = vld [vmem:[%s3 + $0x40] sm:$0xff]
    %v300 = vld [vmem:[%s3 + $0x48] sm:$0xff]
    %v301 = vld [vmem:[%s3 + $0x50] sm:$0xff]
    %v302 = vld [vmem:[%s3 + $0x58] sm:$0xff]
    %v303 = vld [vmem:[%s3 + $0x60] sm:$0xff]
    %v304 = vld [vmem:[%s3 + $0x68] sm:$0xff]
    %v305 = vld [vmem:[%s3 + $0x70] sm:$0xff]
    %v306 = vld [vmem:[%s3 + $0x78] sm:$0xff]
    %v307 = vld [vmem:[%s3 + $0x80] sm:$0xff]
    %v308 = vld [vmem:[%s3 + $0x88] sm:$0xff]
    %v309 = vld [vmem:[%s3 + $0x90] sm:$0xff]
    %v310 = vld [vmem:[%s3 + $0x98] sm:$0xff]
    %v311 = vld [vmem:[%s3 + $0xa0] sm:$0xff]
    %v312 = vld [vmem:[%s3 + $0xa8] sm:$0xff]
    %v313 = vld [vmem:[%s3 + $0xb0] sm:$0xff]
    %v314 = vld [vmem:[%s3 + $0xb8] sm:$0xff]
    %v315 = vld [vmem:[%s3 + $0xc0] sm:$0xff]
    %v316 = vld [vmem:[%s3 + $0xc8] sm:$0xff]
    %v317 = vld [vmem:[%s3 + $0xd0] sm:$0xff]
    %v318 = vld [vmem:[%s3 + $0xd8] sm:$0xff]
    %v319 = vld [vmem:[%s3 + $0xe0] sm:$0xff]
    %v320 = vld [vmem:[%s3 + $0xe8] sm:$0xff]
    %v321 = vld [vmem:[%s3 + $0xf0] sm:$0xff]
    %v322 = vld [vmem:[%s3 + $0xf8] sm:$0xff]
    %v323 = vld [vmem:[%s4] sm:$0x3]
    %v325 = vperm.slane %v323, 0
    %v326 = vperm.slane %v323, 1
    %v361 = vunpack.c.l.b16 %v291
    %v362 = vunpack.c.h.b16 %v291
    %v363 = vunpack.c.l.b16 %v292
    %v364 = vunpack.c.h.b16 %v292
    %v365 = vunpack.c.l.b16 %v293
    %v366 = vunpack.c.h.b16 %v293
    %v367 = vunpack.c.l.b16 %v294
    %v368 = vunpack.c.h.b16 %v294
    %v369 = vunpack.c.l.b16 %v295
    %v370 = vunpack.c.h.b16 %v295
    %v371 = vunpack.c.l.b16 %v296
    %v372 = vunpack.c.h.b16 %v296
    %v373 = vunpack.c.l.b16 %v297
    %v374 = vunpack.c.h.b16 %v297
    %v375 = vunpack.c.l.b16 %v298
    %v376 = vunpack.c.h.b16 %v298
    %v377 = vunpack.c.l.b16 %v299
    %v378 = vunpack.c.h.b16 %v299
    %v379 = vunpack.c.l.b16 %v300
    %v380 = vunpack.c.h.b16 %v300
    %v381 = vunpack.c.l.b16 %v301
    %v382 = vunpack.c.h.b16 %v301
    %v383 = vunpack.c.l.b16 %v302
    %v384 = vunpack.c.h.b16 %v302
    %v385 = vunpack.c.l.b16 %v303
    %v386 = vunpack.c.h.b16 %v303
    %v387 = vunpack.c.l.b16 %v304
    %v388 = vunpack.c.h.b16 %v304
    %v389 = vunpack.c.l.b16 %v305
    %v390 = vunpack.c.h.b16 %v305
    %v391 = vunpack.c.l.b16 %v306
    %v392 = vunpack.c.h.b16 %v306
    %v393 = vunpack.c.l.b16 %v307
    %v394 = vunpack.c.h.b16 %v307
    %v395 = vunpack.c.l.b16 %v308
    %v396 = vunpack.c.h.b16 %v308
    %v397 = vunpack.c.l.b16 %v309
    %v398 = vunpack.c.h.b16 %v309
    %v399 = vunpack.c.l.b16 %v310
    %v400 = vunpack.c.h.b16 %v310
    %v401 = vunpack.c.l.b16 %v311
    %v402 = vunpack.c.h.b16 %v311
    %v403 = vunpack.c.l.b16 %v312
    %v404 = vunpack.c.h.b16 %v312
    %v405 = vunpack.c.l.b16 %v313
    %v406 = vunpack.c.h.b16 %v313
    %v407 = vunpack.c.l.b16 %v314
    %v408 = vunpack.c.h.b16 %v314
    %v409 = vunpack.c.l.b16 %v315
    %v410 = vunpack.c.h.b16 %v315
    %v411 = vunpack.c.l.b16 %v316
    %v412 = vunpack.c.h.b16 %v316
    %v413 = vunpack.c.l.b16 %v317
    %v414 = vunpack.c.h.b16 %v317
    %v415 = vunpack.c.l.b16 %v318
    %v416 = vunpack.c.h.b16 %v318
    %v417 = vunpack.c.l.b16 %v319
    %v418 = vunpack.c.h.b16 %v319
    %v419 = vunpack.c.l.b16 %v320
    %v420 = vunpack.c.h.b16 %v320
    %v421 = vunpack.c.l.b16 %v321
    %v422 = vunpack.c.h.b16 %v321
    %v423 = vunpack.c.l.b16 %v322
    %v424 = vunpack.c.h.b16 %v322
    %v425 = vpack.c.b16 %v363, %v361
    %v426 = vpack.c.b16 %v364, %v362
    %v427 = vpack.c.b16 %v367, %v365
    %v428 = vpack.c.b16 %v368, %v366
    %v429 = vpack.c.b16 %v371, %v369
    %v430 = vpack.c.b16 %v372, %v370
    %v431 = vpack.c.b16 %v375, %v373
    %v432 = vpack.c.b16 %v376, %v374
    %v433 = vpack.c.b16 %v379, %v377
    %v434 = vpack.c.b16 %v380, %v378
    %v435 = vpack.c.b16 %v383, %v381
    %v436 = vpack.c.b16 %v384, %v382
    %v437 = vpack.c.b16 %v387, %v385
    %v438 = vpack.c.b16 %v388, %v386
    %v439 = vpack.c.b16 %v391, %v389
    %v440 = vpack.c.b16 %v392, %v390
    %v441 = vpack.c.b16 %v395, %v393
    %v442 = vpack.c.b16 %v396, %v394
    %v443 = vpack.c.b16 %v399, %v397
    %v444 = vpack.c.b16 %v400, %v398
    %v445 = vpack.c.b16 %v403, %v401
    %v446 = vpack.c.b16 %v404, %v402
    %v447 = vpack.c.b16 %v407, %v405
    %v448 = vpack.c.b16 %v408, %v406
    %v449 = vpack.c.b16 %v411, %v409
    %v450 = vpack.c.b16 %v412, %v410
    %v451 = vpack.c.b16 %v415, %v413
    %v452 = vpack.c.b16 %v416, %v414
    %v453 = vpack.c.b16 %v419, %v417
    %v454 = vpack.c.b16 %v420, %v418
    %v455 = vpack.c.b16 %v423, %v421
    %v456 = vpack.c.b16 %v424, %v422
    %489 = vmatpush.bf16.msra.mxu0 %v439
    %490 = vmatpush.bf16.msra.mxu0 %v437
    %491 = vmatpush.bf16.msra.mxu0 %v435
    %492 = vmatpush.bf16.msra.mxu0 %v433
    %493 = vmatpush.bf16.msra.mxu0 %v431
    %494 = vmatpush.bf16.msra.mxu0 %v429
    %495 = vmatpush.bf16.msra.mxu0 %v427
    %496 = vmatpush.bf16.msra.mxu0 %v425
    %497 = vmatmul.bf16.gmra.mxu0 %v275
    %v498 = vpop.f32.mrf.mxu0
    %v499 = vadd.f32 %v325, %v498
    %v500 = vpop.f32.mrf.mxu0
    %v501 = vadd.f32 %v325, %v500
    %502 = vmatmul.bf16.gmra.mxu0 %v277
    %v503 = vpop.f32.mrf.mxu0
    %v504 = vadd.f32 %v325, %v503
    %v505 = vpop.f32.mrf.mxu0
    %v506 = vadd.f32 %v325, %v505
    %507 = vmatmul.bf16.gmra.mxu0 %v279
    %v508 = vpop.f32.mrf.mxu0
    %v509 = vadd.f32 %v325, %v508
    %v510 = vpop.f32.mrf.mxu0
    %v511 = vadd.f32 %v325, %v510
    %512 = vmatmul.bf16.gmra.mxu0 %v281
    %v513 = vpop.f32.mrf.mxu0
    %v514 = vadd.f32 %v325, %v513
    %v515 = vpop.f32.mrf.mxu0
    %v516 = vadd.f32 %v325, %v515
    %517 = vmatmul.bf16.gmra.mxu0 %v283
    %v518 = vpop.f32.mrf.mxu0
    %v519 = vadd.f32 %v325, %v518
    %v520 = vpop.f32.mrf.mxu0
    %v521 = vadd.f32 %v325, %v520
    %522 = vmatmul.bf16.gmra.mxu0 %v285
    %v523 = vpop.f32.mrf.mxu0
    %v524 = vadd.f32 %v325, %v523
    %v525 = vpop.f32.mrf.mxu0
    %v526 = vadd.f32 %v325, %v525
    %527 = vmatmul.bf16.gmra.mxu0 %v287
    %v528 = vpop.f32.mrf.mxu0
    %v529 = vadd.f32 %v325, %v528
    %v530 = vpop.f32.mrf.mxu0
    %v531 = vadd.f32 %v325, %v530
    %532 = vmatmul.bf16.gmra.mxu0 %v289
    %v533 = vpop.f32.mrf.mxu0
    %v534 = vadd.f32 %v325, %v533
    %v535 = vpop.f32.mrf.mxu0
    %v536 = vadd.f32 %v325, %v535
    %537 = vdwg.mxu0
    %538 = vmatpush.bf16.msra.mxu0 %v455
    %539 = vmatpush.bf16.msra.mxu0 %v453
    %540 = vmatpush.bf16.msra.mxu0 %v451
    %541 = vmatpush.bf16.msra.mxu0 %v449
    %542 = vmatpush.bf16.msra.mxu0 %v447
    %543 = vmatpush.bf16.msra.mxu0 %v445
    %544 = vmatpush.bf16.msra.mxu0 %v443
    %545 = vmatpush.bf16.msra.mxu0 %v441
    %546 = vmatmul.bf16.gmra.mxu0 %v276
    %v547 = vpop.f32.mrf.mxu0
    %v548 = vadd.f32 %v499, %v547
    %v549 = vpop.f32.mrf.mxu0
    %v550 = vadd.f32 %v501, %v549
    %551 = vmatmul.bf16.gmra.mxu0 %v278
    %v552 = vpop.f32.mrf.mxu0
    %v553 = vadd.f32 %v504, %v552
    %v554 = vpop.f32.mrf.mxu0
    %v555 = vadd.f32 %v506, %v554
    %556 = vmatmul.bf16.gmra.mxu0 %v280
    %v557 = vpop.f32.mrf.mxu0
    %v558 = vadd.f32 %v509, %v557
    %v559 = vpop.f32.mrf.mxu0
    %v560 = vadd.f32 %v511, %v559
    %561 = vmatmul.bf16.gmra.mxu0 %v282
    %v562 = vpop.f32.mrf.mxu0
    %v563 = vadd.f32 %v514, %v562
    %v564 = vpop.f32.mrf.mxu0
    %v565 = vadd.f32 %v516, %v564
    %566 = vmatmul.bf16.gmra.mxu0 %v284
    %v567 = vpop.f32.mrf.mxu0
    %v568 = vadd.f32 %v519, %v567
    %v569 = vpop.f32.mrf.mxu0
    %v570 = vadd.f32 %v521, %v569
    %571 = vmatmul.bf16.gmra.mxu0 %v286
    %v572 = vpop.f32.mrf.mxu0
    %v573 = vadd.f32 %v524, %v572
    %v574 = vpop.f32.mrf.mxu0
    %v575 = vadd.f32 %v526, %v574
    %576 = vmatmul.bf16.gmra.mxu0 %v288
    %v577 = vpop.f32.mrf.mxu0
    %v578 = vadd.f32 %v529, %v577
    %v579 = vpop.f32.mrf.mxu0
    %v580 = vadd.f32 %v531, %v579
    %581 = vmatmul.bf16.gmra.mxu0 %v290
    %v582 = vpop.f32.mrf.mxu0
    %v583 = vadd.f32 %v534, %v582
    %v584 = vpop.f32.mrf.mxu0
    %v585 = vadd.f32 %v536, %v584
    %586 = vdwg.mxu0
    %587 = vmatpush.bf16.msra.mxu0 %v440
    %588 = vmatpush.bf16.msra.mxu0 %v438
    %589 = vmatpush.bf16.msra.mxu0 %v436
    %590 = vmatpush.bf16.msra.mxu0 %v434
    %591 = vmatpush.bf16.msra.mxu0 %v432
    %592 = vmatpush.bf16.msra.mxu0 %v430
    %593 = vmatpush.bf16.msra.mxu0 %v428
    %594 = vmatpush.bf16.msra.mxu0 %v426
    %595 = vmatmul.bf16.gmra.mxu0 %v275
    %v596 = vpop.f32.mrf.mxu0
    %v597 = vadd.f32 %v326, %v596
    %v598 = vpop.f32.mrf.mxu0
    %v599 = vadd.f32 %v326, %v598
    %600 = vmatmul.bf16.gmra.mxu0 %v277
    %v601 = vpop.f32.mrf.mxu0
    %v602 = vadd.f32 %v326, %v601
    %v603 = vpop.f32.mrf.mxu0
    %v604 = vadd.f32 %v326, %v603
    %605 = vmatmul.bf16.gmra.mxu0 %v279
    %v606 = vpop.f32.mrf.mxu0
    %v607 = vadd.f32 %v326, %v606
    %v608 = vpop.f32.mrf.mxu0
    %v609 = vadd.f32 %v326, %v608
    %610 = vmatmul.bf16.gmra.mxu0 %v281
    %v611 = vpop.f32.mrf.mxu0
    %v612 = vadd.f32 %v326, %v611
    %v613 = vpop.f32.mrf.mxu0
    %v614 = vadd.f32 %v326, %v613
    %615 = vmatmul.bf16.gmra.mxu0 %v283
    %v616 = vpop.f32.mrf.mxu0
    %v617 = vadd.f32 %v326, %v616
    %v618 = vpop.f32.mrf.mxu0
    %v619 = vadd.f32 %v326, %v618
    %620 = vmatmul.bf16.gmra.mxu0 %v285
    %v621 = vpop.f32.mrf.mxu0
    %v622 = vadd.f32 %v326, %v621
    %v623 = vpop.f32.mrf.mxu0
    %v624 = vadd.f32 %v326, %v623
    %625 = vmatmul.bf16.gmra.mxu0 %v287
    %v626 = vpop.f32.mrf.mxu0
    %v627 = vadd.f32 %v326, %v626
    %v628 = vpop.f32.mrf.mxu0
    %v629 = vadd.f32 %v326, %v628
    %630 = vmatmul.bf16.gmra.mxu0 %v289
    %v631 = vpop.f32.mrf.mxu0
    %v632 = vadd.f32 %v326, %v631
    %v633 = vpop.f32.mrf.mxu0
    %v634 = vadd.f32 %v326, %v633
    %635 = vdwg.mxu0
    %636 = vmatpush.bf16.msra.mxu0 %v456
    %637 = vmatpush.bf16.msra.mxu0 %v454
    %638 = vmatpush.bf16.msra.mxu0 %v452
    %639 = vmatpush.bf16.msra.mxu0 %v450
    %640 = vmatpush.bf16.msra.mxu0 %v448
    %641 = vmatpush.bf16.msra.mxu0 %v446
    %642 = vmatpush.bf16.msra.mxu0 %v444
    %643 = vmatpush.bf16.msra.mxu0 %v442
    %644 = vmatmul.bf16.gmra.mxu0 %v276
    %v645 = vpop.f32.mrf.mxu0
    %v646 = vadd.f32 %v597, %v645
    %v647 = vpop.f32.mrf.mxu0
    %v648 = vadd.f32 %v599, %v647
    %649 = vmatmul.bf16.gmra.mxu0 %v278
    %v650 = vpop.f32.mrf.mxu0
    %v651 = vadd.f32 %v602, %v650
    %v652 = vpop.f32.mrf.mxu0
    %v653 = vadd.f32 %v604, %v652
    %654 = vmatmul.bf16.gmra.mxu0 %v280
    %v655 = vpop.f32.mrf.mxu0
    %v656 = vadd.f32 %v607, %v655
    %v657 = vpop.f32.mrf.mxu0
    %v658 = vadd.f32 %v609, %v657
    %659 = vmatmul.bf16.gmra.mxu0 %v282
    %v660 = vpop.f32.mrf.mxu0
    %v661 = vadd.f32 %v612, %v660
    %v662 = vpop.f32.mrf.mxu0
    %v663 = vadd.f32 %v614, %v662
    %664 = vmatmul.bf16.gmra.mxu0 %v284
    %v665 = vpop.f32.mrf.mxu0
    %v666 = vadd.f32 %v617, %v665
    %v667 = vpop.f32.mrf.mxu0
    %v668 = vadd.f32 %v619, %v667
    %669 = vmatmul.bf16.gmra.mxu0 %v286
    %v670 = vpop.f32.mrf.mxu0
    %v671 = vadd.f32 %v622, %v670
    %v672 = vpop.f32.mrf.mxu0
    %v673 = vadd.f32 %v624, %v672
    %674 = vmatmul.bf16.gmra.mxu0 %v288
    %v675 = vpop.f32.mrf.mxu0
    %v676 = vadd.f32 %v627, %v675
    %v677 = vpop.f32.mrf.mxu0
    %v678 = vadd.f32 %v629, %v677
    %679 = vmatmul.bf16.gmra.mxu0 %v290
    %v680 = vpop.f32.mrf.mxu0
    %v681 = vadd.f32 %v632, %v680
    %v682 = vpop.f32.mrf.mxu0
    %v683 = vadd.f32 %v634, %v682
    %684 = vdwg.mxu0
    %v685 = vmax.f32 %v548, 0.0
    %v686 = vmax.f32 %v646, 0.0
    %v687 = vmax.f32 %v550, 0.0
    %v688 = vmax.f32 %v648, 0.0
    %v689 = vmax.f32 %v553, 0.0
    %v690 = vmax.f32 %v651, 0.0
    %v691 = vmax.f32 %v555, 0.0
    %v692 = vmax.f32 %v653, 0.0
    %v693 = vmax.f32 %v558, 0.0
    %v694 = vmax.f32 %v656, 0.0
    %v695 = vmax.f32 %v560, 0.0
    %v696 = vmax.f32 %v658, 0.0
    %v697 = vmax.f32 %v563, 0.0
    %v698 = vmax.f32 %v661, 0.0
    %v699 = vmax.f32 %v565, 0.0
    %v700 = vmax.f32 %v663, 0.0
    %v701 = vmax.f32 %v568, 0.0
    %v702 = vmax.f32 %v666, 0.0
    %v703 = vmax.f32 %v570, 0.0
    %v704 = vmax.f32 %v668, 0.0
    %v705 = vmax.f32 %v573, 0.0
    %v706 = vmax.f32 %v671, 0.0
    %v707 = vmax.f32 %v575, 0.0
    %v708 = vmax.f32 %v673, 0.0
    %v709 = vmax.f32 %v578, 0.0
    %v710 = vmax.f32 %v676, 0.0
    %v711 = vmax.f32 %v580, 0.0
    %v712 = vmax.f32 %v678, 0.0
    %v713 = vmax.f32 %v583, 0.0
    %v714 = vmax.f32 %v681, 0.0
    %v715 = vmax.f32 %v585, 0.0
    %v716 = vmax.f32 %v683, 0.0
    %v717 = vpack.c.bf16 %v687, %v685
    %v718 = vpack.c.bf16 %v688, %v686
    %v719 = vpack.c.bf16 %v691, %v689
    %v720 = vpack.c.bf16 %v692, %v690
    %v721 = vpack.c.bf16 %v695, %v693
    %v722 = vpack.c.bf16 %v696, %v694
    %v723 = vpack.c.bf16 %v699, %v697
    %v724 = vpack.c.bf16 %v700, %v698
    %v725 = vpack.c.bf16 %v703, %v701
    %v726 = vpack.c.bf16 %v704, %v702
    %v727 = vpack.c.bf16 %v707, %v705
    %v728 = vpack.c.bf16 %v708, %v706
    %v729 = vpack.c.bf16 %v711, %v709
    %v730 = vpack.c.bf16 %v712, %v710
    %v731 = vpack.c.bf16 %v715, %v713
    %v732 = vpack.c.bf16 %v716, %v714
    %v733 = vld [vmem:[%s5] sm:$0xff]
    %v734 = vld [vmem:[%s5 + $0x8] sm:$0xff]
    %v735 = vld [vmem:[%s5 + $0x10] sm:$0xff]
    %v736 = vld [vmem:[%s5 + $0x18] sm:$0xff]
    %v737 = vld [vmem:[%s5 + $0x20] sm:$0xff]
    %v738 = vld [vmem:[%s5 + $0x28] sm:$0xff]
    %v739 = vld [vmem:[%s5 + $0x30] sm:$0xff]
    %v740 = vld [vmem:[%s5 + $0x38] sm:$0xff]
    %v741 = vld [vmem:[%s5 + $0x40] sm:$0xff]
    %v742 = vld [vmem:[%s5 + $0x48] sm:$0xff]
    %v743 = vld [vmem:[%s5 + $0x50] sm:$0xff]
    %v744 = vld [vmem:[%s5 + $0x58] sm:$0xff]
    %v745 = vld [vmem:[%s5 + $0x60] sm:$0xff]
    %v746 = vld [vmem:[%s5 + $0x68] sm:$0xff]
    %v747 = vld [vmem:[%s5 + $0x70] sm:$0xff]
    %v748 = vld [vmem:[%s5 + $0x78] sm:$0xff]
    %v749 = vld [vmem:[%s5 + $0x80] sm:$0xff]
    %v750 = vld [vmem:[%s5 + $0x88] sm:$0xff]
    %v751 = vld [vmem:[%s5 + $0x90] sm:$0xff]
    %v752 = vld [vmem:[%s5 + $0x98] sm:$0xff]
    %v753 = vld [vmem:[%s5 + $0xa0] sm:$0xff]
    %v754 = vld [vmem:[%s5 + $0xa8] sm:$0xff]
    %v755 = vld [vmem:[%s5 + $0xb0] sm:$0xff]
    %v756 = vld [vmem:[%s5 + $0xb8] sm:$0xff]
    %v757 = vld [vmem:[%s5 + $0xc0] sm:$0xff]
    %v758 = vld [vmem:[%s5 + $0xc8] sm:$0xff]
    %v759 = vld [vmem:[%s5 + $0xd0] sm:$0xff]
    %v760 = vld [vmem:[%s5 + $0xd8] sm:$0xff]
    %v761 = vld [vmem:[%s5 + $0xe0] sm:$0xff]
    %v762 = vld [vmem:[%s5 + $0xe8] sm:$0xff]
    %v763 = vld [vmem:[%s5 + $0xf0] sm:$0xff]
    %v764 = vld [vmem:[%s5 + $0xf8] sm:$0xff]
    %v765 = vld [vmem:[%s6] sm:$0x3]
    %v767 = vperm.slane %v765, 0
    %v768 = vperm.slane %v765, 1
    %v803 = vunpack.c.l.b16 %v733
    %v804 = vunpack.c.h.b16 %v733
    %v805 = vunpack.c.l.b16 %v734
    %v806 = vunpack.c.h.b16 %v734
    %v807 = vunpack.c.l.b16 %v735
    %v808 = vunpack.c.h.b16 %v735
    %v809 = vunpack.c.l.b16 %v736
    %v810 = vunpack.c.h.b16 %v736
    %v811 = vunpack.c.l.b16 %v737
    %v812 = vunpack.c.h.b16 %v737
    %v813 = vunpack.c.l.b16 %v738
    %v814 = vunpack.c.h.b16 %v738
    %v815 = vunpack.c.l.b16 %v739
    %v816 = vunpack.c.h.b16 %v739
    %v817 = vunpack.c.l.b16 %v740
    %v818 = vunpack.c.h.b16 %v740
    %v819 = vunpack.c.l.b16 %v741
    %v820 = vunpack.c.h.b16 %v741
    %v821 = vunpack.c.l.b16 %v742
    %v822 = vunpack.c.h.b16 %v742
    %v823 = vunpack.c.l.b16 %v743
    %v824 = vunpack.c.h.b16 %v743
    %v825 = vunpack.c.l.b16 %v744
    %v826 = vunpack.c.h.b16 %v744
    %v827 = vunpack.c.l.b16 %v745
    %v828 = vunpack.c.h.b16 %v745
    %v829 = vunpack.c.l.b16 %v746
    %v830 = vunpack.c.h.b16 %v746
    %v831 = vunpack.c.l.b16 %v747
    %v832 = vunpack.c.h.b16 %v747
    %v833 = vunpack.c.l.b16 %v748
    %v834 = vunpack.c.h.b16 %v748
    %v835 = vunpack.c.l.b16 %v749
    %v836 = vunpack.c.h.b16 %v749
    %v837 = vunpack.c.l.b16 %v750
    %v838 = vunpack.c.h.b16 %v750
    %v839 = vunpack.c.l.b16 %v751
    %v840 = vunpack.c.h.b16 %v751
    %v841 = vunpack.c.l.b16 %v752
    %v842 = vunpack.c.h.b16 %v752
    %v843 = vunpack.c.l.b16 %v753
    %v844 = vunpack.c.h.b16 %v753
    %v845 = vunpack.c.l.b16 %v754
    %v846 = vunpack.c.h.b16 %v754
    %v847 = vunpack.c.l.b16 %v755
    %v848 = vunpack.c.h.b16 %v755
    %v849 = vunpack.c.l.b16 %v756
    %v850 = vunpack.c.h.b16 %v756
    %v851 = vunpack.c.l.b16 %v757
    %v852 = vunpack.c.h.b16 %v757
    %v853 = vunpack.c.l.b16 %v758
    %v854 = vunpack.c.h.b16 %v758
    %v855 = vunpack.c.l.b16 %v759
    %v856 = vunpack.c.h.b16 %v759
    %v857 = vunpack.c.l.b16 %v760
    %v858 = vunpack.c.h.b16 %v760
    %v859 = vunpack.c.l.b16 %v761
    %v860 = vunpack.c.h.b16 %v761
    %v861 = vunpack.c.l.b16 %v762
    %v862 = vunpack.c.h.b16 %v762
    %v863 = vunpack.c.l.b16 %v763
    %v864 = vunpack.c.h.b16 %v763
    %v865 = vunpack.c.l.b16 %v764
    %v866 = vunpack.c.h.b16 %v764
    %v867 = vpack.c.b16 %v805, %v803
    %v868 = vpack.c.b16 %v806, %v804
    %v869 = vpack.c.b16 %v809, %v807
    %v870 = vpack.c.b16 %v810, %v808
    %v871 = vpack.c.b16 %v813, %v811
    %v872 = vpack.c.b16 %v814, %v812
    %v873 = vpack.c.b16 %v817, %v815
    %v874 = vpack.c.b16 %v818, %v816
    %v875 = vpack.c.b16 %v821, %v819
    %v876 = vpack.c.b16 %v822, %v820
    %v877 = vpack.c.b16 %v825, %v823
    %v878 = vpack.c.b16 %v826, %v824
    %v879 = vpack.c.b16 %v829, %v827
    %v880 = vpack.c.b16 %v830, %v828
    %v881 = vpack.c.b16 %v833, %v831
    %v882 = vpack.c.b16 %v834, %v832
    %v883 = vpack.c.b16 %v837, %v835
    %v884 = vpack.c.b16 %v838, %v836
    %v885 = vpack.c.b16 %v841, %v839
    %v886 = vpack.c.b16 %v842, %v840
    %v887 = vpack.c.b16 %v845, %v843
    %v888 = vpack.c.b16 %v846, %v844
    %v889 = vpack.c.b16 %v849, %v847
    %v890 = vpack.c.b16 %v850, %v848
    %v891 = vpack.c.b16 %v853, %v851
    %v892 = vpack.c.b16 %v854, %v852
    %v893 = vpack.c.b16 %v857, %v855
    %v894 = vpack.c.b16 %v858, %v856
    %v895 = vpack.c.b16 %v861, %v859
    %v896 = vpack.c.b16 %v862, %v860
    %v897 = vpack.c.b16 %v865, %v863
    %v898 = vpack.c.b16 %v866, %v864
    %931 = vmatpush.bf16.msra.mxu0 %v881
    %932 = vmatpush.bf16.msra.mxu0 %v879
    %933 = vmatpush.bf16.msra.mxu0 %v877
    %934 = vmatpush.bf16.msra.mxu0 %v875
    %935 = vmatpush.bf16.msra.mxu0 %v873
    %936 = vmatpush.bf16.msra.mxu0 %v871
    %937 = vmatpush.bf16.msra.mxu0 %v869
    %938 = vmatpush.bf16.msra.mxu0 %v867
    %939 = vmatmul.bf16.gmra.mxu0 %v717
    %v940 = vpop.f32.mrf.mxu0
    %v941 = vadd.f32 %v767, %v940
    %v942 = vpop.f32.mrf.mxu0
    %v943 = vadd.f32 %v767, %v942
    %944 = vmatmul.bf16.gmra.mxu0 %v719
    %v945 = vpop.f32.mrf.mxu0
    %v946 = vadd.f32 %v767, %v945
    %v947 = vpop.f32.mrf.mxu0
    %v948 = vadd.f32 %v767, %v947
    %949 = vmatmul.bf16.gmra.mxu0 %v721
    %v950 = vpop.f32.mrf.mxu0
    %v951 = vadd.f32 %v767, %v950
    %v952 = vpop.f32.mrf.mxu0
    %v953 = vadd.f32 %v767, %v952
    %954 = vmatmul.bf16.gmra.mxu0 %v723
    %v955 = vpop.f32.mrf.mxu0
    %v956 = vadd.f32 %v767, %v955
    %v957 = vpop.f32.mrf.mxu0
    %v958 = vadd.f32 %v767, %v957
    %959 = vmatmul.bf16.gmra.mxu0 %v725
    %v960 = vpop.f32.mrf.mxu0
    %v961 = vadd.f32 %v767, %v960
    %v962 = vpop.f32.mrf.mxu0
    %v963 = vadd.f32 %v767, %v962
    %964 = vmatmul.bf16.gmra.mxu0 %v727
    %v965 = vpop.f32.mrf.mxu0
    %v966 = vadd.f32 %v767, %v965
    %v967 = vpop.f32.mrf.mxu0
    %v968 = vadd.f32 %v767, %v967
    %969 = vmatmul.bf16.gmra.mxu0 %v729
    %v970 = vpop.f32.mrf.mxu0
    %v971 = vadd.f32 %v767, %v970
    %v972 = vpop.f32.mrf.mxu0
    %v973 = vadd.f32 %v767, %v972
    %974 = vmatmul.bf16.gmra.mxu0 %v731
    %v975 = vpop.f32.mrf.mxu0
    %v976 = vadd.f32 %v767, %v975
    %v977 = vpop.f32.mrf.mxu0
    %v978 = vadd.f32 %v767, %v977
    %979 = vdwg.mxu0
    %980 = vmatpush.bf16.msra.mxu0 %v897
    %981 = vmatpush.bf16.msra.mxu0 %v895
    %982 = vmatpush.bf16.msra.mxu0 %v893
    %983 = vmatpush.bf16.msra.mxu0 %v891
    %984 = vmatpush.bf16.msra.mxu0 %v889
    %985 = vmatpush.bf16.msra.mxu0 %v887
    %986 = vmatpush.bf16.msra.mxu0 %v885
    %987 = vmatpush.bf16.msra.mxu0 %v883
    %988 = vmatmul.bf16.gmra.mxu0 %v718
    %v989 = vpop.f32.mrf.mxu0
    %v990 = vadd.f32 %v941, %v989
    %v991 = vpop.f32.mrf.mxu0
    %v992 = vadd.f32 %v943, %v991
    %993 = vmatmul.bf16.gmra.mxu0 %v720
    %v994 = vpop.f32.mrf.mxu0
    %v995 = vadd.f32 %v946, %v994
    %v996 = vpop.f32.mrf.mxu0
    %v997 = vadd.f32 %v948, %v996
    %998 = vmatmul.bf16.gmra.mxu0 %v722
    %v999 = vpop.f32.mrf.mxu0
    %v1000 = vadd.f32 %v951, %v999
    %v1001 = vpop.f32.mrf.mxu0
    %v1002 = vadd.f32 %v953, %v1001
    %1003 = vmatmul.bf16.gmra.mxu0 %v724
    %v1004 = vpop.f32.mrf.mxu0
    %v1005 = vadd.f32 %v956, %v1004
    %v1006 = vpop.f32.mrf.mxu0
    %v1007 = vadd.f32 %v958, %v1006
    %1008 = vmatmul.bf16.gmra.mxu0 %v726
    %v1009 = vpop.f32.mrf.mxu0
    %v1010 = vadd.f32 %v961, %v1009
    %v1011 = vpop.f32.mrf.mxu0
    %v1012 = vadd.f32 %v963, %v1011
    %1013 = vmatmul.bf16.gmra.mxu0 %v728
    %v1014 = vpop.f32.mrf.mxu0
    %v1015 = vadd.f32 %v966, %v1014
    %v1016 = vpop.f32.mrf.mxu0
    %v1017 = vadd.f32 %v968, %v1016
    %1018 = vmatmul.bf16.gmra.mxu0 %v730
    %v1019 = vpop.f32.mrf.mxu0
    %v1020 = vadd.f32 %v971, %v1019
    %v1021 = vpop.f32.mrf.mxu0
    %v1022 = vadd.f32 %v973, %v1021
    %1023 = vmatmul.bf16.gmra.mxu0 %v732
    %v1024 = vpop.f32.mrf.mxu0
    %v1025 = vadd.f32 %v976, %v1024
    %v1026 = vpop.f32.mrf.mxu0
    %v1027 = vadd.f32 %v978, %v1026
    %1028 = vdwg.mxu0
    %1029 = vmatpush.bf16.msra.mxu0 %v882
    %1030 = vmatpush.bf16.msra.mxu0 %v880
    %1031 = vmatpush.bf16.msra.mxu0 %v878
    %1032 = vmatpush.bf16.msra.mxu0 %v876
    %1033 = vmatpush.bf16.msra.mxu0 %v874
    %1034 = vmatpush.bf16.msra.mxu0 %v872
    %1035 = vmatpush.bf16.msra.mxu0 %v870
    %1036 = vmatpush.bf16.msra.mxu0 %v868
    %1037 = vmatmul.bf16.gmra.mxu0 %v717
    %v1038 = vpop.f32.mrf.mxu0
    %v1039 = vadd.f32 %v768, %v1038
    %v1040 = vpop.f32.mrf.mxu0
    %v1041 = vadd.f32 %v768, %v1040
    %1042 = vmatmul.bf16.gmra.mxu0 %v719
    %v1043 = vpop.f32.mrf.mxu0
    %v1044 = vadd.f32 %v768, %v1043
    %v1045 = vpop.f32.mrf.mxu0
    %v1046 = vadd.f32 %v768, %v1045
    %1047 = vmatmul.bf16.gmra.mxu0 %v721
    %v1048 = vpop.f32.mrf.mxu0
    %v1049 = vadd.f32 %v768, %v1048
    %v1050 = vpop.f32.mrf.mxu0
    %v1051 = vadd.f32 %v768, %v1050
    %1052 = vmatmul.bf16.gmra.mxu0 %v723
    %v1053 = vpop.f32.mrf.mxu0
    %v1054 = vadd.f32 %v768, %v1053
    %v1055 = vpop.f32.mrf.mxu0
    %v1056 = vadd.f32 %v768, %v1055
    %1057 = vmatmul.bf16.gmra.mxu0 %v725
    %v1058 = vpop.f32.mrf.mxu0
    %v1059 = vadd.f32 %v768, %v1058
    %v1060 = vpop.f32.mrf.mxu0
    %v1061 = vadd.f32 %v768, %v1060
    %1062 = vmatmul.bf16.gmra.mxu0 %v727
    %v1063 = vpop.f32.mrf.mxu0
    %v1064 = vadd.f32 %v768, %v1063
    %v1065 = vpop.f32.mrf.mxu0
    %v1066 = vadd.f32 %v768, %v1065
    %1067 = vmatmul.bf16.gmra.mxu0 %v729
    %v1068 = vpop.f32.mrf.mxu0
    %v1069 = vadd.f32 %v768, %v1068
    %v1070 = vpop.f32.mrf.mxu0
    %v1071 = vadd.f32 %v768, %v1070
    %1072 = vmatmul.bf16.gmra.mxu0 %v731
    %v1073 = vpop.f32.mrf.mxu0
    %v1074 = vadd.f32 %v768, %v1073
    %v1075 = vpop.f32.mrf.mxu0
    %v1076 = vadd.f32 %v768, %v1075
    %1077 = vdwg.mxu0
    %1078 = vmatpush.bf16.msra.mxu0 %v898
    %1079 = vmatpush.bf16.msra.mxu0 %v896
    %1080 = vmatpush.bf16.msra.mxu0 %v894
    %1081 = vmatpush.bf16.msra.mxu0 %v892
    %1082 = vmatpush.bf16.msra.mxu0 %v890
    %1083 = vmatpush.bf16.msra.mxu0 %v888
    %1084 = vmatpush.bf16.msra.mxu0 %v886
    %1085 = vmatpush.bf16.msra.mxu0 %v884
    %1086 = vmatmul.bf16.gmra.mxu0 %v718
    %v1087 = vpop.f32.mrf.mxu0
    %v1088 = vadd.f32 %v1039, %v1087
    %v1089 = vpop.f32.mrf.mxu0
    %v1090 = vadd.f32 %v1041, %v1089
    %1091 = vmatmul.bf16.gmra.mxu0 %v720
    %v1092 = vpop.f32.mrf.mxu0
    %v1093 = vadd.f32 %v1044, %v1092
    %v1094 = vpop.f32.mrf.mxu0
    %v1095 = vadd.f32 %v1046, %v1094
    %1096 = vmatmul.bf16.gmra.mxu0 %v722
    %v1097 = vpop.f32.mrf.mxu0
    %v1098 = vadd.f32 %v1049, %v1097
    %v1099 = vpop.f32.mrf.mxu0
    %v1100 = vadd.f32 %v1051, %v1099
    %1101 = vmatmul.bf16.gmra.mxu0 %v724
    %v1102 = vpop.f32.mrf.mxu0
    %v1103 = vadd.f32 %v1054, %v1102
    %v1104 = vpop.f32.mrf.mxu0
    %v1105 = vadd.f32 %v1056, %v1104
    %1106 = vmatmul.bf16.gmra.mxu0 %v726
    %v1107 = vpop.f32.mrf.mxu0
    %v1108 = vadd.f32 %v1059, %v1107
    %v1109 = vpop.f32.mrf.mxu0
    %v1110 = vadd.f32 %v1061, %v1109
    %1111 = vmatmul.bf16.gmra.mxu0 %v728
    %v1112 = vpop.f32.mrf.mxu0
    %v1113 = vadd.f32 %v1064, %v1112
    %v1114 = vpop.f32.mrf.mxu0
    %v1115 = vadd.f32 %v1066, %v1114
    %1116 = vmatmul.bf16.gmra.mxu0 %v730
    %v1117 = vpop.f32.mrf.mxu0
    %v1118 = vadd.f32 %v1069, %v1117
    %v1119 = vpop.f32.mrf.mxu0
    %v1120 = vadd.f32 %v1071, %v1119
    %1121 = vmatmul.bf16.gmra.mxu0 %v732
    %v1122 = vpop.f32.mrf.mxu0
    %v1123 = vadd.f32 %v1074, %v1122
    %v1124 = vpop.f32.mrf.mxu0
    %v1125 = vadd.f32 %v1076, %v1124
    %1126 = vdwg.mxu0
    %v1127 = vmax.f32 %v990, 0.0
    %v1128 = vmax.f32 %v1088, 0.0
    %v1129 = vmax.f32 %v992, 0.0
    %v1130 = vmax.f32 %v1090, 0.0
    %v1131 = vmax.f32 %v995, 0.0
    %v1132 = vmax.f32 %v1093, 0.0
    %v1133 = vmax.f32 %v997, 0.0
    %v1134 = vmax.f32 %v1095, 0.0
    %v1135 = vmax.f32 %v1000, 0.0
    %v1136 = vmax.f32 %v1098, 0.0
    %v1137 = vmax.f32 %v1002, 0.0
    %v1138 = vmax.f32 %v1100, 0.0
    %v1139 = vmax.f32 %v1005, 0.0
    %v1140 = vmax.f32 %v1103, 0.0
    %v1141 = vmax.f32 %v1007, 0.0
    %v1142 = vmax.f32 %v1105, 0.0
    %v1143 = vmax.f32 %v1010, 0.0
    %v1144 = vmax.f32 %v1108, 0.0
    %v1145 = vmax.f32 %v1012, 0.0
    %v1146 = vmax.f32 %v1110, 0.0
    %v1147 = vmax.f32 %v1015, 0.0
    %v1148 = vmax.f32 %v1113, 0.0
    %v1149 = vmax.f32 %v1017, 0.0
    %v1150 = vmax.f32 %v1115, 0.0
    %v1151 = vmax.f32 %v1020, 0.0
    %v1152 = vmax.f32 %v1118, 0.0
    %v1153 = vmax.f32 %v1022, 0.0
    %v1154 = vmax.f32 %v1120, 0.0
    %v1155 = vmax.f32 %v1025, 0.0
    %v1156 = vmax.f32 %v1123, 0.0
    %v1157 = vmax.f32 %v1027, 0.0
    %v1158 = vmax.f32 %v1125, 0.0
    %v1159 = vpack.c.bf16 %v1129, %v1127
    %v1160 = vpack.c.bf16 %v1130, %v1128
    %v1161 = vpack.c.bf16 %v1133, %v1131
    %v1162 = vpack.c.bf16 %v1134, %v1132
    %v1163 = vpack.c.bf16 %v1137, %v1135
    %v1164 = vpack.c.bf16 %v1138, %v1136
    %v1165 = vpack.c.bf16 %v1141, %v1139
    %v1166 = vpack.c.bf16 %v1142, %v1140
    %v1167 = vpack.c.bf16 %v1145, %v1143
    %v1168 = vpack.c.bf16 %v1146, %v1144
    %v1169 = vpack.c.bf16 %v1149, %v1147
    %v1170 = vpack.c.bf16 %v1150, %v1148
    %v1171 = vpack.c.bf16 %v1153, %v1151
    %v1172 = vpack.c.bf16 %v1154, %v1152
    %v1173 = vpack.c.bf16 %v1157, %v1155
    %v1174 = vpack.c.bf16 %v1158, %v1156
    %v1175 = vld [vmem:[%s7] sm:$0xff]
    %v1176 = vld [vmem:[%s7 + $0x8] sm:$0xff]
    %v1177 = vld [vmem:[%s7 + $0x10] sm:$0xff]
    %v1178 = vld [vmem:[%s7 + $0x18] sm:$0xff]
    %v1179 = vld [vmem:[%s7 + $0x20] sm:$0xff]
    %v1180 = vld [vmem:[%s7 + $0x28] sm:$0xff]
    %v1181 = vld [vmem:[%s7 + $0x30] sm:$0xff]
    %v1182 = vld [vmem:[%s7 + $0x38] sm:$0xff]
    %v1183 = vld [vmem:[%s7 + $0x40] sm:$0xff]
    %v1184 = vld [vmem:[%s7 + $0x48] sm:$0xff]
    %v1185 = vld [vmem:[%s7 + $0x50] sm:$0xff]
    %v1186 = vld [vmem:[%s7 + $0x58] sm:$0xff]
    %v1187 = vld [vmem:[%s7 + $0x60] sm:$0xff]
    %v1188 = vld [vmem:[%s7 + $0x68] sm:$0xff]
    %v1189 = vld [vmem:[%s7 + $0x70] sm:$0xff]
    %v1190 = vld [vmem:[%s7 + $0x78] sm:$0xff]
    %v1191 = vld [vmem:[%s7 + $0x80] sm:$0xff]
    %v1192 = vld [vmem:[%s7 + $0x88] sm:$0xff]
    %v1193 = vld [vmem:[%s7 + $0x90] sm:$0xff]
    %v1194 = vld [vmem:[%s7 + $0x98] sm:$0xff]
    %v1195 = vld [vmem:[%s7 + $0xa0] sm:$0xff]
    %v1196 = vld [vmem:[%s7 + $0xa8] sm:$0xff]
    %v1197 = vld [vmem:[%s7 + $0xb0] sm:$0xff]
    %v1198 = vld [vmem:[%s7 + $0xb8] sm:$0xff]
    %v1199 = vld [vmem:[%s7 + $0xc0] sm:$0xff]
    %v1200 = vld [vmem:[%s7 + $0xc8] sm:$0xff]
    %v1201 = vld [vmem:[%s7 + $0xd0] sm:$0xff]
    %v1202 = vld [vmem:[%s7 + $0xd8] sm:$0xff]
    %v1203 = vld [vmem:[%s7 + $0xe0] sm:$0xff]
    %v1204 = vld [vmem:[%s7 + $0xe8] sm:$0xff]
    %v1205 = vld [vmem:[%s7 + $0xf0] sm:$0xff]
    %v1206 = vld [vmem:[%s7 + $0xf8] sm:$0xff]
    %v1207 = vld [vmem:[%s8] sm:$0x3]
    %v1209 = vperm.slane %v1207, 0
    %v1210 = vperm.slane %v1207, 1
    %v1245 = vunpack.c.l.b16 %v1175
    %v1246 = vunpack.c.h.b16 %v1175
    %v1247 = vunpack.c.l.b16 %v1176
    %v1248 = vunpack.c.h.b16 %v1176
    %v1249 = vunpack.c.l.b16 %v1177
    %v1250 = vunpack.c.h.b16 %v1177
    %v1251 = vunpack.c.l.b16 %v1178
    %v1252 = vunpack.c.h.b16 %v1178
    %v1253 = vunpack.c.l.b16 %v1179
    %v1254 = vunpack.c.h.b16 %v1179
    %v1255 = vunpack.c.l.b16 %v1180
    %v1256 = vunpack.c.h.b16 %v1180
    %v1257 = vunpack.c.l.b16 %v1181
    %v1258 = vunpack.c.h.b16 %v1181
    %v1259 = vunpack.c.l.b16 %v1182
    %v1260 = vunpack.c.h.b16 %v1182
    %v1261 = vunpack.c.l.b16 %v1183
    %v1262 = vunpack.c.h.b16 %v1183
    %v1263 = vunpack.c.l.b16 %v1184
    %v1264 = vunpack.c.h.b16 %v1184
    %v1265 = vunpack.c.l.b16 %v1185
    %v1266 = vunpack.c.h.b16 %v1185
    %v1267 = vunpack.c.l.b16 %v1186
    %v1268 = vunpack.c.h.b16 %v1186
    %v1269 = vunpack.c.l.b16 %v1187
    %v1270 = vunpack.c.h.b16 %v1187
    %v1271 = vunpack.c.l.b16 %v1188
    %v1272 = vunpack.c.h.b16 %v1188
    %v1273 = vunpack.c.l.b16 %v1189
    %v1274 = vunpack.c.h.b16 %v1189
    %v1275 = vunpack.c.l.b16 %v1190
    %v1276 = vunpack.c.h.b16 %v1190
    %v1277 = vunpack.c.l.b16 %v1191
    %v1278 = vunpack.c.h.b16 %v1191
    %v1279 = vunpack.c.l.b16 %v1192
    %v1280 = vunpack.c.h.b16 %v1192
    %v1281 = vunpack.c.l.b16 %v1193
    %v1282 = vunpack.c.h.b16 %v1193
    %v1283 = vunpack.c.l.b16 %v1194
    %v1284 = vunpack.c.h.b16 %v1194
    %v1285 = vunpack.c.l.b16 %v1195
    %v1286 = vunpack.c.h.b16 %v1195
    %v1287 = vunpack.c.l.b16 %v1196
    %v1288 = vunpack.c.h.b16 %v1196
    %v1289 = vunpack.c.l.b16 %v1197
    %v1290 = vunpack.c.h.b16 %v1197
    %v1291 = vunpack.c.l.b16 %v1198
    %v1292 = vunpack.c.h.b16 %v1198
    %v1293 = vunpack.c.l.b16 %v1199
    %v1294 = vunpack.c.h.b16 %v1199
    %v1295 = vunpack.c.l.b16 %v1200
    %v1296 = vunpack.c.h.b16 %v1200
    %v1297 = vunpack.c.l.b16 %v1201
    %v1298 = vunpack.c.h.b16 %v1201
    %v1299 = vunpack.c.l.b16 %v1202
    %v1300 = vunpack.c.h.b16 %v1202
    %v1301 = vunpack.c.l.b16 %v1203
    %v1302 = vunpack.c.h.b16 %v1203
    %v1303 = vunpack.c.l.b16 %v1204
    %v1304 = vunpack.c.h.b16 %v1204
    %v1305 = vunpack.c.l.b16 %v1205
    %v1306 = vunpack.c.h.b16 %v1205
    %v1307 = vunpack.c.l.b16 %v1206
    %v1308 = vunpack.c.h.b16 %v1206
    %v1309 = vpack.c.b16 %v1247, %v1245
    %v1310 = vpack.c.b16 %v1248, %v1246
    %v1311 = vpack.c.b16 %v1251, %v1249
    %v1312 = vpack.c.b16 %v1252, %v1250
    %v1313 = vpack.c.b16 %v1255, %v1253
    %v1314 = vpack.c.b16 %v1256, %v1254
    %v1315 = vpack.c.b16 %v1259, %v1257
    %v1316 = vpack.c.b16 %v1260, %v1258
    %v1317 = vpack.c.b16 %v1263, %v1261
    %v1318 = vpack.c.b16 %v1264, %v1262
    %v1319 = vpack.c.b16 %v1267, %v1265
    %v1320 = vpack.c.b16 %v1268, %v1266
    %v1321 = vpack.c.b16 %v1271, %v1269
    %v1322 = vpack.c.b16 %v1272, %v1270
    %v1323 = vpack.c.b16 %v1275, %v1273
    %v1324 = vpack.c.b16 %v1276, %v1274
    %v1325 = vpack.c.b16 %v1279, %v1277
    %v1326 = vpack.c.b16 %v1280, %v1278
    %v1327 = vpack.c.b16 %v1283, %v1281
    %v1328 = vpack.c.b16 %v1284, %v1282
    %v1329 = vpack.c.b16 %v1287, %v1285
    %v1330 = vpack.c.b16 %v1288, %v1286
    %v1331 = vpack.c.b16 %v1291, %v1289
    %v1332 = vpack.c.b16 %v1292, %v1290
    %v1333 = vpack.c.b16 %v1295, %v1293
    %v1334 = vpack.c.b16 %v1296, %v1294
    %v1335 = vpack.c.b16 %v1299, %v1297
    %v1336 = vpack.c.b16 %v1300, %v1298
    %v1337 = vpack.c.b16 %v1303, %v1301
    %v1338 = vpack.c.b16 %v1304, %v1302
    %v1339 = vpack.c.b16 %v1307, %v1305
    %v1340 = vpack.c.b16 %v1308, %v1306
    %1373 = vmatpush.bf16.msra.mxu0 %v1323
    %1374 = vmatpush.bf16.msra.mxu0 %v1321
    %1375 = vmatpush.bf16.msra.mxu0 %v1319
    %1376 = vmatpush.bf16.msra.mxu0 %v1317
    %1377 = vmatpush.bf16.msra.mxu0 %v1315
    %1378 = vmatpush.bf16.msra.mxu0 %v1313
    %1379 = vmatpush.bf16.msra.mxu0 %v1311
    %1380 = vmatpush.bf16.msra.mxu0 %v1309
    %1381 = vmatmul.bf16.gmra.mxu0 %v1159
    %v1382 = vpop.f32.mrf.mxu0
    %v1383 = vadd.f32 %v1209, %v1382
    %v1384 = vpop.f32.mrf.mxu0
    %v1385 = vadd.f32 %v1209, %v1384
    %1386 = vmatmul.bf16.gmra.mxu0 %v1161
    %v1387 = vpop.f32.mrf.mxu0
    %v1388 = vadd.f32 %v1209, %v1387
    %v1389 = vpop.f32.mrf.mxu0
    %v1390 = vadd.f32 %v1209, %v1389
    %1391 = vmatmul.bf16.gmra.mxu0 %v1163
    %v1392 = vpop.f32.mrf.mxu0
    %v1393 = vadd.f32 %v1209, %v1392
    %v1394 = vpop.f32.mrf.mxu0
    %v1395 = vadd.f32 %v1209, %v1394
    %1396 = vmatmul.bf16.gmra.mxu0 %v1165
    %v1397 = vpop.f32.mrf.mxu0
    %v1398 = vadd.f32 %v1209, %v1397
    %v1399 = vpop.f32.mrf.mxu0
    %v1400 = vadd.f32 %v1209, %v1399
    %1401 = vmatmul.bf16.gmra.mxu0 %v1167
    %v1402 = vpop.f32.mrf.mxu0
    %v1403 = vadd.f32 %v1209, %v1402
    %v1404 = vpop.f32.mrf.mxu0
    %v1405 = vadd.f32 %v1209, %v1404
    %1406 = vmatmul.bf16.gmra.mxu0 %v1169
    %v1407 = vpop.f32.mrf.mxu0
    %v1408 = vadd.f32 %v1209, %v1407
    %v1409 = vpop.f32.mrf.mxu0
    %v1410 = vadd.f32 %v1209, %v1409
    %1411 = vmatmul.bf16.gmra.mxu0 %v1171
    %v1412 = vpop.f32.mrf.mxu0
    %v1413 = vadd.f32 %v1209, %v1412
    %v1414 = vpop.f32.mrf.mxu0
    %v1415 = vadd.f32 %v1209, %v1414
    %1416 = vmatmul.bf16.gmra.mxu0 %v1173
    %v1417 = vpop.f32.mrf.mxu0
    %v1418 = vadd.f32 %v1209, %v1417
    %v1419 = vpop.f32.mrf.mxu0
    %v1420 = vadd.f32 %v1209, %v1419
    %1421 = vdwg.mxu0
    %1422 = vmatpush.bf16.msra.mxu0 %v1339
    %1423 = vmatpush.bf16.msra.mxu0 %v1337
    %1424 = vmatpush.bf16.msra.mxu0 %v1335
    %1425 = vmatpush.bf16.msra.mxu0 %v1333
    %1426 = vmatpush.bf16.msra.mxu0 %v1331
    %1427 = vmatpush.bf16.msra.mxu0 %v1329
    %1428 = vmatpush.bf16.msra.mxu0 %v1327
    %1429 = vmatpush.bf16.msra.mxu0 %v1325
    %1430 = vmatmul.bf16.gmra.mxu0 %v1160
    %v1431 = vpop.f32.mrf.mxu0
    %v1432 = vadd.f32 %v1383, %v1431
    %v1433 = vpop.f32.mrf.mxu0
    %v1434 = vadd.f32 %v1385, %v1433
    %1435 = vmatmul.bf16.gmra.mxu0 %v1162
    %v1436 = vpop.f32.mrf.mxu0
    %v1437 = vadd.f32 %v1388, %v1436
    %v1438 = vpop.f32.mrf.mxu0
    %v1439 = vadd.f32 %v1390, %v1438
    %1440 = vmatmul.bf16.gmra.mxu0 %v1164
    %v1441 = vpop.f32.mrf.mxu0
    %v1442 = vadd.f32 %v1393, %v1441
    %v1443 = vpop.f32.mrf.mxu0
    %v1444 = vadd.f32 %v1395, %v1443
    %1445 = vmatmul.bf16.gmra.mxu0 %v1166
    %v1446 = vpop.f32.mrf.mxu0
    %v1447 = vadd.f32 %v1398, %v1446
    %v1448 = vpop.f32.mrf.mxu0
    %v1449 = vadd.f32 %v1400, %v1448
    %1450 = vmatmul.bf16.gmra.mxu0 %v1168
    %v1451 = vpop.f32.mrf.mxu0
    %v1452 = vadd.f32 %v1403, %v1451
    %v1453 = vpop.f32.mrf.mxu0
    %v1454 = vadd.f32 %v1405, %v1453
    %1455 = vmatmul.bf16.gmra.mxu0 %v1170
    %v1456 = vpop.f32.mrf.mxu0
    %v1457 = vadd.f32 %v1408, %v1456
    %v1458 = vpop.f32.mrf.mxu0
    %v1459 = vadd.f32 %v1410, %v1458
    %1460 = vmatmul.bf16.gmra.mxu0 %v1172
    %v1461 = vpop.f32.mrf.mxu0
    %v1462 = vadd.f32 %v1413, %v1461
    %v1463 = vpop.f32.mrf.mxu0
    %v1464 = vadd.f32 %v1415, %v1463
    %1465 = vmatmul.bf16.gmra.mxu0 %v1174
    %v1466 = vpop.f32.mrf.mxu0
    %v1467 = vadd.f32 %v1418, %v1466
    %v1468 = vpop.f32.mrf.mxu0
    %v1469 = vadd.f32 %v1420, %v1468
    %1470 = vdwg.mxu0
    %1471 = vmatpush.bf16.msra.mxu0 %v1324
    %1472 = vmatpush.bf16.msra.mxu0 %v1322
    %1473 = vmatpush.bf16.msra.mxu0 %v1320
    %1474 = vmatpush.bf16.msra.mxu0 %v1318
    %1475 = vmatpush.bf16.msra.mxu0 %v1316
    %1476 = vmatpush.bf16.msra.mxu0 %v1314
    %1477 = vmatpush.bf16.msra.mxu0 %v1312
    %1478 = vmatpush.bf16.msra.mxu0 %v1310
    %1479 = vmatmul.bf16.gmra.mxu0 %v1159
    %v1480 = vpop.f32.mrf.mxu0
    %v1481 = vadd.f32 %v1210, %v1480
    %v1482 = vpop.f32.mrf.mxu0
    %v1483 = vadd.f32 %v1210, %v1482
    %1484 = vmatmul.bf16.gmra.mxu0 %v1161
    %v1485 = vpop.f32.mrf.mxu0
    %v1486 = vadd.f32 %v1210, %v1485
    %v1487 = vpop.f32.mrf.mxu0
    %v1488 = vadd.f32 %v1210, %v1487
    %1489 = vmatmul.bf16.gmra.mxu0 %v1163
    %v1490 = vpop.f32.mrf.mxu0
    %v1491 = vadd.f32 %v1210, %v1490
    %v1492 = vpop.f32.mrf.mxu0
    %v1493 = vadd.f32 %v1210, %v1492
    %1494 = vmatmul.bf16.gmra.mxu0 %v1165
    %v1495 = vpop.f32.mrf.mxu0
    %v1496 = vadd.f32 %v1210, %v1495
    %v1497 = vpop.f32.mrf.mxu0
    %v1498 = vadd.f32 %v1210, %v1497
    %1499 = vmatmul.bf16.gmra.mxu0 %v1167
    %v1500 = vpop.f32.mrf.mxu0
    %v1501 = vadd.f32 %v1210, %v1500
    %v1502 = vpop.f32.mrf.mxu0
    %v1503 = vadd.f32 %v1210, %v1502
    %1504 = vmatmul.bf16.gmra.mxu0 %v1169
    %v1505 = vpop.f32.mrf.mxu0
    %v1506 = vadd.f32 %v1210, %v1505
    %v1507 = vpop.f32.mrf.mxu0
    %v1508 = vadd.f32 %v1210, %v1507
    %1509 = vmatmul.bf16.gmra.mxu0 %v1171
    %v1510 = vpop.f32.mrf.mxu0
    %v1511 = vadd.f32 %v1210, %v1510
    %v1512 = vpop.f32.mrf.mxu0
    %v1513 = vadd.f32 %v1210, %v1512
    %1514 = vmatmul.bf16.gmra.mxu0 %v1173
    %v1515 = vpop.f32.mrf.mxu0
    %v1516 = vadd.f32 %v1210, %v1515
    %v1517 = vpop.f32.mrf.mxu0
    %v1518 = vadd.f32 %v1210, %v1517
    %1519 = vdwg.mxu0
    %1520 = vmatpush.bf16.msra.mxu0 %v1340
    %1521 = vmatpush.bf16.msra.mxu0 %v1338
    %1522 = vmatpush.bf16.msra.mxu0 %v1336
    %1523 = vmatpush.bf16.msra.mxu0 %v1334
    %1524 = vmatpush.bf16.msra.mxu0 %v1332
    %1525 = vmatpush.bf16.msra.mxu0 %v1330
    %1526 = vmatpush.bf16.msra.mxu0 %v1328
    %1527 = vmatpush.bf16.msra.mxu0 %v1326
    %1528 = vmatmul.bf16.gmra.mxu0 %v1160
    %v1529 = vpop.f32.mrf.mxu0
    %v1530 = vadd.f32 %v1481, %v1529
    %v1531 = vpop.f32.mrf.mxu0
    %v1532 = vadd.f32 %v1483, %v1531
    %1533 = vmatmul.bf16.gmra.mxu0 %v1162
    %v1534 = vpop.f32.mrf.mxu0
    %v1535 = vadd.f32 %v1486, %v1534
    %v1536 = vpop.f32.mrf.mxu0
    %v1537 = vadd.f32 %v1488, %v1536
    %1538 = vmatmul.bf16.gmra.mxu0 %v1164
    %v1539 = vpop.f32.mrf.mxu0
    %v1540 = vadd.f32 %v1491, %v1539
    %v1541 = vpop.f32.mrf.mxu0
    %v1542 = vadd.f32 %v1493, %v1541
    %1543 = vmatmul.bf16.gmra.mxu0 %v1166
    %v1544 = vpop.f32.mrf.mxu0
    %v1545 = vadd.f32 %v1496, %v1544
    %v1546 = vpop.f32.mrf.mxu0
    %v1547 = vadd.f32 %v1498, %v1546
    %1548 = vmatmul.bf16.gmra.mxu0 %v1168
    %v1549 = vpop.f32.mrf.mxu0
    %v1550 = vadd.f32 %v1501, %v1549
    %v1551 = vpop.f32.mrf.mxu0
    %v1552 = vadd.f32 %v1503, %v1551
    %1553 = vmatmul.bf16.gmra.mxu0 %v1170
    %v1554 = vpop.f32.mrf.mxu0
    %v1555 = vadd.f32 %v1506, %v1554
    %v1556 = vpop.f32.mrf.mxu0
    %v1557 = vadd.f32 %v1508, %v1556
    %1558 = vmatmul.bf16.gmra.mxu0 %v1172
    %v1559 = vpop.f32.mrf.mxu0
    %v1560 = vadd.f32 %v1511, %v1559
    %v1561 = vpop.f32.mrf.mxu0
    %v1562 = vadd.f32 %v1513, %v1561
    %1563 = vmatmul.bf16.gmra.mxu0 %v1174
    %v1564 = vpop.f32.mrf.mxu0
    %v1565 = vadd.f32 %v1516, %v1564
    %v1566 = vpop.f32.mrf.mxu0
    %v1567 = vadd.f32 %v1518, %v1566
    %1568 = vdwg.mxu0
    %v1569 = vmax.f32 %v1432, 0.0
    %v1570 = vmax.f32 %v1530, 0.0
    %v1571 = vmax.f32 %v1434, 0.0
    %v1572 = vmax.f32 %v1532, 0.0
    %v1573 = vmax.f32 %v1437, 0.0
    %v1574 = vmax.f32 %v1535, 0.0
    %v1575 = vmax.f32 %v1439, 0.0
    %v1576 = vmax.f32 %v1537, 0.0
    %v1577 = vmax.f32 %v1442, 0.0
    %v1578 = vmax.f32 %v1540, 0.0
    %v1579 = vmax.f32 %v1444, 0.0
    %v1580 = vmax.f32 %v1542, 0.0
    %v1581 = vmax.f32 %v1447, 0.0
    %v1582 = vmax.f32 %v1545, 0.0
    %v1583 = vmax.f32 %v1449, 0.0
    %v1584 = vmax.f32 %v1547, 0.0
    %v1585 = vmax.f32 %v1452, 0.0
    %v1586 = vmax.f32 %v1550, 0.0
    %v1587 = vmax.f32 %v1454, 0.0
    %v1588 = vmax.f32 %v1552, 0.0
    %v1589 = vmax.f32 %v1457, 0.0
    %v1590 = vmax.f32 %v1555, 0.0
    %v1591 = vmax.f32 %v1459, 0.0
    %v1592 = vmax.f32 %v1557, 0.0
    %v1593 = vmax.f32 %v1462, 0.0
    %v1594 = vmax.f32 %v1560, 0.0
    %v1595 = vmax.f32 %v1464, 0.0
    %v1596 = vmax.f32 %v1562, 0.0
    %v1597 = vmax.f32 %v1467, 0.0
    %v1598 = vmax.f32 %v1565, 0.0
    %v1599 = vmax.f32 %v1469, 0.0
    %v1600 = vmax.f32 %v1567, 0.0
    %1601 = vst [vmem:[#allocation2] sm:$0xff] %v1569
    %1602 = vst [vmem:[#allocation2 + $0x8] sm:$0xff] %v1570
    %1603 = vst [vmem:[#allocation2 + $0x10] sm:$0xff] %v1571
    %1604 = vst [vmem:[#allocation2 + $0x18] sm:$0xff] %v1572
    %1605 = vst [vmem:[#allocation2 + $0x20] sm:$0xff] %v1573
    %1606 = vst [vmem:[#allocation2 + $0x28] sm:$0xff] %v1574
    %1607 = vst [vmem:[#allocation2 + $0x30] sm:$0xff] %v1575
    %1608 = vst [vmem:[#allocation2 + $0x38] sm:$0xff] %v1576
    %1609 = vst [vmem:[#allocation2 + $0x40] sm:$0xff] %v1577
    %1610 = vst [vmem:[#allocation2 + $0x48] sm:$0xff] %v1578
    %1611 = vst [vmem:[#allocation2 + $0x50] sm:$0xff] %v1579
    %1612 = vst [vmem:[#allocation2 + $0x58] sm:$0xff] %v1580
    %1613 = vst [vmem:[#allocation2 + $0x60] sm:$0xff] %v1581
    %1614 = vst [vmem:[#allocation2 + $0x68] sm:$0xff] %v1582
    %1615 = vst [vmem:[#allocation2 + $0x70] sm:$0xff] %v1583
    %1616 = vst [vmem:[#allocation2 + $0x78] sm:$0xff] %v1584
    %1617 = vst [vmem:[#allocation2 + $0x80] sm:$0xff] %v1585
    %1618 = vst [vmem:[#allocation2 + $0x88] sm:$0xff] %v1586
    %1619 = vst [vmem:[#allocation2 + $0x90] sm:$0xff] %v1587
    %1620 = vst [vmem:[#allocation2 + $0x98] sm:$0xff] %v1588
    %1621 = vst [vmem:[#allocation2 + $0xa0] sm:$0xff] %v1589
    %1622 = vst [vmem:[#allocation2 + $0xa8] sm:$0xff] %v1590
    %1623 = vst [vmem:[#allocation2 + $0xb0] sm:$0xff] %v1591
    %1624 = vst [vmem:[#allocation2 + $0xb8] sm:$0xff] %v1592
    %1625 = vst [vmem:[#allocation2 + $0xc0] sm:$0xff] %v1593
    %1626 = vst [vmem:[#allocation2 + $0xc8] sm:$0xff] %v1594
    %1627 = vst [vmem:[#allocation2 + $0xd0] sm:$0xff] %v1595
    %1628 = vst [vmem:[#allocation2 + $0xd8] sm:$0xff] %v1596
    %1629 = vst [vmem:[#allocation2 + $0xe0] sm:$0xff] %v1597
    %1630 = vst [vmem:[#allocation2 + $0xe8] sm:$0xff] %v1598
    %1631 = vst [vmem:[#allocation2 + $0xf0] sm:$0xff] %v1599
    %1632 = vst [vmem:[#allocation2 + $0xf8] sm:$0xff] %v1600
    // Predicated region
    $region38: #{_forward.1} parent=1 // pred_check
      _
    $region39: #{_forward.1} parent=1 // pred_check_branch
      %1634 = sbr.rel (0) target = $region41
    $region40: #{_forward.1} parent=1 // pred_region
      %1636 = vsyncadd [#allocation3], 0
      %s1637 = sshll.u32 [#allocation2], 4
      %s1638 = int_to_ptr.vmem [resolvable:$true] %s1637
      %s1639 = sshll.u32 %s9, 4
      %s1640 = int_to_ptr.hbm [resolvable:$true] %s1639
      %1645 = dma.vmem_to_hbm [thread:$0]  %s1638, 4096, %s1640, [#allocation3], 256, 256, 16
    $region41: #{_forward.1} parent=1 // pred_fallthru
      _
    // Predicated region
    $region42: #{_forward.1} parent=1 // pred_check
      _
    $region43: #{_forward.1} parent=1 // pred_check_branch
      %1647 = sbr.rel (0) target = $region45
    $region44: #{_forward.1} parent=1 // pred_region
      %1649 = dma.done [#allocation3], 4096
    $region45: #{_forward.1} parent=1 // pred_fallthru
      _
    %1650 = vsyncpa [#allocation3], 1

</llo_original>
